<compile_context>
chip_gen: v7x
topology: tpu7x:2x2x1
jax: 0.10.0
libtpu: 0.0.40
codegen_flags: <defaults>
</compile_context>

<pallas_src>
import functools
import math

import numpy as np
import jax
import jax.numpy as jnp
from jax.experimental import pallas as pl
from jax.experimental.pallas import tpu as pltpu

_BN_EPS = 1e-5
_LEAKY_SLOPE = 0.1          # nn.LeakyReLU(0.1) in the torch spec
_PACK_ALIGN = 16            # bf16 sublane tile = 16 rows -> tile-aligned slices


def _round_up(x, m):
    return ((x + m - 1) // m) * m


def _conv_out(n, k, stride, pad, dil):
    return (n + 2 * pad - dil * (k - 1) - 1) // stride + 1


# ----------------------------------------------------------------------------
# Parameter packing: many small 2-D matrices -> one tall array, static offsets
# ----------------------------------------------------------------------------
class _Pack:
    def __init__(self, align=_PACK_ALIGN):
        self.mats, self.off, self.align = [], 0, align

    def add(self, m):
        m = np.atleast_2d(np.asarray(m, np.float32))
        rows, cols = m.shape
        meta = (self.off, rows, cols)          # static (row_offset, rows, cols)
        self.mats.append(m)
        self.off += _round_up(rows, self.align)
        return meta

    def finalize(self, dtype):
        if not self.mats:
            return jnp.zeros((self.align, 8), dtype)
        width = max(m.shape[1] for m in self.mats)
        buf = np.zeros((self.off, width), np.float32)
        off = 0
        for m in self.mats:
            r, c = m.shape
            buf[off:off + r, :c] = m
            off += _round_up(r, self.align)
        return jnp.asarray(buf).astype(dtype)


# ----------------------------------------------------------------------------
# Stage builders: Conv2d(+BN)+act, flatten+Linear(+BN1d)+Tanh, Linear(+act)
# Each stage is   out = act( sum_i (R_i @ in) @ G_i + bias_row ) [+ residual]
# ----------------------------------------------------------------------------
def _conv_stage(packs, raw, *, B, hin, win, stride, padding, dilation, act):
    rpk, gpk, bpk = packs
    w = np.asarray(raw[0], np.float32)
    b = np.asarray(raw[1], np.float32)
    gamma = None if raw[2] is None else np.asarray(raw[2], np.float32)
    beta = None if raw[3] is None else np.asarray(raw[3], np.float32)
    cout, cin, kh, kw = w.shape
    if gamma is not None:                      # fold BN (init running stats)
        scale = gamma / np.sqrt(1.0 + _BN_EPS)
        w = w * scale[:, None, None, None]
        b = b * scale + beta
    hout = _conv_out(hin, kh, stride, padding, dilation)
    wout = _conv_out(win, kw, stride, padding, dilation)

    taps = []
    for i in range(kh):
        R = np.zeros((B * hout, B * hin), np.float32)
        for bi in range(B):
            for oh in range(hout):
                hi = oh * stride + i * dilation - padding
                if 0 <= hi < hin:
                    R[bi * hout + oh, bi * hin + hi] = 1.0
        if not R.any():                        # tap fully in the padding
            continue
        G = np.zeros((cin * win, cout * wout), np.float32)
        for j in range(kw):
            for ow in range(wout):
                wi = ow * stride + j * dilation - padding
                if 0 <= wi < win:
                    rows = np.arange(cin) * win + wi
                    cols = np.arange(cout) * wout + ow
                    G[np.ix_(rows, cols)] += w[:, :, i, j].T
        r_meta = None
        if not np.array_equal(R, np.eye(B * hin, dtype=np.float32)):
            r_meta = rpk.add(R)
        taps.append((r_meta, gpk.add(G)))
    assert taps, "conv stage with no valid taps"

    stage = {"taps": taps,
             "bias": bpk.add(np.repeat(b, wout)[None, :]),
             "act": act,
             "in_shape": (B * hin, cin * win),
             "out_shape": (B * hout, cout * wout)}
    return stage, (hout, wout, cout)


def _fc_first_stage(packs, raw, *, B, hf, wf, cf):
    """Flatten (torch NCHW order) fused into the first Linear + BN1d + Tanh."""
    rpk, gpk, bpk = packs
    w, b, gamma, beta = [np.asarray(a, np.float32) for a in raw]
    scale = gamma / np.sqrt(1.0 + _BN_EPS)
    w = w * scale[:, None]
    b = b * scale + beta
    dout = w.shape[0]
    assert w.shape[1] == cf * hf * wf
    taps = []
    for h in range(hf):
        Sel = np.zeros((B, B * hf), np.float32)
        for bi in range(B):
            Sel[bi, bi * hf + h] = 1.0
        A = np.zeros((cf * wf, dout), np.float32)
        for c in range(cf):
            for w_ in range(wf):
                A[c * wf + w_, :] = w[:, c * hf * wf + h * wf + w_]
        r_meta = None
        if not np.array_equal(Sel, np.eye(B * hf, dtype=np.float32)):
            r_meta = rpk.add(Sel)
        taps.append((r_meta, gpk.add(A)))
    return {"taps": taps, "bias": bpk.add(b[None, :]), "act": "tanh",
            "in_shape": (B * hf, cf * wf), "out_shape": (B, dout)}


def _fc_dense_stage(packs, w, b, gamma, beta, *, B, din, act):
    _, gpk, bpk = packs
    w = np.asarray(w, np.float32)
    b = np.asarray(b, np.float32)
    if gamma is not None:
        scale = np.asarray(gamma, np.float32) / np.sqrt(1.0 + _BN_EPS)
        w = w * scale[:, None]
        b = b * scale + np.asarray(beta, np.float32)
    dout = w.shape[0]
    assert w.shape[1] == din
    return {"taps": [(None, gpk.add(np.ascontiguousarray(w.T)))],
            "bias": bpk.add(b[None, :]), "act": act,
            "in_shape": (B, din), "out_shape": (B, dout)}


def prepare_params(raw, *, B, img_size, supervised=False):
    packs = (_Pack(), _Pack(), _Pack())
    blocks_plan = []
    h = w = img_size
    c = 1
    for bi, bp in enumerate(raw["blocks"]):
        d = bi + 1
        blk = {}
        blk["skip_c1"], (sh, sw, sc) = _conv_stage(
            packs, bp["skip_c1"], B=B, hin=h, win=w,
            stride=1, padding=0, dilation=1, act="leaky")
        blk["skip_c2"], (sh, sw, sc) = _conv_stage(
            packs, bp["skip_c2"], B=B, hin=sh, win=sw,
            stride=4, padding=1, dilation=1, act="none")
        blk["ds1_c1"], (th, tw, tc) = _conv_stage(
            packs, bp["ds1_c1"], B=B, hin=h, win=w,
            stride=2, padding=1, dilation=1, act="leaky")
        blk["ds1_c2"], (th, tw, tc) = _conv_stage(
            packs, bp["ds1_c2"], B=B, hin=th, win=tw,
            stride=1, padding=d, dilation=d, act="leaky")
        blk["ds2_c1"], (th, tw, tc) = _conv_stage(
            packs, bp["ds2_c1"], B=B, hin=th, win=tw,
            stride=2, padding=1, dilation=1, act="leaky")
        blk["ds2_c2"], (th, tw, tc) = _conv_stage(
            packs, bp["ds2_c2"], B=B, hin=th, win=tw,
            stride=1, padding=d, dilation=d, act="leaky")
        assert (sh, sw, sc) == (th, tw, tc), "skip / downsample shape mismatch"
        blocks_plan.append(blk)
        h, w, c = th, tw, tc

    fc_stages = [_fc_first_stage(packs, raw["fc"][0], B=B, hf=h, wf=w, cf=c)]
    din = fc_stages[-1]["out_shape"][1]
    for (fw, fb, fg, fbeta) in raw["fc"][1:]:
        fc_stages.append(_fc_dense_stage(packs, fw, fb, fg, fbeta,
                                         B=B, din=din, act="tanh"))
        din = fc_stages[-1]["out_shape"][1]
    wl, bl = raw["last"]
    fc_stages.append(_fc_dense_stage(packs, wl, bl, None, None,
                                     B=B, din=din, act="last"))

    plan = {"blocks": blocks_plan, "fc": fc_stages, "B": B,
            "in_shape": (B * img_size, img_size),
            "out_dim": fc_stages[-1]["out_shape"][1]}
    arrays = {"r": packs[0].finalize(jnp.bfloat16),
              "g": packs[1].finalize(jnp.bfloat16),
              "bias": packs[2].finalize(jnp.float32)}
    return {"plan": plan, "arrays": arrays, "supervised": supervised}


# ----------------------------------------------------------------------------
# The single whole-encoder Pallas kernel
# ----------------------------------------------------------------------------
def _encoder_kernel(x_ref, r_ref, g_ref, b_ref, o_ref, *, plan, supervised):
    def take(ref, meta):
        off, rows, cols = meta
        return ref[off:off + rows, :cols]

    def stage(h, st, residual=None):
        assert h.shape == st["in_shape"], (h.shape, st["in_shape"])
        acc = None
        for r_meta, g_meta in st["taps"]:
            t = h
            if r_meta is not None:                      # row select (H taps)
                t = jnp.dot(take(r_ref, r_meta), t,
                            preferred_element_type=jnp.float32
                            ).astype(jnp.bfloat16)      # exact: R is 0/1
            y = jnp.dot(t, take(g_ref, g_meta),         # weights + W taps
                        preferred_element_type=jnp.float32)
            acc = y if acc is None else acc + y
        acc = acc + take(b_ref, st["bias"])              # (1, N) broadcast add
        act = st["act"]
        if act == "leaky":
            acc = jnp.where(acc >= 0.0, acc, _LEAKY_SLOPE * acc)
        elif act == "tanh":
            acc = jnp.tanh(acc)
        elif act == "last":
            if supervised:
                acc = jax.nn.sigmoid(acc) * 1.1 - 0.05
            else:
                acc = jnp.tanh(acc)
        if residual is not None:                         # x += identity
            acc = acc + residual
        assert acc.shape == st["out_shape"], (acc.shape, st["out_shape"])
        return acc

    h = x_ref[...]                                       # bf16 (B*H0, W0)
    for blk in plan["blocks"]:
        skip = stage(h, blk["skip_c1"]).astype(jnp.bfloat16)
        skip = stage(skip, blk["skip_c2"])               # f32, no activation
        t = stage(h, blk["ds1_c1"]).astype(jnp.bfloat16)
        t = stage(t, blk["ds1_c2"]).astype(jnp.bfloat16)
        t = stage(t, blk["ds2_c1"]).astype(jnp.bfloat16)
        h = stage(t, blk["ds2_c2"], residual=skip).astype(jnp.bfloat16)

    z, last = h, None
    for st in plan["fc"]:                                # flatten+FC fused
        last = stage(z, st)
        z = last.astype(jnp.bfloat16)
    o_ref[...] = last                                    # (B, latent) f32


def conv_mlp_encoder(x, prepped):
    """x: (B, 1, H, W) float32 NCHW (PyTorch layout)."""
    plan, arrays = prepped["plan"], prepped["arrays"]
    assert x.ndim == 4 and x.shape[1] == 1, x.shape
    rows, cols = plan["in_shape"]
    assert x.shape[0] * x.shape[2] == rows and x.shape[3] == cols, x.shape
    x2d = x.reshape(rows, cols).astype(jnp.bfloat16)

    kernel = functools.partial(_encoder_kernel, plan=plan,
                               supervised=prepped["supervised"])
    vmem = pl.BlockSpec(memory_space=pltpu.MemorySpace.VMEM)
    return pl.pallas_call(
        kernel,
        in_specs=[vmem, vmem, vmem, vmem],
        out_specs=vmem,
        out_shape=jax.ShapeDtypeStruct((plan["B"], plan["out_dim"]),
                                       jnp.float32),
    )(x2d, arrays["r"], arrays["g"], arrays["bias"])


# ----------------------------------------------------------------------------
# Deterministic synthetic parameters (torch-like shapes / init-time BN stats)
# ----------------------------------------------------------------------------
def _conv_raw(key, cout, cin, k, bn=True):
    kw_, kb_ = jax.random.split(key)
    w = jax.random.normal(kw_, (cout, cin, k, k), jnp.float32) / math.sqrt(cin * k * k)
    b = jax.random.normal(kb_, (cout,), jnp.float32) * 0.01
    if bn:
        return (w, b, jnp.ones((cout,), jnp.float32), jnp.zeros((cout,), jnp.float32))
    return (w, b, None, None)


def init_params(key, channels, img_size, fc_dims, latent_dim):
    keys = iter(jax.random.split(key, 64))
    blocks = []
    h = img_size
    for i, cout in enumerate(channels):
        cin = 1 if i == 0 else channels[i - 1]
        blocks.append({
            "skip_c1": _conv_raw(next(keys), cout, cin, 1, bn=True),
            "skip_c2": _conv_raw(next(keys), cout, cout, 3, bn=False),
            "ds1_c1": _conv_raw(next(keys), cout, cin, 3, bn=True),
            "ds1_c2": _conv_raw(next(keys), cout, cout, 3, bn=True),
            "ds2_c1": _conv_raw(next(keys), cout, cout, 3, bn=True),
            "ds2_c2": _conv_raw(next(keys), cout, cout, 3, bn=True),
        })
        h = ((h - 1) // 2 + 1 - 1) // 2 + 1          # two stride-2 convs
    flat_dim = channels[-1] * h * h                  # dim_after_flatten

    fc, din = [], flat_dim
    for d in fc_dims:
        kw_, kb_ = jax.random.split(next(keys))
        w = jax.random.normal(kw_, (d, din), jnp.float32) / math.sqrt(din)
        b = jax.random.normal(kb_, (d,), jnp.float32) * 0.01
        fc.append((w, b, jnp.ones((d,), jnp.float32), jnp.zeros((d,), jnp.float32)))
        din = d
    kw_, kb_ = jax.random.split(next(keys))
    wl = jax.random.normal(kw_, (latent_dim, din), jnp.float32) / math.sqrt(din)
    bl = jax.random.normal(kb_, (latent_dim,), jnp.float32) * 0.01
    return {"blocks": blocks, "fc": fc, "last": (wl, bl)}


if __name__ == "__main__":
    B, img_size = 2, 32
    channels = [4, 8, 8]
    fc_dims = [16]
    latent_dim = 2

    key = jax.random.PRNGKey(0)
    pkey, xkey = jax.random.split(key)
    raw = init_params(pkey, channels, img_size, fc_dims, latent_dim)
    params = prepare_params(raw, B=B, img_size=img_size, supervised=False)
    x = jax.random.normal(xkey, (B, 1, img_size, img_size), jnp.float32)

    fwd = jax.jit(lambda inp: conv_mlp_encoder(inp, params))
    out = jax.block_until_ready(fwd(x))
    assert out.shape == (B, latent_dim), out.shape
    assert bool(jnp.all(jnp.isfinite(out)))
    assert bool(jnp.all(jnp.abs(out) <= 1.0 + 1e-3))   # tanh-bounded output
    print("KERNEL_OK")
</pallas_src>

<mosaic_0001>
module attributes {stable_mosaic.version = 11 : i64} {
  func.func @_encoder_kernel(%arg0: memref<64x32xbf16, #tpu.memory_space<vmem>>, %arg1: memref<528x64xbf16, #tpu.memory_space<vmem>>, %arg2: memref<1680x128xbf16, #tpu.memory_space<vmem>>, %arg3: memref<320x128xf32, #tpu.memory_space<vmem>>, %arg4: memref<2x2xf32, #tpu.memory_space<vmem>>) attributes {dimension_semantics = [], scalar_prefetch = 0 : i64, scratch_operands = 0 : i64, tpu.core_type = #tpu.core_type<tc>} {
    %c0 = arith.constant 0 : index
    %c0_0 = arith.constant 0 : index
    %0 = vector.load %arg0[%c0, %c0_0] : memref<64x32xbf16, #tpu.memory_space<vmem>>, vector<64x32xbf16>
    %c0_1 = arith.constant 0 : index
    %c0_2 = arith.constant 0 : index
    %1 = vector.load %arg2[%c0_1, %c0_2] : memref<1680x128xbf16, #tpu.memory_space<vmem>>, vector<32x128xbf16>
    %cst = arith.constant dense<0.000000e+00> : vector<64x128xf32>
    %2 = tpu.matmul %0, %1, %cst {dimension_numbers = #tpu.dot_dimension_numbers<[1], [0], [0], [1], [0, 0, 1, 1], [], []>} : vector<64x32xbf16>, vector<32x128xbf16>, vector<64x128xf32> -> vector<64x128xf32>
    %c0_3 = arith.constant 0 : index
    %c0_4 = arith.constant 0 : index
    %3 = vector.load %arg3[%c0_3, %c0_4] : memref<320x128xf32, #tpu.memory_space<vmem>>, vector<1x128xf32>
    %4 = vector.broadcast %3 : vector<1x128xf32> to vector<64x128xf32>
    %5 = arith.addf %2, %4 : vector<64x128xf32>
    %cst_5 = arith.constant 0.000000e+00 : f32
    %6 = vector.broadcast %cst_5 : f32 to vector<64x128xf32>
    %7 = arith.cmpf oge, %5, %6 : vector<64x128xf32>
    %cst_6 = arith.constant 1.000000e-01 : f32
    %8 = vector.broadcast %cst_6 : f32 to vector<64x128xf32>
    %9 = arith.mulf %8, %5 : vector<64x128xf32>
    %10 = arith.select %7, %5, %9 : vector<64x128xi1>, vector<64x128xf32>
    %11 = arith.truncf %10 : vector<64x128xf32> to vector<64x128xbf16>
    %c0_7 = arith.constant 0 : index
    %c0_8 = arith.constant 0 : index
    %12 = vector.load %arg1[%c0_7, %c0_8] : memref<528x64xbf16, #tpu.memory_space<vmem>>, vector<16x64xbf16>
    %cst_9 = arith.constant dense<0.000000e+00> : vector<16x128xf32>
    %13 = tpu.matmul %12, %11, %cst_9 {dimension_numbers = #tpu.dot_dimension_numbers<[1], [0], [0], [1], [0, 0, 1, 1], [], []>} : vector<16x64xbf16>, vector<64x128xbf16>, vector<16x128xf32> -> vector<16x128xf32>
    %14 = arith.truncf %13 : vector<16x128xf32> to vector<16x128xbf16>
    %c32 = arith.constant 32 : index
    %c0_10 = arith.constant 0 : index
    %15 = vector.load %arg2[%c32, %c0_10] : memref<1680x128xbf16, #tpu.memory_space<vmem>>, vector<128x32xbf16>
    %cst_11 = arith.constant dense<0.000000e+00> : vector<16x32xf32>
    %16 = tpu.matmul %14, %15, %cst_11 {dimension_numbers = #tpu.dot_dimension_numbers<[1], [0], [0], [1], [0, 0, 1, 1], [], []>} : vector<16x128xbf16>, vector<128x32xbf16>, vector<16x32xf32> -> vector<16x32xf32>
    %c16 = arith.constant 16 : index
    %c0_12 = arith.constant 0 : index
    %17 = vector.load %arg1[%c16, %c0_12] : memref<528x64xbf16, #tpu.memory_space<vmem>>, vector<16x64xbf16>
    %cst_13 = arith.constant dense<0.000000e+00> : vector<16x128xf32>
    %18 = tpu.matmul %17, %11, %cst_13 {dimension_numbers = #tpu.dot_dimension_numbers<[1], [0], [0], [1], [0, 0, 1, 1], [], []>} : vector<16x64xbf16>, vector<64x128xbf16>, vector<16x128xf32> -> vector<16x128xf32>
    %19 = arith.truncf %18 : vector<16x128xf32> to vector<16x128xbf16>
    %c160 = arith.constant 160 : index
    %c0_14 = arith.constant 0 : index
    %20 = vector.load %arg2[%c160, %c0_14] : memref<1680x128xbf16, #tpu.memory_space<vmem>>, vector<128x32xbf16>
    %cst_15 = arith.constant dense<0.000000e+00> : vector<16x32xf32>
    %21 = tpu.matmul %19, %20, %cst_15 {dimension_numbers = #tpu.dot_dimension_numbers<[1], [0], [0], [1], [0, 0, 1, 1], [], []>} : vector<16x128xbf16>, vector<128x32xbf16>, vector<16x32xf32> -> vector<16x32xf32>
    %22 = arith.addf %16, %21 : vector<16x32xf32>
    %c32_16 = arith.constant 32 : index
    %c0_17 = arith.constant 0 : index
    %23 = vector.load %arg1[%c32_16, %c0_17] : memref<528x64xbf16, #tpu.memory_space<vmem>>, vector<16x64xbf16>
    %cst_18 = arith.constant dense<0.000000e+00> : vector<16x128xf32>
    %24 = tpu.matmul %23, %11, %cst_18 {dimension_numbers = #tpu.dot_dimension_numbers<[1], [0], [0], [1], [0, 0, 1, 1], [], []>} : vector<16x64xbf16>, vector<64x128xbf16>, vector<16x128xf32> -> vector<16x128xf32>
    %25 = arith.truncf %24 : vector<16x128xf32> to vector<16x128xbf16>
    %c288 = arith.constant 288 : index
    %c0_19 = arith.constant 0 : index
    %26 = vector.load %arg2[%c288, %c0_19] : memref<1680x128xbf16, #tpu.memory_space<vmem>>, vector<128x32xbf16>
    %cst_20 = arith.constant dense<0.000000e+00> : vector<16x32xf32>
    %27 = tpu.matmul %25, %26, %cst_20 {dimension_numbers = #tpu.dot_dimension_numbers<[1], [0], [0], [1], [0, 0, 1, 1], [], []>} : vector<16x128xbf16>, vector<128x32xbf16>, vector<16x32xf32> -> vector<16x32xf32>
    %28 = arith.addf %22, %27 : vector<16x32xf32>
    %c16_21 = arith.constant 16 : index
    %c0_22 = arith.constant 0 : index
    %29 = vector.load %arg3[%c16_21, %c0_22] : memref<320x128xf32, #tpu.memory_space<vmem>>, vector<1x32xf32>
    %30 = vector.broadcast %29 : vector<1x32xf32> to vector<16x32xf32>
    %31 = arith.addf %28, %30 : vector<16x32xf32>
    %c48 = arith.constant 48 : index
    %c0_23 = arith.constant 0 : index
    %32 = vector.load %arg1[%c48, %c0_23] : memref<528x64xbf16, #tpu.memory_space<vmem>>, vector<32x64xbf16>
    %cst_24 = arith.constant dense<0.000000e+00> : vector<32x32xf32>
    %33 = tpu.matmul %32, %0, %cst_24 {dimension_numbers = #tpu.dot_dimension_numbers<[1], [0], [0], [1], [0, 0, 1, 1], [], []>} : vector<32x64xbf16>, vector<64x32xbf16>, vector<32x32xf32> -> vector<32x32xf32>
    %34 = arith.truncf %33 : vector<32x32xf32> to vector<32x32xbf16>
    %c416 = arith.constant 416 : index
    %c0_25 = arith.constant 0 : index
    %35 = vector.load %arg2[%c416, %c0_25] : memref<1680x128xbf16, #tpu.memory_space<vmem>>, vector<32x64xbf16>
    %cst_26 = arith.constant dense<0.000000e+00> : vector<32x64xf32>
    %36 = tpu.matmul %34, %35, %cst_26 {dimension_numbers = #tpu.dot_dimension_numbers<[1], [0], [0], [1], [0, 0, 1, 1], [], []>} : vector<32x32xbf16>, vector<32x64xbf16>, vector<32x64xf32> -> vector<32x64xf32>
    %c80 = arith.constant 80 : index
    %c0_27 = arith.constant 0 : index
    %37 = vector.load %arg1[%c80, %c0_27] : memref<528x64xbf16, #tpu.memory_space<vmem>>, vector<32x64xbf16>
    %cst_28 = arith.constant dense<0.000000e+00> : vector<32x32xf32>
    %38 = tpu.matmul %37, %0, %cst_28 {dimension_numbers = #tpu.dot_dimension_numbers<[1], [0], [0], [1], [0, 0, 1, 1], [], []>} : vector<32x64xbf16>, vector<64x32xbf16>, vector<32x32xf32> -> vector<32x32xf32>
    %39 = arith.truncf %38 : vector<32x32xf32> to vector<32x32xbf16>
    %c448 = arith.constant 448 : index
    %c0_29 = arith.constant 0 : index
    %40 = vector.load %arg2[%c448, %c0_29] : memref<1680x128xbf16, #tpu.memory_space<vmem>>, vector<32x64xbf16>
    %cst_30 = arith.constant dense<0.000000e+00> : vector<32x64xf32>
    %41 = tpu.matmul %39, %40, %cst_30 {dimension_numbers = #tpu.dot_dimension_numbers<[1], [0], [0], [1], [0, 0, 1, 1], [], []>} : vector<32x32xbf16>, vector<32x64xbf16>, vector<32x64xf32> -> vector<32x64xf32>
    %42 = arith.addf %36, %41 : vector<32x64xf32>
    %c112 = arith.constant 112 : index
    %c0_31 = arith.constant 0 : index
    %43 = vector.load %arg1[%c112, %c0_31] : memref<528x64xbf16, #tpu.memory_space<vmem>>, vector<32x64xbf16>
    %cst_32 = arith.constant dense<0.000000e+00> : vector<32x32xf32>
    %44 = tpu.matmul %43, %0, %cst_32 {dimension_numbers = #tpu.dot_dimension_numbers<[1], [0], [0], [1], [0, 0, 1, 1], [], []>} : vector<32x64xbf16>, vector<64x32xbf16>, vector<32x32xf32> -> vector<32x32xf32>
    %45 = arith.truncf %44 : vector<32x32xf32> to vector<32x32xbf16>
    %c480 = arith.constant 480 : index
    %c0_33 = arith.constant 0 : index
    %46 = vector.load %arg2[%c480, %c0_33] : memref<1680x128xbf16, #tpu.memory_space<vmem>>, vector<32x64xbf16>
    %cst_34 = arith.constant dense<0.000000e+00> : vector<32x64xf32>
    %47 = tpu.matmul %45, %46, %cst_34 {dimension_numbers = #tpu.dot_dimension_numbers<[1], [0], [0], [1], [0, 0, 1, 1], [], []>} : vector<32x32xbf16>, vector<32x64xbf16>, vector<32x64xf32> -> vector<32x64xf32>
    %48 = arith.addf %42, %47 : vector<32x64xf32>
    %c32_35 = arith.constant 32 : index
    %c0_36 = arith.constant 0 : index
    %49 = vector.load %arg3[%c32_35, %c0_36] : memref<320x128xf32, #tpu.memory_space<vmem>>, vector<1x64xf32>
    %50 = vector.broadcast %49 : vector<1x64xf32> to vector<32x64xf32>
    %51 = arith.addf %48, %50 : vector<32x64xf32>
    %cst_37 = arith.constant 0.000000e+00 : f32
    %52 = vector.broadcast %cst_37 : f32 to vector<32x64xf32>
    %53 = arith.cmpf oge, %51, %52 : vector<32x64xf32>
    %cst_38 = arith.constant 1.000000e-01 : f32
    %54 = vector.broadcast %cst_38 : f32 to vector<32x64xf32>
    %55 = arith.mulf %54, %51 : vector<32x64xf32>
    %56 = arith.select %53, %51, %55 : vector<32x64xi1>, vector<32x64xf32>
    %57 = arith.truncf %56 : vector<32x64xf32> to vector<32x64xbf16>
    %c144 = arith.constant 144 : index
    %c0_39 = arith.constant 0 : index
    %58 = vector.load %arg1[%c144, %c0_39] : memref<528x64xbf16, #tpu.memory_space<vmem>>, vector<32x32xbf16>
    %cst_40 = arith.constant dense<0.000000e+00> : vector<32x64xf32>
    %59 = tpu.matmul %58, %57, %cst_40 {dimension_numbers = #tpu.dot_dimension_numbers<[1], [0], [0], [1], [0, 0, 1, 1], [], []>} : vector<32x32xbf16>, vector<32x64xbf16>, vector<32x64xf32> -> vector<32x64xf32>
    %60 = arith.truncf %59 : vector<32x64xf32> to vector<32x64xbf16>
    %c512 = arith.constant 512 : index
    %c0_41 = arith.constant 0 : index
    %61 = vector.load %arg2[%c512, %c0_41] : memref<1680x128xbf16, #tpu.memory_space<vmem>>, vector<64x64xbf16>
    %cst_42 = arith.constant dense<0.000000e+00> : vector<32x64xf32>
    %62 = tpu.matmul %60, %61, %cst_42 {dimension_numbers = #tpu.dot_dimension_numbers<[1], [0], [0], [1], [0, 0, 1, 1], [], []>} : vector<32x64xbf16>, vector<64x64xbf16>, vector<32x64xf32> -> vector<32x64xf32>
    %c576 = arith.constant 576 : index
    %c0_43 = arith.constant 0 : index
    %63 = vector.load %arg2[%c576, %c0_43] : memref<1680x128xbf16, #tpu.memory_space<vmem>>, vector<64x64xbf16>
    %cst_44 = arith.constant dense<0.000000e+00> : vector<32x64xf32>
    %64 = tpu.matmul %57, %63, %cst_44 {dimension_numbers = #tpu.dot_dimension_numbers<[1], [0], [0], [1], [0, 0, 1, 1], [], []>} : vector<32x64xbf16>, vector<64x64xbf16>, vector<32x64xf32> -> vector<32x64xf32>
    %65 = arith.addf %62, %64 : vector<32x64xf32>
    %c176 = arith.constant 176 : index
    %c0_45 = arith.constant 0 : index
    %66 = vector.load %arg1[%c176, %c0_45] : memref<528x64xbf16, #tpu.memory_space<vmem>>, vector<32x32xbf16>
    %cst_46 = arith.constant dense<0.000000e+00> : vector<32x64xf32>
    %67 = tpu.matmul %66, %57, %cst_46 {dimension_numbers = #tpu.dot_dimension_numbers<[1], [0], [0], [1], [0, 0, 1, 1], [], []>} : vector<32x32xbf16>, vector<32x64xbf16>, vector<32x64xf32> -> vector<32x64xf32>
    %68 = arith.truncf %67 : vector<32x64xf32> to vector<32x64xbf16>
    %c640 = arith.constant 640 : index
    %c0_47 = arith.constant 0 : index
    %69 = vector.load %arg2[%c640, %c0_47] : memref<1680x128xbf16, #tpu.memory_space<vmem>>, vector<64x64xbf16>
    %cst_48 = arith.constant dense<0.000000e+00> : vector<32x64xf32>
    %70 = tpu.matmul %68, %69, %cst_48 {dimension_numbers = #tpu.dot_dimension_numbers<[1], [0], [0], [1], [0, 0, 1, 1], [], []>} : vector<32x64xbf16>, vector<64x64xbf16>, vector<32x64xf32> -> vector<32x64xf32>
    %71 = arith.addf %65, %70 : vector<32x64xf32>
    %c48_49 = arith.constant 48 : index
    %c0_50 = arith.constant 0 : index
    %72 = vector.load %arg3[%c48_49, %c0_50] : memref<320x128xf32, #tpu.memory_space<vmem>>, vector<1x64xf32>
    %73 = vector.broadcast %72 : vector<1x64xf32> to vector<32x64xf32>
    %74 = arith.addf %71, %73 : vector<32x64xf32>
    %cst_51 = arith.constant 0.000000e+00 : f32
    %75 = vector.broadcast %cst_51 : f32 to vector<32x64xf32>
    %76 = arith.cmpf oge, %74, %75 : vector<32x64xf32>
    %cst_52 = arith.constant 1.000000e-01 : f32
    %77 = vector.broadcast %cst_52 : f32 to vector<32x64xf32>
    %78 = arith.mulf %77, %74 : vector<32x64xf32>
    %79 = arith.select %76, %74, %78 : vector<32x64xi1>, vector<32x64xf32>
    %80 = arith.truncf %79 : vector<32x64xf32> to vector<32x64xbf16>
    %c208 = arith.constant 208 : index
    %c0_53 = arith.constant 0 : index
    %81 = vector.load %arg1[%c208, %c0_53] : memref<528x64xbf16, #tpu.memory_space<vmem>>, vector<16x32xbf16>
    %cst_54 = arith.constant dense<0.000000e+00> : vector<16x64xf32>
    %82 = tpu.matmul %81, %80, %cst_54 {dimension_numbers = #tpu.dot_dimension_numbers<[1], [0], [0], [1], [0, 0, 1, 1], [], []>} : vector<16x32xbf16>, vector<32x64xbf16>, vector<16x64xf32> -> vector<16x64xf32>
    %83 = arith.truncf %82 : vector<16x64xf32> to vector<16x64xbf16>
    %c704 = arith.constant 704 : index
    %c0_55 = arith.constant 0 : index
    %84 = vector.load %arg2[%c704, %c0_55] : memref<1680x128xbf16, #tpu.memory_space<vmem>>, vector<64x32xbf16>
    %cst_56 = arith.constant dense<0.000000e+00> : vector<16x32xf32>
    %85 = tpu.matmul %83, %84, %cst_56 {dimension_numbers = #tpu.dot_dimension_numbers<[1], [0], [0], [1], [0, 0, 1, 1], [], []>} : vector<16x64xbf16>, vector<64x32xbf16>, vector<16x32xf32> -> vector<16x32xf32>
    %c224 = arith.constant 224 : index
    %c0_57 = arith.constant 0 : index
    %86 = vector.load %arg1[%c224, %c0_57] : memref<528x64xbf16, #tpu.memory_space<vmem>>, vector<16x32xbf16>
    %cst_58 = arith.constant dense<0.000000e+00> : vector<16x64xf32>
    %87 = tpu.matmul %86, %80, %cst_58 {dimension_numbers = #tpu.dot_dimension_numbers<[1], [0], [0], [1], [0, 0, 1, 1], [], []>} : vector<16x32xbf16>, vector<32x64xbf16>, vector<16x64xf32> -> vector<16x64xf32>
    %88 = arith.truncf %87 : vector<16x64xf32> to vector<16x64xbf16>
    %c768 = arith.constant 768 : index
    %c0_59 = arith.constant 0 : index
    %89 = vector.load %arg2[%c768, %c0_59] : memref<1680x128xbf16, #tpu.memory_space<vmem>>, vector<64x32xbf16>
    %cst_60 = arith.constant dense<0.000000e+00> : vector<16x32xf32>
    %90 = tpu.matmul %88, %89, %cst_60 {dimension_numbers = #tpu.dot_dimension_numbers<[1], [0], [0], [1], [0, 0, 1, 1], [], []>} : vector<16x64xbf16>, vector<64x32xbf16>, vector<16x32xf32> -> vector<16x32xf32>
    %91 = arith.addf %85, %90 : vector<16x32xf32>
    %c240 = arith.constant 240 : index
    %c0_61 = arith.constant 0 : index
    %92 = vector.load %arg1[%c240, %c0_61] : memref<528x64xbf16, #tpu.memory_space<vmem>>, vector<16x32xbf16>
    %cst_62 = arith.constant dense<0.000000e+00> : vector<16x64xf32>
    %93 = tpu.matmul %92, %80, %cst_62 {dimension_numbers = #tpu.dot_dimension_numbers<[1], [0], [0], [1], [0, 0, 1, 1], [], []>} : vector<16x32xbf16>, vector<32x64xbf16>, vector<16x64xf32> -> vector<16x64xf32>
    %94 = arith.truncf %93 : vector<16x64xf32> to vector<16x64xbf16>
    %c832 = arith.constant 832 : index
    %c0_63 = arith.constant 0 : index
    %95 = vector.load %arg2[%c832, %c0_63] : memref<1680x128xbf16, #tpu.memory_space<vmem>>, vector<64x32xbf16>
    %cst_64 = arith.constant dense<0.000000e+00> : vector<16x32xf32>
    %96 = tpu.matmul %94, %95, %cst_64 {dimension_numbers = #tpu.dot_dimension_numbers<[1], [0], [0], [1], [0, 0, 1, 1], [], []>} : vector<16x64xbf16>, vector<64x32xbf16>, vector<16x32xf32> -> vector<16x32xf32>
    %97 = arith.addf %91, %96 : vector<16x32xf32>
    %c64 = arith.constant 64 : index
    %c0_65 = arith.constant 0 : index
    %98 = vector.load %arg3[%c64, %c0_65] : memref<320x128xf32, #tpu.memory_space<vmem>>, vector<1x32xf32>
    %99 = vector.broadcast %98 : vector<1x32xf32> to vector<16x32xf32>
    %100 = arith.addf %97, %99 : vector<16x32xf32>
    %cst_66 = arith.constant 0.000000e+00 : f32
    %101 = vector.broadcast %cst_66 : f32 to vector<16x32xf32>
    %102 = arith.cmpf oge, %100, %101 : vector<16x32xf32>
    %cst_67 = arith.constant 1.000000e-01 : f32
    %103 = vector.broadcast %cst_67 : f32 to vector<16x32xf32>
    %104 = arith.mulf %103, %100 : vector<16x32xf32>
    %105 = arith.select %102, %100, %104 : vector<16x32xi1>, vector<16x32xf32>
    %106 = arith.truncf %105 : vector<16x32xf32> to vector<16x32xbf16>
    %c256 = arith.constant 256 : index
    %c0_68 = arith.constant 0 : index
    %107 = vector.load %arg1[%c256, %c0_68] : memref<528x64xbf16, #tpu.memory_space<vmem>>, vector<16x16xbf16>
    %cst_69 = arith.constant dense<0.000000e+00> : vector<16x32xf32>
    %108 = tpu.matmul %107, %106, %cst_69 {dimension_numbers = #tpu.dot_dimension_numbers<[1], [0], [0], [1], [0, 0, 1, 1], [], []>} : vector<16x16xbf16>, vector<16x32xbf16>, vector<16x32xf32> -> vector<16x32xf32>
    %109 = arith.truncf %108 : vector<16x32xf32> to vector<16x32xbf16>
    %c896 = arith.constant 896 : index
    %c0_70 = arith.constant 0 : index
    %110 = vector.load %arg2[%c896, %c0_70] : memref<1680x128xbf16, #tpu.memory_space<vmem>>, vector<32x32xbf16>
    %cst_71 = arith.constant dense<0.000000e+00> : vector<16x32xf32>
    %111 = tpu.matmul %109, %110, %cst_71 {dimension_numbers = #tpu.dot_dimension_numbers<[1], [0], [0], [1], [0, 0, 1, 1], [], []>} : vector<16x32xbf16>, vector<32x32xbf16>, vector<16x32xf32> -> vector<16x32xf32>
    %c928 = arith.constant 928 : index
    %c0_72 = arith.constant 0 : index
    %112 = vector.load %arg2[%c928, %c0_72] : memref<1680x128xbf16, #tpu.memory_space<vmem>>, vector<32x32xbf16>
    %cst_73 = arith.constant dense<0.000000e+00> : vector<16x32xf32>
    %113 = tpu.matmul %106, %112, %cst_73 {dimension_numbers = #tpu.dot_dimension_numbers<[1], [0], [0], [1], [0, 0, 1, 1], [], []>} : vector<16x32xbf16>, vector<32x32xbf16>, vector<16x32xf32> -> vector<16x32xf32>
    %114 = arith.addf %111, %113 : vector<16x32xf32>
    %c272 = arith.constant 272 : index
    %c0_74 = arith.constant 0 : index
    %115 = vector.load %arg1[%c272, %c0_74] : memref<528x64xbf16, #tpu.memory_space<vmem>>, vector<16x16xbf16>
    %cst_75 = arith.constant dense<0.000000e+00> : vector<16x32xf32>
    %116 = tpu.matmul %115, %106, %cst_75 {dimension_numbers = #tpu.dot_dimension_numbers<[1], [0], [0], [1], [0, 0, 1, 1], [], []>} : vector<16x16xbf16>, vector<16x32xbf16>, vector<16x32xf32> -> vector<16x32xf32>
    %117 = arith.truncf %116 : vector<16x32xf32> to vector<16x32xbf16>
    %c960 = arith.constant 960 : index
    %c0_76 = arith.constant 0 : index
    %118 = vector.load %arg2[%c960, %c0_76] : memref<1680x128xbf16, #tpu.memory_space<vmem>>, vector<32x32xbf16>
    %cst_77 = arith.constant dense<0.000000e+00> : vector<16x32xf32>
    %119 = tpu.matmul %117, %118, %cst_77 {dimension_numbers = #tpu.dot_dimension_numbers<[1], [0], [0], [1], [0, 0, 1, 1], [], []>} : vector<16x32xbf16>, vector<32x32xbf16>, vector<16x32xf32> -> vector<16x32xf32>
    %120 = arith.addf %114, %119 : vector<16x32xf32>
    %c80_78 = arith.constant 80 : index
    %c0_79 = arith.constant 0 : index
    %121 = vector.load %arg3[%c80_78, %c0_79] : memref<320x128xf32, #tpu.memory_space<vmem>>, vector<1x32xf32>
    %122 = vector.broadcast %121 : vector<1x32xf32> to vector<16x32xf32>
    %123 = arith.addf %120, %122 : vector<16x32xf32>
    %cst_80 = arith.constant 0.000000e+00 : f32
    %124 = vector.broadcast %cst_80 : f32 to vector<16x32xf32>
    %125 = arith.cmpf oge, %123, %124 : vector<16x32xf32>
    %cst_81 = arith.constant 1.000000e-01 : f32
    %126 = vector.broadcast %cst_81 : f32 to vector<16x32xf32>
    %127 = arith.mulf %126, %123 : vector<16x32xf32>
    %128 = arith.select %125, %123, %127 : vector<16x32xi1>, vector<16x32xf32>
    %129 = arith.addf %128, %31 : vector<16x32xf32>
    %130 = arith.truncf %129 : vector<16x32xf32> to vector<16x32xbf16>
    %c992 = arith.constant 992 : index
    %c0_82 = arith.constant 0 : index
    %131 = vector.load %arg2[%c992, %c0_82] : memref<1680x128xbf16, #tpu.memory_space<vmem>>, vector<32x64xbf16>
    %cst_83 = arith.constant dense<0.000000e+00> : vector<16x64xf32>
    %132 = tpu.matmul %130, %131, %cst_83 {dimension_numbers = #tpu.dot_dimension_numbers<[1], [0], [0], [1], [0, 0, 1, 1], [], []>} : vector<16x32xbf16>, vector<32x64xbf16>, vector<16x64xf32> -> vector<16x64xf32>
    %c96 = arith.constant 96 : index
    %c0_84 = arith.constant 0 : index
    %133 = vector.load %arg3[%c96, %c0_84] : memref<320x128xf32, #tpu.memory_space<vmem>>, vector<1x64xf32>
    %134 = vector.broadcast %133 : vector<1x64xf32> to vector<16x64xf32>
    %135 = arith.addf %132, %134 : vector<16x64xf32>
    %cst_85 = arith.constant 0.000000e+00 : f32
    %136 = vector.broadcast %cst_85 : f32 to vector<16x64xf32>
    %137 = arith.cmpf oge, %135, %136 : vector<16x64xf32>
    %cst_86 = arith.constant 1.000000e-01 : f32
    %138 = vector.broadcast %cst_86 : f32 to vector<16x64xf32>
    %139 = arith.mulf %138, %135 : vector<16x64xf32>
    %140 = arith.select %137, %135, %139 : vector<16x64xi1>, vector<16x64xf32>
    %141 = arith.truncf %140 : vector<16x64xf32> to vector<16x64xbf16>
    %c288_87 = arith.constant 288 : index
    %c0_88 = arith.constant 0 : index
    %142 = vector.load %arg1[%c288_87, %c0_88] : memref<528x64xbf16, #tpu.memory_space<vmem>>, vector<4x16xbf16>
    %cst_89 = arith.constant dense<0.000000e+00> : vector<4x64xf32>
    %143 = tpu.matmul %142, %141, %cst_89 {dimension_numbers = #tpu.dot_dimension_numbers<[1], [0], [0], [1], [0, 0, 1, 1], [], []>} : vector<4x16xbf16>, vector<16x64xbf16>, vector<4x64xf32> -> vector<4x64xf32>
    %144 = arith.truncf %143 : vector<4x64xf32> to vector<4x64xbf16>
    %c1024 = arith.constant 1024 : index
    %c0_90 = arith.constant 0 : index
    %145 = vector.load %arg2[%c1024, %c0_90] : memref<1680x128xbf16, #tpu.memory_space<vmem>>, vector<64x16xbf16>
    %cst_91 = arith.constant dense<0.000000e+00> : vector<4x16xf32>
    %146 = tpu.matmul %144, %145, %cst_91 {dimension_numbers = #tpu.dot_dimension_numbers<[1], [0], [0], [1], [0, 0, 1, 1], [], []>} : vector<4x64xbf16>, vector<64x16xbf16>, vector<4x16xf32> -> vector<4x16xf32>
    %c304 = arith.constant 304 : index
    %c0_92 = arith.constant 0 : index
    %147 = vector.load %arg1[%c304, %c0_92] : memref<528x64xbf16, #tpu.memory_space<vmem>>, vector<4x16xbf16>
    %cst_93 = arith.constant dense<0.000000e+00> : vector<4x64xf32>
    %148 = tpu.matmul %147, %141, %cst_93 {dimension_numbers = #tpu.dot_dimension_numbers<[1], [0], [0], [1], [0, 0, 1, 1], [], []>} : vector<4x16xbf16>, vector<16x64xbf16>, vector<4x64xf32> -> vector<4x64xf32>
    %149 = arith.truncf %148 : vector<4x64xf32> to vector<4x64xbf16>
    %c1088 = arith.constant 1088 : index
    %c0_94 = arith.constant 0 : index
    %150 = vector.load %arg2[%c1088, %c0_94] : memref<1680x128xbf16, #tpu.memory_space<vmem>>, vector<64x16xbf16>
    %cst_95 = arith.constant dense<0.000000e+00> : vector<4x16xf32>
    %151 = tpu.matmul %149, %150, %cst_95 {dimension_numbers = #tpu.dot_dimension_numbers<[1], [0], [0], [1], [0, 0, 1, 1], [], []>} : vector<4x64xbf16>, vector<64x16xbf16>, vector<4x16xf32> -> vector<4x16xf32>
    %152 = arith.addf %146, %151 : vector<4x16xf32>
    %c320 = arith.constant 320 : index
    %c0_96 = arith.constant 0 : index
    %153 = vector.load %arg1[%c320, %c0_96] : memref<528x64xbf16, #tpu.memory_space<vmem>>, vector<4x16xbf16>
    %cst_97 = arith.constant dense<0.000000e+00> : vector<4x64xf32>
    %154 = tpu.matmul %153, %141, %cst_97 {dimension_numbers = #tpu.dot_dimension_numbers<[1], [0], [0], [1], [0, 0, 1, 1], [], []>} : vector<4x16xbf16>, vector<16x64xbf16>, vector<4x64xf32> -> vector<4x64xf32>
    %155 = arith.truncf %154 : vector<4x64xf32> to vector<4x64xbf16>
    %c1152 = arith.constant 1152 : index
    %c0_98 = arith.constant 0 : index
    %156 = vector.load %arg2[%c1152, %c0_98] : memref<1680x128xbf16, #tpu.memory_space<vmem>>, vector<64x16xbf16>
    %cst_99 = arith.constant dense<0.000000e+00> : vector<4x16xf32>
    %157 = tpu.matmul %155, %156, %cst_99 {dimension_numbers = #tpu.dot_dimension_numbers<[1], [0], [0], [1], [0, 0, 1, 1], [], []>} : vector<4x64xbf16>, vector<64x16xbf16>, vector<4x16xf32> -> vector<4x16xf32>
    %158 = arith.addf %152, %157 : vector<4x16xf32>
    %c112_100 = arith.constant 112 : index
    %c0_101 = arith.constant 0 : index
    %159 = vector.load %arg3[%c112_100, %c0_101] : memref<320x128xf32, #tpu.memory_space<vmem>>, vector<1x16xf32>
    %160 = vector.broadcast %159 : vector<1x16xf32> to vector<4x16xf32>
    %161 = arith.addf %158, %160 : vector<4x16xf32>
    %c336 = arith.constant 336 : index
    %c0_102 = arith.constant 0 : index
    %162 = vector.load %arg1[%c336, %c0_102] : memref<528x64xbf16, #tpu.memory_space<vmem>>, vector<8x16xbf16>
    %cst_103 = arith.constant dense<0.000000e+00> : vector<8x32xf32>
    %163 = tpu.matmul %162, %130, %cst_103 {dimension_numbers = #tpu.dot_dimension_numbers<[1], [0], [0], [1], [0, 0, 1, 1], [], []>} : vector<8x16xbf16>, vector<16x32xbf16>, vector<8x32xf32> -> vector<8x32xf32>
    %164 = arith.truncf %163 : vector<8x32xf32> to vector<8x32xbf16>
    %c1216 = arith.constant 1216 : index
    %c0_104 = arith.constant 0 : index
    %165 = vector.load %arg2[%c1216, %c0_104] : memref<1680x128xbf16, #tpu.memory_space<vmem>>, vector<32x32xbf16>
    %cst_105 = arith.constant dense<0.000000e+00> : vector<8x32xf32>
    %166 = tpu.matmul %164, %165, %cst_105 {dimension_numbers = #tpu.dot_dimension_numbers<[1], [0], [0], [1], [0, 0, 1, 1], [], []>} : vector<8x32xbf16>, vector<32x32xbf16>, vector<8x32xf32> -> vector<8x32xf32>
    %c352 = arith.constant 352 : index
    %c0_106 = arith.constant 0 : index
    %167 = vector.load %arg1[%c352, %c0_106] : memref<528x64xbf16, #tpu.memory_space<vmem>>, vector<8x16xbf16>
    %cst_107 = arith.constant dense<0.000000e+00> : vector<8x32xf32>
    %168 = tpu.matmul %167, %130, %cst_107 {dimension_numbers = #tpu.dot_dimension_numbers<[1], [0], [0], [1], [0, 0, 1, 1], [], []>} : vector<8x16xbf16>, vector<16x32xbf16>, vector<8x32xf32> -> vector<8x32xf32>
    %169 = arith.truncf %168 : vector<8x32xf32> to vector<8x32xbf16>
    %c1248 = arith.constant 1248 : index
    %c0_108 = arith.constant 0 : index
    %170 = vector.load %arg2[%c1248, %c0_108] : memref<1680x128xbf16, #tpu.memory_space<vmem>>, vector<32x32xbf16>
    %cst_109 = arith.constant dense<0.000000e+00> : vector<8x32xf32>
    %171 = tpu.matmul %169, %170, %cst_109 {dimension_numbers = #tpu.dot_dimension_numbers<[1], [0], [0], [1], [0, 0, 1, 1], [], []>} : vector<8x32xbf16>, vector<32x32xbf16>, vector<8x32xf32> -> vector<8x32xf32>
    %172 = arith.addf %166, %171 : vector<8x32xf32>
    %c368 = arith.constant 368 : index
    %c0_110 = arith.constant 0 : index
    %173 = vector.load %arg1[%c368, %c0_110] : memref<528x64xbf16, #tpu.memory_space<vmem>>, vector<8x16xbf16>
    %cst_111 = arith.constant dense<0.000000e+00> : vector<8x32xf32>
    %174 = tpu.matmul %173, %130, %cst_111 {dimension_numbers = #tpu.dot_dimension_numbers<[1], [0], [0], [1], [0, 0, 1, 1], [], []>} : vector<8x16xbf16>, vector<16x32xbf16>, vector<8x32xf32> -> vector<8x32xf32>
    %175 = arith.truncf %174 : vector<8x32xf32> to vector<8x32xbf16>
    %c1280 = arith.constant 1280 : index
    %c0_112 = arith.constant 0 : index
    %176 = vector.load %arg2[%c1280, %c0_112] : memref<1680x128xbf16, #tpu.memory_space<vmem>>, vector<32x32xbf16>
    %cst_113 = arith.constant dense<0.000000e+00> : vector<8x32xf32>
    %177 = tpu.matmul %175, %176, %cst_113 {dimension_numbers = #tpu.dot_dimension_numbers<[1], [0], [0], [1], [0, 0, 1, 1], [], []>} : vector<8x32xbf16>, vector<32x32xbf16>, vector<8x32xf32> -> vector<8x32xf32>
    %178 = arith.addf %172, %177 : vector<8x32xf32>
    %c128 = arith.constant 128 : index
    %c0_114 = arith.constant 0 : index
    %179 = vector.load %arg3[%c128, %c0_114] : memref<320x128xf32, #tpu.memory_space<vmem>>, vector<1x32xf32>
    %180 = vector.broadcast %179 : vector<1x32xf32> to vector<8x32xf32>
    %181 = arith.addf %178, %180 : vector<8x32xf32>
    %cst_115 = arith.constant 0.000000e+00 : f32
    %182 = vector.broadcast %cst_115 : f32 to vector<8x32xf32>
    %183 = arith.cmpf oge, %181, %182 : vector<8x32xf32>
    %cst_116 = arith.constant 1.000000e-01 : f32
    %184 = vector.broadcast %cst_116 : f32 to vector<8x32xf32>
    %185 = arith.mulf %184, %181 : vector<8x32xf32>
    %186 = arith.select %183, %181, %185 : vector<8x32xi1>, vector<8x32xf32>
    %187 = arith.truncf %186 : vector<8x32xf32> to vector<8x32xbf16>
    %c384 = arith.constant 384 : index
    %c0_117 = arith.constant 0 : index
    %188 = vector.load %arg1[%c384, %c0_117] : memref<528x64xbf16, #tpu.memory_space<vmem>>, vector<8x8xbf16>
    %cst_118 = arith.constant dense<0.000000e+00> : vector<8x32xf32>
    %189 = tpu.matmul %188, %187, %cst_118 {dimension_numbers = #tpu.dot_dimension_numbers<[1], [0], [0], [1], [0, 0, 1, 1], [], []>} : vector<8x8xbf16>, vector<8x32xbf16>, vector<8x32xf32> -> vector<8x32xf32>
    %190 = arith.truncf %189 : vector<8x32xf32> to vector<8x32xbf16>
    %c1312 = arith.constant 1312 : index
    %c0_119 = arith.constant 0 : index
    %191 = vector.load %arg2[%c1312, %c0_119] : memref<1680x128xbf16, #tpu.memory_space<vmem>>, vector<32x32xbf16>
    %cst_120 = arith.constant dense<0.000000e+00> : vector<8x32xf32>
    %192 = tpu.matmul %190, %191, %cst_120 {dimension_numbers = #tpu.dot_dimension_numbers<[1], [0], [0], [1], [0, 0, 1, 1], [], []>} : vector<8x32xbf16>, vector<32x32xbf16>, vector<8x32xf32> -> vector<8x32xf32>
    %c1344 = arith.constant 1344 : index
    %c0_121 = arith.constant 0 : index
    %193 = vector.load %arg2[%c1344, %c0_121] : memref<1680x128xbf16, #tpu.memory_space<vmem>>, vector<32x32xbf16>
    %cst_122 = arith.constant dense<0.000000e+00> : vector<8x32xf32>
    %194 = tpu.matmul %187, %193, %cst_122 {dimension_numbers = #tpu.dot_dimension_numbers<[1], [0], [0], [1], [0, 0, 1, 1], [], []>} : vector<8x32xbf16>, vector<32x32xbf16>, vector<8x32xf32> -> vector<8x32xf32>
    %195 = arith.addf %192, %194 : vector<8x32xf32>
    %c400 = arith.constant 400 : index
    %c0_123 = arith.constant 0 : index
    %196 = vector.load %arg1[%c400, %c0_123] : memref<528x64xbf16, #tpu.memory_space<vmem>>, vector<8x8xbf16>
    %cst_124 = arith.constant dense<0.000000e+00> : vector<8x32xf32>
    %197 = tpu.matmul %196, %187, %cst_124 {dimension_numbers = #tpu.dot_dimension_numbers<[1], [0], [0], [1], [0, 0, 1, 1], [], []>} : vector<8x8xbf16>, vector<8x32xbf16>, vector<8x32xf32> -> vector<8x32xf32>
    %198 = arith.truncf %197 : vector<8x32xf32> to vector<8x32xbf16>
    %c1376 = arith.constant 1376 : index
    %c0_125 = arith.constant 0 : index
    %199 = vector.load %arg2[%c1376, %c0_125] : memref<1680x128xbf16, #tpu.memory_space<vmem>>, vector<32x32xbf16>
    %cst_126 = arith.constant dense<0.000000e+00> : vector<8x32xf32>
    %200 = tpu.matmul %198, %199, %cst_126 {dimension_numbers = #tpu.dot_dimension_numbers<[1], [0], [0], [1], [0, 0, 1, 1], [], []>} : vector<8x32xbf16>, vector<32x32xbf16>, vector<8x32xf32> -> vector<8x32xf32>
    %201 = arith.addf %195, %200 : vector<8x32xf32>
    %c144_127 = arith.constant 144 : index
    %c0_128 = arith.constant 0 : index
    %202 = vector.load %arg3[%c144_127, %c0_128] : memref<320x128xf32, #tpu.memory_space<vmem>>, vector<1x32xf32>
    %203 = vector.broadcast %202 : vector<1x32xf32> to vector<8x32xf32>
    %204 = arith.addf %201, %203 : vector<8x32xf32>
    %cst_129 = arith.constant 0.000000e+00 : f32
    %205 = vector.broadcast %cst_129 : f32 to vector<8x32xf32>
    %206 = arith.cmpf oge, %204, %205 : vector<8x32xf32>
    %cst_130 = arith.constant 1.000000e-01 : f32
    %207 = vector.broadcast %cst_130 : f32 to vector<8x32xf32>
    %208 = arith.mulf %207, %204 : vector<8x32xf32>
    %209 = arith.select %206, %204, %208 : vector<8x32xi1>, vector<8x32xf32>
    %210 = arith.truncf %209 : vector<8x32xf32> to vector<8x32xbf16>
    %c416_131 = arith.constant 416 : index
    %c0_132 = arith.constant 0 : index
    %211 = vector.load %arg1[%c416_131, %c0_132] : memref<528x64xbf16, #tpu.memory_space<vmem>>, vector<4x8xbf16>
    %cst_133 = arith.constant dense<0.000000e+00> : vector<4x32xf32>
    %212 = tpu.matmul %211, %210, %cst_133 {dimension_numbers = #tpu.dot_dimension_numbers<[1], [0], [0], [1], [0, 0, 1, 1], [], []>} : vector<4x8xbf16>, vector<8x32xbf16>, vector<4x32xf32> -> vector<4x32xf32>
    %213 = arith.truncf %212 : vector<4x32xf32> to vector<4x32xbf16>
    %c1408 = arith.constant 1408 : index
    %c0_134 = arith.constant 0 : index
    %214 = vector.load %arg2[%c1408, %c0_134] : memref<1680x128xbf16, #tpu.memory_space<vmem>>, vector<32x16xbf16>
    %cst_135 = arith.constant dense<0.000000e+00> : vector<4x16xf32>
    %215 = tpu.matmul %213, %214, %cst_135 {dimension_numbers = #tpu.dot_dimension_numbers<[1], [0], [0], [1], [0, 0, 1, 1], [], []>} : vector<4x32xbf16>, vector<32x16xbf16>, vector<4x16xf32> -> vector<4x16xf32>
    %c432 = arith.constant 432 : index
    %c0_136 = arith.constant 0 : index
    %216 = vector.load %arg1[%c432, %c0_136] : memref<528x64xbf16, #tpu.memory_space<vmem>>, vector<4x8xbf16>
    %cst_137 = arith.constant dense<0.000000e+00> : vector<4x32xf32>
    %217 = tpu.matmul %216, %210, %cst_137 {dimension_numbers = #tpu.dot_dimension_numbers<[1], [0], [0], [1], [0, 0, 1, 1], [], []>} : vector<4x8xbf16>, vector<8x32xbf16>, vector<4x32xf32> -> vector<4x32xf32>
    %218 = arith.truncf %217 : vector<4x32xf32> to vector<4x32xbf16>
    %c1440 = arith.constant 1440 : index
    %c0_138 = arith.constant 0 : index
    %219 = vector.load %arg2[%c1440, %c0_138] : memref<1680x128xbf16, #tpu.memory_space<vmem>>, vector<32x16xbf16>
    %cst_139 = arith.constant dense<0.000000e+00> : vector<4x16xf32>
    %220 = tpu.matmul %218, %219, %cst_139 {dimension_numbers = #tpu.dot_dimension_numbers<[1], [0], [0], [1], [0, 0, 1, 1], [], []>} : vector<4x32xbf16>, vector<32x16xbf16>, vector<4x16xf32> -> vector<4x16xf32>
    %221 = arith.addf %215, %220 : vector<4x16xf32>
    %c448_140 = arith.constant 448 : index
    %c0_141 = arith.constant 0 : index
    %222 = vector.load %arg1[%c448_140, %c0_141] : memref<528x64xbf16, #tpu.memory_space<vmem>>, vector<4x8xbf16>
    %cst_142 = arith.constant dense<0.000000e+00> : vector<4x32xf32>
    %223 = tpu.matmul %222, %210, %cst_142 {dimension_numbers = #tpu.dot_dimension_numbers<[1], [0], [0], [1], [0, 0, 1, 1], [], []>} : vector<4x8xbf16>, vector<8x32xbf16>, vector<4x32xf32> -> vector<4x32xf32>
    %224 = arith.truncf %223 : vector<4x32xf32> to vector<4x32xbf16>
    %c1472 = arith.constant 1472 : index
    %c0_143 = arith.constant 0 : index
    %225 = vector.load %arg2[%c1472, %c0_143] : memref<1680x128xbf16, #tpu.memory_space<vmem>>, vector<32x16xbf16>
    %cst_144 = arith.constant dense<0.000000e+00> : vector<4x16xf32>
    %226 = tpu.matmul %224, %225, %cst_144 {dimension_numbers = #tpu.dot_dimension_numbers<[1], [0], [0], [1], [0, 0, 1, 1], [], []>} : vector<4x32xbf16>, vector<32x16xbf16>, vector<4x16xf32> -> vector<4x16xf32>
    %227 = arith.addf %221, %226 : vector<4x16xf32>
    %c160_145 = arith.constant 160 : index
    %c0_146 = arith.constant 0 : index
    %228 = vector.load %arg3[%c160_145, %c0_146] : memref<320x128xf32, #tpu.memory_space<vmem>>, vector<1x16xf32>
    %229 = vector.broadcast %228 : vector<1x16xf32> to vector<4x16xf32>
    %230 = arith.addf %227, %229 : vector<4x16xf32>
    %cst_147 = arith.constant 0.000000e+00 : f32
    %231 = vector.broadcast %cst_147 : f32 to vector<4x16xf32>
    %232 = arith.cmpf oge, %230, %231 : vector<4x16xf32>
    %cst_148 = arith.constant 1.000000e-01 : f32
    %233 = vector.broadcast %cst_148 : f32 to vector<4x16xf32>
    %234 = arith.mulf %233, %230 : vector<4x16xf32>
    %235 = arith.select %232, %230, %234 : vector<4x16xi1>, vector<4x16xf32>
    %236 = arith.truncf %235 : vector<4x16xf32> to vector<4x16xbf16>
    %c1504 = arith.constant 1504 : index
    %c0_149 = arith.constant 0 : index
    %237 = vector.load %arg2[%c1504, %c0_149] : memref<1680x128xbf16, #tpu.memory_space<vmem>>, vector<16x16xbf16>
    %cst_150 = arith.constant dense<0.000000e+00> : vector<4x16xf32>
    %238 = tpu.matmul %236, %237, %cst_150 {dimension_numbers = #tpu.dot_dimension_numbers<[1], [0], [0], [1], [0, 0, 1, 1], [], []>} : vector<4x16xbf16>, vector<16x16xbf16>, vector<4x16xf32> -> vector<4x16xf32>
    %c176_151 = arith.constant 176 : index
    %c0_152 = arith.constant 0 : index
    %239 = vector.load %arg3[%c176_151, %c0_152] : memref<320x128xf32, #tpu.memory_space<vmem>>, vector<1x16xf32>
    %240 = vector.broadcast %239 : vector<1x16xf32> to vector<4x16xf32>
    %241 = arith.addf %238, %240 : vector<4x16xf32>
    %cst_153 = arith.constant 0.000000e+00 : f32
    %242 = vector.broadcast %cst_153 : f32 to vector<4x16xf32>
    %243 = arith.cmpf oge, %241, %242 : vector<4x16xf32>
    %cst_154 = arith.constant 1.000000e-01 : f32
    %244 = vector.broadcast %cst_154 : f32 to vector<4x16xf32>
    %245 = arith.mulf %244, %241 : vector<4x16xf32>
    %246 = arith.select %243, %241, %245 : vector<4x16xi1>, vector<4x16xf32>
    %247 = arith.addf %246, %161 : vector<4x16xf32>
    %248 = arith.truncf %247 : vector<4x16xf32> to vector<4x16xbf16>
    %c1520 = arith.constant 1520 : index
    %c0_155 = arith.constant 0 : index
    %249 = vector.load %arg2[%c1520, %c0_155] : memref<1680x128xbf16, #tpu.memory_space<vmem>>, vector<16x16xbf16>
    %cst_156 = arith.constant dense<0.000000e+00> : vector<4x16xf32>
    %250 = tpu.matmul %248, %249, %cst_156 {dimension_numbers = #tpu.dot_dimension_numbers<[1], [0], [0], [1], [0, 0, 1, 1], [], []>} : vector<4x16xbf16>, vector<16x16xbf16>, vector<4x16xf32> -> vector<4x16xf32>
    %c192 = arith.constant 192 : index
    %c0_157 = arith.constant 0 : index
    %251 = vector.load %arg3[%c192, %c0_157] : memref<320x128xf32, #tpu.memory_space<vmem>>, vector<1x16xf32>
    %252 = vector.broadcast %251 : vector<1x16xf32> to vector<4x16xf32>
    %253 = arith.addf %250, %252 : vector<4x16xf32>
    %cst_158 = arith.constant 0.000000e+00 : f32
    %254 = vector.broadcast %cst_158 : f32 to vector<4x16xf32>
    %255 = arith.cmpf oge, %253, %254 : vector<4x16xf32>
    %cst_159 = arith.constant 1.000000e-01 : f32
    %256 = vector.broadcast %cst_159 : f32 to vector<4x16xf32>
    %257 = arith.mulf %256, %253 : vector<4x16xf32>
    %258 = arith.select %255, %253, %257 : vector<4x16xi1>, vector<4x16xf32>
    %259 = arith.truncf %258 : vector<4x16xf32> to vector<4x16xbf16>
    %c464 = arith.constant 464 : index
    %c0_160 = arith.constant 0 : index
    %260 = vector.load %arg1[%c464, %c0_160] : memref<528x64xbf16, #tpu.memory_space<vmem>>, vector<2x4xbf16>
    %cst_161 = arith.constant dense<0.000000e+00> : vector<2x16xf32>
    %261 = tpu.matmul %260, %259, %cst_161 {dimension_numbers = #tpu.dot_dimension_numbers<[1], [0], [0], [1], [0, 0, 1, 1], [], []>} : vector<2x4xbf16>, vector<4x16xbf16>, vector<2x16xf32> -> vector<2x16xf32>
    %262 = arith.truncf %261 : vector<2x16xf32> to vector<2x16xbf16>
    %c1536 = arith.constant 1536 : index
    %c0_162 = arith.constant 0 : index
    %263 = vector.load %arg2[%c1536, %c0_162] : memref<1680x128xbf16, #tpu.memory_space<vmem>>, vector<16x8xbf16>
    %cst_163 = arith.constant dense<0.000000e+00> : vector<2x8xf32>
    %264 = tpu.matmul %262, %263, %cst_163 {dimension_numbers = #tpu.dot_dimension_numbers<[1], [0], [0], [1], [0, 0, 1, 1], [], []>} : vector<2x16xbf16>, vector<16x8xbf16>, vector<2x8xf32> -> vector<2x8xf32>
    %c480_164 = arith.constant 480 : index
    %c0_165 = arith.constant 0 : index
    %265 = vector.load %arg1[%c480_164, %c0_165] : memref<528x64xbf16, #tpu.memory_space<vmem>>, vector<2x4xbf16>
    %cst_166 = arith.constant dense<0.000000e+00> : vector<2x16xf32>
    %266 = tpu.matmul %265, %259, %cst_166 {dimension_numbers = #tpu.dot_dimension_numbers<[1], [0], [0], [1], [0, 0, 1, 1], [], []>} : vector<2x4xbf16>, vector<4x16xbf16>, vector<2x16xf32> -> vector<2x16xf32>
    %267 = arith.truncf %266 : vector<2x16xf32> to vector<2x16xbf16>
    %c1552 = arith.constant 1552 : index
    %c0_167 = arith.constant 0 : index
    %268 = vector.load %arg2[%c1552, %c0_167] : memref<1680x128xbf16, #tpu.memory_space<vmem>>, vector<16x8xbf16>
    %cst_168 = arith.constant dense<0.000000e+00> : vector<2x8xf32>
    %269 = tpu.matmul %267, %268, %cst_168 {dimension_numbers = #tpu.dot_dimension_numbers<[1], [0], [0], [1], [0, 0, 1, 1], [], []>} : vector<2x16xbf16>, vector<16x8xbf16>, vector<2x8xf32> -> vector<2x8xf32>
    %270 = arith.addf %264, %269 : vector<2x8xf32>
    %c208_169 = arith.constant 208 : index
    %c0_170 = arith.constant 0 : index
    %271 = vector.load %arg3[%c208_169, %c0_170] : memref<320x128xf32, #tpu.memory_space<vmem>>, vector<1x8xf32>
    %272 = vector.broadcast %271 : vector<1x8xf32> to vector<2x8xf32>
    %273 = arith.addf %270, %272 : vector<2x8xf32>
    %c496 = arith.constant 496 : index
    %c0_171 = arith.constant 0 : index
    %274 = vector.load %arg1[%c496, %c0_171] : memref<528x64xbf16, #tpu.memory_space<vmem>>, vector<2x4xbf16>
    %cst_172 = arith.constant dense<0.000000e+00> : vector<2x16xf32>
    %275 = tpu.matmul %274, %248, %cst_172 {dimension_numbers = #tpu.dot_dimension_numbers<[1], [0], [0], [1], [0, 0, 1, 1], [], []>} : vector<2x4xbf16>, vector<4x16xbf16>, vector<2x16xf32> -> vector<2x16xf32>
    %276 = arith.truncf %275 : vector<2x16xf32> to vector<2x16xbf16>
    %c1568 = arith.constant 1568 : index
    %c0_173 = arith.constant 0 : index
    %277 = vector.load %arg2[%c1568, %c0_173] : memref<1680x128xbf16, #tpu.memory_space<vmem>>, vector<16x8xbf16>
    %cst_174 = arith.constant dense<0.000000e+00> : vector<2x8xf32>
    %278 = tpu.matmul %276, %277, %cst_174 {dimension_numbers = #tpu.dot_dimension_numbers<[1], [0], [0], [1], [0, 0, 1, 1], [], []>} : vector<2x16xbf16>, vector<16x8xbf16>, vector<2x8xf32> -> vector<2x8xf32>
    %c512_175 = arith.constant 512 : index
    %c0_176 = arith.constant 0 : index
    %279 = vector.load %arg1[%c512_175, %c0_176] : memref<528x64xbf16, #tpu.memory_space<vmem>>, vector<2x4xbf16>
    %cst_177 = arith.constant dense<0.000000e+00> : vector<2x16xf32>
    %280 = tpu.matmul %279, %248, %cst_177 {dimension_numbers = #tpu.dot_dimension_numbers<[1], [0], [0], [1], [0, 0, 1, 1], [], []>} : vector<2x4xbf16>, vector<4x16xbf16>, vector<2x16xf32> -> vector<2x16xf32>
    %281 = arith.truncf %280 : vector<2x16xf32> to vector<2x16xbf16>
    %c1584 = arith.constant 1584 : index
    %c0_178 = arith.constant 0 : index
    %282 = vector.load %arg2[%c1584, %c0_178] : memref<1680x128xbf16, #tpu.memory_space<vmem>>, vector<16x8xbf16>
    %cst_179 = arith.constant dense<0.000000e+00> : vector<2x8xf32>
    %283 = tpu.matmul %281, %282, %cst_179 {dimension_numbers = #tpu.dot_dimension_numbers<[1], [0], [0], [1], [0, 0, 1, 1], [], []>} : vector<2x16xbf16>, vector<16x8xbf16>, vector<2x8xf32> -> vector<2x8xf32>
    %284 = arith.addf %278, %283 : vector<2x8xf32>
    %c224_180 = arith.constant 224 : index
    %c0_181 = arith.constant 0 : index
    %285 = vector.load %arg3[%c224_180, %c0_181] : memref<320x128xf32, #tpu.memory_space<vmem>>, vector<1x8xf32>
    %286 = vector.broadcast %285 : vector<1x8xf32> to vector<2x8xf32>
    %287 = arith.addf %284, %286 : vector<2x8xf32>
    %cst_182 = arith.constant 0.000000e+00 : f32
    %288 = vector.broadcast %cst_182 : f32 to vector<2x8xf32>
    %289 = arith.cmpf oge, %287, %288 : vector<2x8xf32>
    %cst_183 = arith.constant 1.000000e-01 : f32
    %290 = vector.broadcast %cst_183 : f32 to vector<2x8xf32>
    %291 = arith.mulf %290, %287 : vector<2x8xf32>
    %292 = arith.select %289, %287, %291 : vector<2x8xi1>, vector<2x8xf32>
    %293 = arith.truncf %292 : vector<2x8xf32> to vector<2x8xbf16>
    %c1600 = arith.constant 1600 : index
    %c0_184 = arith.constant 0 : index
    %294 = vector.load %arg2[%c1600, %c0_184] : memref<1680x128xbf16, #tpu.memory_space<vmem>>, vector<8x8xbf16>
    %cst_185 = arith.constant dense<0.000000e+00> : vector<2x8xf32>
    %295 = tpu.matmul %293, %294, %cst_185 {dimension_numbers = #tpu.dot_dimension_numbers<[1], [0], [0], [1], [0, 0, 1, 1], [], []>} : vector<2x8xbf16>, vector<8x8xbf16>, vector<2x8xf32> -> vector<2x8xf32>
    %c240_186 = arith.constant 240 : index
    %c0_187 = arith.constant 0 : index
    %296 = vector.load %arg3[%c240_186, %c0_187] : memref<320x128xf32, #tpu.memory_space<vmem>>, vector<1x8xf32>
    %297 = vector.broadcast %296 : vector<1x8xf32> to vector<2x8xf32>
    %298 = arith.addf %295, %297 : vector<2x8xf32>
    %cst_188 = arith.constant 0.000000e+00 : f32
    %299 = vector.broadcast %cst_188 : f32 to vector<2x8xf32>
    %300 = arith.cmpf oge, %298, %299 : vector<2x8xf32>
    %cst_189 = arith.constant 1.000000e-01 : f32
    %301 = vector.broadcast %cst_189 : f32 to vector<2x8xf32>
    %302 = arith.mulf %301, %298 : vector<2x8xf32>
    %303 = arith.select %300, %298, %302 : vector<2x8xi1>, vector<2x8xf32>
    %304 = arith.truncf %303 : vector<2x8xf32> to vector<2x8xbf16>
    %c1616 = arith.constant 1616 : index
    %c0_190 = arith.constant 0 : index
    %305 = vector.load %arg2[%c1616, %c0_190] : memref<1680x128xbf16, #tpu.memory_space<vmem>>, vector<8x8xbf16>
    %cst_191 = arith.constant dense<0.000000e+00> : vector<2x8xf32>
    %306 = tpu.matmul %304, %305, %cst_191 {dimension_numbers = #tpu.dot_dimension_numbers<[1], [0], [0], [1], [0, 0, 1, 1], [], []>} : vector<2x8xbf16>, vector<8x8xbf16>, vector<2x8xf32> -> vector<2x8xf32>
    %c256_192 = arith.constant 256 : index
    %c0_193 = arith.constant 0 : index
    %307 = vector.load %arg3[%c256_192, %c0_193] : memref<320x128xf32, #tpu.memory_space<vmem>>, vector<1x8xf32>
    %308 = vector.broadcast %307 : vector<1x8xf32> to vector<2x8xf32>
    %309 = arith.addf %306, %308 : vector<2x8xf32>
    %cst_194 = arith.constant 0.000000e+00 : f32
    %310 = vector.broadcast %cst_194 : f32 to vector<2x8xf32>
    %311 = arith.cmpf oge, %309, %310 : vector<2x8xf32>
    %cst_195 = arith.constant 1.000000e-01 : f32
    %312 = vector.broadcast %cst_195 : f32 to vector<2x8xf32>
    %313 = arith.mulf %312, %309 : vector<2x8xf32>
    %314 = arith.select %311, %309, %313 : vector<2x8xi1>, vector<2x8xf32>
    %315 = arith.truncf %314 : vector<2x8xf32> to vector<2x8xbf16>
    %c1632 = arith.constant 1632 : index
    %c0_196 = arith.constant 0 : index
    %316 = vector.load %arg2[%c1632, %c0_196] : memref<1680x128xbf16, #tpu.memory_space<vmem>>, vector<8x8xbf16>
    %cst_197 = arith.constant dense<0.000000e+00> : vector<2x8xf32>
    %317 = tpu.matmul %315, %316, %cst_197 {dimension_numbers = #tpu.dot_dimension_numbers<[1], [0], [0], [1], [0, 0, 1, 1], [], []>} : vector<2x8xbf16>, vector<8x8xbf16>, vector<2x8xf32> -> vector<2x8xf32>
    %c272_198 = arith.constant 272 : index
    %c0_199 = arith.constant 0 : index
    %318 = vector.load %arg3[%c272_198, %c0_199] : memref<320x128xf32, #tpu.memory_space<vmem>>, vector<1x8xf32>
    %319 = vector.broadcast %318 : vector<1x8xf32> to vector<2x8xf32>
    %320 = arith.addf %317, %319 : vector<2x8xf32>
    %cst_200 = arith.constant 0.000000e+00 : f32
    %321 = vector.broadcast %cst_200 : f32 to vector<2x8xf32>
    %322 = arith.cmpf oge, %320, %321 : vector<2x8xf32>
    %cst_201 = arith.constant 1.000000e-01 : f32
    %323 = vector.broadcast %cst_201 : f32 to vector<2x8xf32>
    %324 = arith.mulf %323, %320 : vector<2x8xf32>
    %325 = arith.select %322, %320, %324 : vector<2x8xi1>, vector<2x8xf32>
    %326 = arith.addf %325, %273 : vector<2x8xf32>
    %327 = arith.truncf %326 : vector<2x8xf32> to vector<2x8xbf16>
    %c1648 = arith.constant 1648 : index
    %c0_202 = arith.constant 0 : index
    %328 = vector.load %arg2[%c1648, %c0_202] : memref<1680x128xbf16, #tpu.memory_space<vmem>>, vector<8x16xbf16>
    %cst_203 = arith.constant dense<0.000000e+00> : vector<2x16xf32>
    %329 = tpu.matmul %327, %328, %cst_203 {dimension_numbers = #tpu.dot_dimension_numbers<[1], [0], [0], [1], [0, 0, 1, 1], [], []>} : vector<2x8xbf16>, vector<8x16xbf16>, vector<2x16xf32> -> vector<2x16xf32>
    %c288_204 = arith.constant 288 : index
    %c0_205 = arith.constant 0 : index
    %330 = vector.load %arg3[%c288_204, %c0_205] : memref<320x128xf32, #tpu.memory_space<vmem>>, vector<1x16xf32>
    %331 = vector.broadcast %330 : vector<1x16xf32> to vector<2x16xf32>
    %332 = arith.addf %329, %331 : vector<2x16xf32>
    %333 = math.tanh %332 : vector<2x16xf32>
    %334 = arith.truncf %333 : vector<2x16xf32> to vector<2x16xbf16>
    %c1664 = arith.constant 1664 : index
    %c0_206 = arith.constant 0 : index
    %335 = vector.load %arg2[%c1664, %c0_206] : memref<1680x128xbf16, #tpu.memory_space<vmem>>, vector<16x2xbf16>
    %cst_207 = arith.constant dense<0.000000e+00> : vector<2x2xf32>
    %336 = tpu.matmul %334, %335, %cst_207 {dimension_numbers = #tpu.dot_dimension_numbers<[1], [0], [0], [1], [0, 0, 1, 1], [], []>} : vector<2x16xbf16>, vector<16x2xbf16>, vector<2x2xf32> -> vector<2x2xf32>
    %c304_208 = arith.constant 304 : index
    %c0_209 = arith.constant 0 : index
    %337 = vector.load %arg3[%c304_208, %c0_209] : memref<320x128xf32, #tpu.memory_space<vmem>>, vector<1x2xf32>
    %338 = vector.broadcast %337 : vector<1x2xf32> to vector<2x2xf32>
    %339 = arith.addf %336, %338 : vector<2x2xf32>
    %340 = math.tanh %339 : vector<2x2xf32>
    %c0_210 = arith.constant 0 : index
    %c0_211 = arith.constant 0 : index
    %341 = vector.load %arg4[%c0_210, %c0_211] : memref<2x2xf32, #tpu.memory_space<vmem>>, vector<2x2xf32>
    tpu.vector_store %arg4[%c0_210, %c0_211], %340 {strides = array<i32>} : memref<2x2xf32, #tpu.memory_space<vmem>>, vector<2x2xf32>,
    return
  }
}

</mosaic_0001>

<llo_original>
// kernel: _lambda_.1
$region0: #{_lambda_.1}
  #allocation0 [shape = 'u32[]', space=smem, size = 0x4, offset = 0x4, fixed_abs, tag = 'smem constant byte address 0x4 - core index']
  #allocation1 [shape = 'u32[144,128]{1,0:T(1,128)}', space=vmem, size = 0x12000, scoped, tag = 'internal scratch']
  %s0 = inlined_call_operand.vmem [shape: bf16[64,32], index: 0, kind: input, shape index: {}]
  %s1 = inlined_call_operand.hbm [shape: bf16[528,64], index: 1, kind: input, shape index: {}]
  %s2 = inlined_call_operand.hbm [shape: bf16[1680,128], index: 2, kind: input, shape index: {}]
  %s3 = inlined_call_operand.hbm [shape: f32[320,128], index: 3, kind: input, shape index: {}]
  %s4 = inlined_call_operand.hbm [shape: f32[2,2], index: 4, kind: output, shape index: {}]
  %s5 = sld [smem:[#allocation0]]
  $region38: #{_lambda_.1} parent=0
    _
  %s7 = ssub.s32 1, %s5
  %s8 = scalar_select 0, %s7, %s5
  $region1: #{_lambda_.1} parent=0
    #allocation2 [shape = 'u8[135168]{0}', space=vmem, size = 0x21000, scoped, tag = 'input window, operand 1, single buffered']
    #allocation3 [shape = 's32[1]{0}', space=sflag, size = 0x4, scoped, tag = 'scoped memory for _lambda_.1']
    #allocation4 [shape = 's32[1]{0}', space=sflag, size = 0x4, scoped, tag = 'scoped memory for _lambda_.1']
    #allocation5 [shape = 'u8[430080]{0}', space=vmem, size = 0x69000, scoped, tag = 'input window, operand 2, single buffered']
    #allocation6 [shape = 's32[1]{0}', space=sflag, size = 0x4, scoped, tag = 'scoped memory for _lambda_.1']
    #allocation7 [shape = 'u8[163840]{0}', space=vmem, size = 0x28000, scoped, tag = 'input window, operand 3, single buffered']
    #allocation8 [shape = 'u8[1024]{0}', space=vmem, size = 0x400, scoped, tag = 'output window, operand 0, single buffered']
    %9 = vsyncpa [#allocation3], 0
    %10 = vsyncpa [#allocation6], 0
    %11 = vsyncpa [#allocation4], 0
    // Predicated region
    $region2: #{_lambda_.1} parent=1 // pred_check
      _
    $region3: #{_lambda_.1} parent=1 // pred_check_branch
      %13 = sbr.rel (0) target = $region5
    $region4: #{_lambda_.1} parent=1 // pred_region
      _
    $region5: #{_lambda_.1} parent=1 // pred_fallthru
      _
    // Predicated region
    $region6: #{_lambda_.1} parent=1 // pred_check
      _
    $region7: #{_lambda_.1} parent=1 // pred_check_branch
      %15 = sbr.rel (0) target = $region9
    $region8: #{_lambda_.1} parent=1 // pred_region
      %s17 = ssub.s32 4224, 4224
      %18 = vsyncadd [#allocation3], %s17
      %s19 = sshll.u32 [#allocation2], 4
      %s20 = int_to_ptr.vmem [resolvable:$true] %s19
      %25 = dma.hbm_to_vmem [thread:$0]  %s1, 4224, %s20, [#allocation3], 64, 64, 4
    $region9: #{_lambda_.1} parent=1 // pred_fallthru
      _
    // Predicated region
    $region10: #{_lambda_.1} parent=1 // pred_check
      _
    $region11: #{_lambda_.1} parent=1 // pred_check_branch
      %27 = sbr.rel (0) target = $region13
    $region12: #{_lambda_.1} parent=1 // pred_region
      %s29 = ssub.s32 13440, 13440
      %30 = vsyncadd [#allocation6], %s29
      %s31 = sshll.u32 [#allocation5], 4
      %s32 = int_to_ptr.vmem [resolvable:$true] %s31
      %37 = dma.hbm_to_vmem [thread:$0]  %s2, 13440, %s32, [#allocation6], 64, 64, 4
    $region13: #{_lambda_.1} parent=1 // pred_fallthru
      _
    // Predicated region
    $region14: #{_lambda_.1} parent=1 // pred_check
      _
    $region15: #{_lambda_.1} parent=1 // pred_check_branch
      %39 = sbr.rel (0) target = $region17
    $region16: #{_lambda_.1} parent=1 // pred_region
      %s41 = ssub.s32 5120, 5120
      %42 = vsyncadd [#allocation6], %s41
      %s43 = sshll.u32 [#allocation7], 4
      %s44 = int_to_ptr.vmem [resolvable:$true] %s43
      %49 = dma.hbm_to_vmem [thread:$0]  %s3, 5120, %s44, [#allocation6], 128, 128, 8
    $region17: #{_lambda_.1} parent=1 // pred_fallthru
      _
    // Predicated region
    $region18: #{_lambda_.1} parent=1 // pred_check
      _
    $region19: #{_lambda_.1} parent=1 // pred_check_branch
      %51 = sbr.rel (0) target = $region21
    $region20: #{_lambda_.1} parent=1 // pred_region
      %52 = dma.done [#allocation3], 4224
    $region21: #{_lambda_.1} parent=1 // pred_fallthru
      _
    // Predicated region
    $region22: #{_lambda_.1} parent=1 // pred_check
      _
    $region23: #{_lambda_.1} parent=1 // pred_check_branch
      %54 = sbr.rel (0) target = $region25
    $region24: #{_lambda_.1} parent=1 // pred_region
      %55 = dma.done [#allocation6], 13440
    $region25: #{_lambda_.1} parent=1 // pred_fallthru
      _
    // Predicated region
    $region26: #{_lambda_.1} parent=1 // pred_check
      _
    $region27: #{_lambda_.1} parent=1 // pred_check_branch
      %57 = sbr.rel (0) target = $region29
    $region28: #{_lambda_.1} parent=1 // pred_region
      %58 = dma.done [#allocation6], 5120
    $region29: #{_lambda_.1} parent=1 // pred_fallthru
      _
    %v60 = vld [vmem:[%s0] sm:$0xf]
    %v61 = vld [vmem:[%s0 + $0x4] sm:$0xf]
    %v62 = vld [vmem:[%s0 + $0x8] sm:$0xf]
    %v63 = vld [vmem:[%s0 + $0xc] sm:$0xf]
    %v64 = vld [vmem:[%s0 + $0x10] sm:$0xf]
    %v65 = vld [vmem:[%s0 + $0x14] sm:$0xf]
    %v66 = vld [vmem:[%s0 + $0x18] sm:$0xf]
    %v67 = vld [vmem:[%s0 + $0x1c] sm:$0xf]
    %v68 = vld [vmem:[#allocation5] sm:$0xf]
    %v69 = vld [vmem:[#allocation5 + $0x4] sm:$0xf]
    %v70 = vld [vmem:[#allocation5 + $0x8] sm:$0xf]
    %v71 = vld [vmem:[#allocation5 + $0xc] sm:$0xf]
    %v72 = vld [vmem:[#allocation7] sm:$0x1]
    %v73 = vlaneseq
    %v74 = vshrl.u32 %v73, 7
    %v75 = vsub.s32 0, %v74
    %v76 = vrot.slane %v72, %v75
    %v85 = vunpack.c.l.b16 %v60
    %v86 = vunpack.c.l.b16 %v61
    %v87 = vunpack.c.l.b16 %v62
    %v88 = vunpack.c.l.b16 %v63
    %v89 = vunpack.c.l.b16 %v64
    %v90 = vunpack.c.l.b16 %v65
    %v91 = vunpack.c.l.b16 %v66
    %v92 = vunpack.c.l.b16 %v67
    %v93 = vpack.c.b16 %v86, %v85
    %v94 = vpack.c.b16 %v88, %v87
    %v95 = vpack.c.b16 %v90, %v89
    %v96 = vpack.c.b16 %v92, %v91
    %v101 = vunpack.c.l.b16 %v68
    %v102 = vunpack.c.l.b16 %v69
    %v103 = vunpack.c.l.b16 %v70
    %v104 = vunpack.c.l.b16 %v71
    %v105 = vpack.c.b16 %v102, %v101
    %v106 = vpack.c.b16 %v104, %v103
    %vm109 = vcmask 261120
    %v111 = vsel %vm109, %v93, 0
    %v114 = vsel %vm109, %v94, 0
    %v117 = vsel %vm109, %v95, 0
    %v120 = vsel %vm109, %v96, 0
    %122 = vmatprep.subr.bf16.mxu0 0
    %123 = vmatpush1.bf16.msra.mxu0 %v105
    %124 = vmatprep.subr.bf16.mxu0 0
    %125 = vmatpush1.bf16.msra.mxu0 %v106
    %126 = vmatprep.subr.bf16.mxu0 0
    %127 = vmatpush1.bf16.msra.mxu0 0
    %128 = vmatprep.subr.bf16.mxu0 0
    %129 = vmatpush1.bf16.msra.mxu0 0
    %130 = vmatprep.subr.bf16.mxu0 0
    %131 = vmatpush1.bf16.msra.mxu0 0
    %132 = vmatprep.subr.bf16.mxu0 0
    %133 = vmatpush1.bf16.msra.mxu0 0
    %134 = vmatprep.subr.bf16.mxu0 0
    %135 = vmatpush1.bf16.msra.mxu0 0
    %136 = vmatprep.subr.bf16.mxu0 0
    %137 = vmatpush1.bf16.msra.mxu0 0
    %138 = vmatprep.subr.bf16.mxu0 0
    %139 = vmatpush1.bf16.msra.mxu0 0
    %140 = vmatprep.subr.bf16.mxu0 0
    %141 = vmatpush1.bf16.msra.mxu0 0
    %142 = vmatprep.subr.bf16.mxu0 0
    %143 = vmatpush1.bf16.msra.mxu0 0
    %144 = vmatprep.subr.bf16.mxu0 0
    %145 = vmatpush1.bf16.msra.mxu0 0
    %146 = vmatprep.subr.bf16.mxu0 0
    %147 = vmatpush1.bf16.msra.mxu0 0
    %148 = vmatprep.subr.bf16.mxu0 0
    %149 = vmatpush1.bf16.msra.mxu0 0
    %150 = vmatprep.subr.bf16.mxu0 0
    %151 = vmatpush1.bf16.msra.mxu0 0
    %152 = vmatprep.subr.bf16.mxu0 0
    %153 = vmatpush1.bf16.msra.mxu0 0
    %154 = vmatprep.mubr.bf16.mxu0 0
    %155 = vmatmul.mubr.bf16.gmra.mrb[0].mxu0 %v111
    %v156 = vpop.f32.mrb[0].mxu0
    %v157 = vadd.f32 %v76, %v156
    %v158 = vpop.f32.mrb[0].mxu0
    %v159 = vpop.f32.mrb[0].mxu0
    %v160 = vadd.f32 %v76, %v159
    %v161 = vpop.f32.mrb[0].mxu0
    %162 = vmatprep.mubr.bf16.mxu0 0
    %163 = vmatmul.mubr.bf16.gmra.mrb[0].mxu0 %v114
    %v164 = vpop.f32.mrb[0].mxu0
    %v165 = vadd.f32 %v76, %v164
    %v166 = vpop.f32.mrb[0].mxu0
    %v167 = vpop.f32.mrb[0].mxu0
    %v168 = vadd.f32 %v76, %v167
    %v169 = vpop.f32.mrb[0].mxu0
    %170 = vmatprep.mubr.bf16.mxu0 0
    %171 = vmatmul.mubr.bf16.gmra.mrb[0].mxu0 %v117
    %v172 = vpop.f32.mrb[0].mxu0
    %v173 = vadd.f32 %v76, %v172
    %v174 = vpop.f32.mrb[0].mxu0
    %v175 = vpop.f32.mrb[0].mxu0
    %v176 = vadd.f32 %v76, %v175
    %v177 = vpop.f32.mrb[0].mxu0
    %178 = vmatprep.mubr.bf16.mxu0 0
    %179 = vmatmul.mubr.bf16.gmra.mrb[0].mxu0 %v120
    %v180 = vpop.f32.mrb[0].mxu0
    %v181 = vadd.f32 %v76, %v180
    %v182 = vpop.f32.mrb[0].mxu0
    %v183 = vpop.f32.mrb[0].mxu0
    %v184 = vadd.f32 %v76, %v183
    %v185 = vpop.f32.mrb[0].mxu0
    %186 = vdwg.mxu0
    %vm187 = vcmp.ge.f32.partialorder %v157, 0.0
    %vm188 = vcmp.ge.f32.partialorder %v160, 0.0
    %vm189 = vcmp.ge.f32.partialorder %v165, 0.0
    %vm190 = vcmp.ge.f32.partialorder %v168, 0.0
    %vm191 = vcmp.ge.f32.partialorder %v173, 0.0
    %vm192 = vcmp.ge.f32.partialorder %v176, 0.0
    %vm193 = vcmp.ge.f32.partialorder %v181, 0.0
    %vm194 = vcmp.ge.f32.partialorder %v184, 0.0
    %v195 = vmul.f32 %v157, 0.1
    %v196 = vmul.f32 %v160, 0.1
    %v197 = vmul.f32 %v165, 0.1
    %v198 = vmul.f32 %v168, 0.1
    %v199 = vmul.f32 %v173, 0.1
    %v200 = vmul.f32 %v176, 0.1
    %v201 = vmul.f32 %v181, 0.1
    %v202 = vmul.f32 %v184, 0.1
    %v203 = vsel %vm187, %v157, %v195
    %v204 = vsel %vm188, %v160, %v196
    %v205 = vsel %vm189, %v165, %v197
    %v206 = vsel %vm190, %v168, %v198
    %v207 = vsel %vm191, %v173, %v199
    %v208 = vsel %vm192, %v176, %v200
    %v209 = vsel %vm193, %v181, %v201
    %v210 = vsel %vm194, %v184, %v202
    %v211 = vpack.c.bf16 %v204, %v203
    %v212 = vpack.c.bf16 %v206, %v205
    %v213 = vpack.c.bf16 %v208, %v207
    %v214 = vpack.c.bf16 %v210, %v209
    %v215 = vld [vmem:[#allocation2] sm:$0xf]
    %v216 = vld [vmem:[#allocation2 + $0x4] sm:$0xf]
    %v219 = vunpack.c.l.b16 %v215
    %v220 = vunpack.c.l.b16 %v216
    %v221 = vpack.c.b16 %v220, %v219
    %vm222 = vcmask 523264
    %v224 = vsel %vm222, %v221, 0
    %226 = vmatprep.subr.bf16.mxu0 0
    %227 = vmatpush1.bf16.msra.mxu0 %v211
    %228 = vmatprep.subr.bf16.mxu0 0
    %229 = vmatpush1.bf16.msra.mxu0 %v212
    %230 = vmatprep.subr.bf16.mxu0 0
    %231 = vmatpush1.bf16.msra.mxu0 %v213
    %232 = vmatprep.subr.bf16.mxu0 0
    %233 = vmatpush1.bf16.msra.mxu0 %v214
    %234 = vmatprep.subr.bf16.mxu0 0
    %235 = vmatpush1.bf16.msra.mxu0 0
    %236 = vmatprep.subr.bf16.mxu0 0
    %237 = vmatpush1.bf16.msra.mxu0 0
    %238 = vmatprep.subr.bf16.mxu0 0
    %239 = vmatpush1.bf16.msra.mxu0 0
    %240 = vmatprep.subr.bf16.mxu0 0
    %241 = vmatpush1.bf16.msra.mxu0 0
    %242 = vmatprep.subr.bf16.mxu0 0
    %243 = vmatpush1.bf16.msra.mxu0 0
    %244 = vmatprep.subr.bf16.mxu0 0
    %245 = vmatpush1.bf16.msra.mxu0 0
    %246 = vmatprep.subr.bf16.mxu0 0
    %247 = vmatpush1.bf16.msra.mxu0 0
    %248 = vmatprep.subr.bf16.mxu0 0
    %249 = vmatpush1.bf16.msra.mxu0 0
    %250 = vmatprep.subr.bf16.mxu0 0
    %251 = vmatpush1.bf16.msra.mxu0 0
    %252 = vmatprep.subr.bf16.mxu0 0
    %253 = vmatpush1.bf16.msra.mxu0 0
    %254 = vmatprep.subr.bf16.mxu0 0
    %255 = vmatpush1.bf16.msra.mxu0 0
    %256 = vmatprep.subr.bf16.mxu0 0
    %257 = vmatpush1.bf16.msra.mxu0 0
    %258 = vmatprep.mubr.bf16.mxu0 0
    %259 = vmatmul.mubr.bf16.gmra.mrb[0].mxu0 %v224
    %v260 = vpop.f32.mrb[0].mxu0
    %v261 = vadd.f32 0.0, %v260
    %v262 = vpop.f32.mrb[0].mxu0
    %v263 = vpop.f32.mrb[0].mxu0
    %v264 = vadd.f32 0.0, %v263
    %v265 = vpop.f32.mrb[0].mxu0
    %266 = vdwg.mxu0
    %v267 = vpack.c.bf16 %v264, %v261
    %v268 = vld [vmem:[#allocation5 + $0x10] sm:$0xf]
    %v269 = vld [vmem:[#allocation5 + $0x14] sm:$0xf]
    %v270 = vld [vmem:[#allocation5 + $0x18] sm:$0xf]
    %v271 = vld [vmem:[#allocation5 + $0x1c] sm:$0xf]
    %v272 = vld [vmem:[#allocation5 + $0x20] sm:$0xf]
    %v273 = vld [vmem:[#allocation5 + $0x24] sm:$0xf]
    %v274 = vld [vmem:[#allocation5 + $0x28] sm:$0xf]
    %v275 = vld [vmem:[#allocation5 + $0x2c] sm:$0xf]
    %v276 = vld [vmem:[#allocation5 + $0x30] sm:$0xf]
    %v277 = vld [vmem:[#allocation5 + $0x34] sm:$0xf]
    %v278 = vld [vmem:[#allocation5 + $0x38] sm:$0xf]
    %v279 = vld [vmem:[#allocation5 + $0x3c] sm:$0xf]
    %v280 = vld [vmem:[#allocation5 + $0x40] sm:$0xf]
    %v281 = vld [vmem:[#allocation5 + $0x44] sm:$0xf]
    %v282 = vld [vmem:[#allocation5 + $0x48] sm:$0xf]
    %v283 = vld [vmem:[#allocation5 + $0x4c] sm:$0xf]
    %v284 = vld [vmem:[#allocation2 + $0x8] sm:$0xf]
    %v285 = vld [vmem:[#allocation2 + $0xc] sm:$0xf]
    %v288 = vunpack.c.l.b16 %v284
    %v289 = vunpack.c.l.b16 %v285
    %v290 = vpack.c.b16 %v289, %v288
    %v292 = vsel %vm222, %v290, 0
    %294 = vmatprep.subr.bf16.mxu0 0
    %295 = vmatpush1.bf16.msra.mxu0 %v211
    %296 = vmatprep.subr.bf16.mxu0 0
    %297 = vmatpush1.bf16.msra.mxu0 %v212
    %298 = vmatprep.subr.bf16.mxu0 0
    %299 = vmatpush1.bf16.msra.mxu0 %v213
    %300 = vmatprep.subr.bf16.mxu0 0
    %301 = vmatpush1.bf16.msra.mxu0 %v214
    %302 = vmatprep.subr.bf16.mxu0 0
    %303 = vmatpush1.bf16.msra.mxu0 0
    %304 = vmatprep.subr.bf16.mxu0 0
    %305 = vmatpush1.bf16.msra.mxu0 0
    %306 = vmatprep.subr.bf16.mxu0 0
    %307 = vmatpush1.bf16.msra.mxu0 0
    %308 = vmatprep.subr.bf16.mxu0 0
    %309 = vmatpush1.bf16.msra.mxu0 0
    %310 = vmatprep.subr.bf16.mxu0 0
    %311 = vmatpush1.bf16.msra.mxu0 0
    %312 = vmatprep.subr.bf16.mxu0 0
    %313 = vmatpush1.bf16.msra.mxu0 0
    %314 = vmatprep.subr.bf16.mxu0 0
    %315 = vmatpush1.bf16.msra.mxu0 0
    %316 = vmatprep.subr.bf16.mxu0 0
    %317 = vmatpush1.bf16.msra.mxu0 0
    %318 = vmatprep.subr.bf16.mxu0 0
    %319 = vmatpush1.bf16.msra.mxu0 0
    %320 = vmatprep.subr.bf16.mxu0 0
    %321 = vmatpush1.bf16.msra.mxu0 0
    %322 = vmatprep.subr.bf16.mxu0 0
    %323 = vmatpush1.bf16.msra.mxu0 0
    %324 = vmatprep.subr.bf16.mxu0 0
    %325 = vmatpush1.bf16.msra.mxu0 0
    %326 = vmatprep.mubr.bf16.mxu0 0
    %327 = vmatmul.mubr.bf16.gmra.mrb[0].mxu0 %v292
    %v328 = vpop.f32.mrb[0].mxu0
    %v329 = vadd.f32 0.0, %v328
    %v330 = vpop.f32.mrb[0].mxu0
    %v331 = vpop.f32.mrb[0].mxu0
    %v332 = vadd.f32 0.0, %v331
    %v333 = vpop.f32.mrb[0].mxu0
    %334 = vdwg.mxu0
    %v335 = vpack.c.bf16 %v332, %v329
    %v336 = vld [vmem:[#allocation5 + $0x50] sm:$0xf]
    %v337 = vld [vmem:[#allocation5 + $0x54] sm:$0xf]
    %v338 = vld [vmem:[#allocation5 + $0x58] sm:$0xf]
    %v339 = vld [vmem:[#allocation5 + $0x5c] sm:$0xf]
    %v340 = vld [vmem:[#allocation5 + $0x60] sm:$0xf]
    %v341 = vld [vmem:[#allocation5 + $0x64] sm:$0xf]
    %v342 = vld [vmem:[#allocation5 + $0x68] sm:$0xf]
    %v343 = vld [vmem:[#allocation5 + $0x6c] sm:$0xf]
    %v344 = vld [vmem:[#allocation5 + $0x70] sm:$0xf]
    %v345 = vld [vmem:[#allocation5 + $0x74] sm:$0xf]
    %v346 = vld [vmem:[#allocation5 + $0x78] sm:$0xf]
    %v347 = vld [vmem:[#allocation5 + $0x7c] sm:$0xf]
    %v348 = vld [vmem:[#allocation5 + $0x80] sm:$0xf]
    %v349 = vld [vmem:[#allocation5 + $0x84] sm:$0xf]
    %v350 = vld [vmem:[#allocation5 + $0x88] sm:$0xf]
    %v351 = vld [vmem:[#allocation5 + $0x8c] sm:$0xf]
    %v368 = vunpack.c.l.b16 %v336
    %v369 = vunpack.c.l.b16 %v337
    %v370 = vunpack.c.l.b16 %v338
    %v371 = vunpack.c.l.b16 %v339
    %v372 = vunpack.c.l.b16 %v340
    %v373 = vunpack.c.l.b16 %v341
    %v374 = vunpack.c.l.b16 %v342
    %v375 = vunpack.c.l.b16 %v343
    %v376 = vunpack.c.l.b16 %v344
    %v377 = vunpack.c.l.b16 %v345
    %v378 = vunpack.c.l.b16 %v346
    %v379 = vunpack.c.l.b16 %v347
    %v380 = vunpack.c.l.b16 %v348
    %v381 = vunpack.c.l.b16 %v349
    %v382 = vunpack.c.l.b16 %v350
    %v383 = vunpack.c.l.b16 %v351
    %v384 = vpack.c.b16 %v369, %v368
    %v385 = vpack.c.b16 %v371, %v370
    %v386 = vpack.c.b16 %v373, %v372
    %v387 = vpack.c.b16 %v375, %v374
    %v388 = vpack.c.b16 %v377, %v376
    %v389 = vpack.c.b16 %v379, %v378
    %v390 = vpack.c.b16 %v381, %v380
    %v391 = vpack.c.b16 %v383, %v382
    %400 = vmatprep.subr.bf16.mxu0 0
    %401 = vmatpush1.bf16.msra.mxu0 %v384
    %402 = vmatprep.subr.bf16.mxu0 0
    %403 = vmatpush1.bf16.msra.mxu0 %v385
    %404 = vmatprep.subr.bf16.mxu0 0
    %405 = vmatpush1.bf16.msra.mxu0 %v386
    %406 = vmatprep.subr.bf16.mxu0 0
    %407 = vmatpush1.bf16.msra.mxu0 %v387
    %408 = vmatprep.subr.bf16.mxu0 0
    %409 = vmatpush1.bf16.msra.mxu0 %v388
    %410 = vmatprep.subr.bf16.mxu0 0
    %411 = vmatpush1.bf16.msra.mxu0 %v389
    %412 = vmatprep.subr.bf16.mxu0 0
    %413 = vmatpush1.bf16.msra.mxu0 %v390
    %414 = vmatprep.subr.bf16.mxu0 0
    %415 = vmatpush1.bf16.msra.mxu0 %v391
    %416 = vmatprep.subr.bf16.mxu0 0
    %417 = vmatpush1.bf16.msra.mxu0 0
    %418 = vmatprep.subr.bf16.mxu0 0
    %419 = vmatpush1.bf16.msra.mxu0 0
    %420 = vmatprep.subr.bf16.mxu0 0
    %421 = vmatpush1.bf16.msra.mxu0 0
    %422 = vmatprep.subr.bf16.mxu0 0
    %423 = vmatpush1.bf16.msra.mxu0 0
    %424 = vmatprep.subr.bf16.mxu0 0
    %425 = vmatpush1.bf16.msra.mxu0 0
    %426 = vmatprep.subr.bf16.mxu0 0
    %427 = vmatpush1.bf16.msra.mxu0 0
    %428 = vmatprep.subr.bf16.mxu0 0
    %429 = vmatpush1.bf16.msra.mxu0 0
    %430 = vmatprep.subr.bf16.mxu0 0
    %431 = vmatpush1.bf16.msra.mxu0 0
    %432 = vmatprep.mubr.bf16.mxu0 0
    %433 = vmatmul.mubr.bf16.gmra.mrb[0].mxu0 %v335
    %v434 = vpop.f32.mrb[0].mxu0
    %v435 = vadd.f32 0.0, %v434
    %v436 = vpop.f32.mrb[0].mxu0
    %v437 = vpop.f32.mrb[0].mxu0
    %v438 = vadd.f32 0.0, %v437
    %v439 = vpop.f32.mrb[0].mxu0
    %440 = vdwg.mxu0
    %v457 = vunpack.c.l.b16 %v268
    %v458 = vunpack.c.l.b16 %v269
    %v459 = vunpack.c.l.b16 %v270
    %v460 = vunpack.c.l.b16 %v271
    %v461 = vunpack.c.l.b16 %v272
    %v462 = vunpack.c.l.b16 %v273
    %v463 = vunpack.c.l.b16 %v274
    %v464 = vunpack.c.l.b16 %v275
    %v465 = vunpack.c.l.b16 %v276
    %v466 = vunpack.c.l.b16 %v277
    %v467 = vunpack.c.l.b16 %v278
    %v468 = vunpack.c.l.b16 %v279
    %v469 = vunpack.c.l.b16 %v280
    %v470 = vunpack.c.l.b16 %v281
    %v471 = vunpack.c.l.b16 %v282
    %v472 = vunpack.c.l.b16 %v283
    %v473 = vpack.c.b16 %v458, %v457
    %v474 = vpack.c.b16 %v460, %v459
    %v475 = vpack.c.b16 %v462, %v461
    %v476 = vpack.c.b16 %v464, %v463
    %v477 = vpack.c.b16 %v466, %v465
    %v478 = vpack.c.b16 %v468, %v467
    %v479 = vpack.c.b16 %v470, %v469
    %v480 = vpack.c.b16 %v472, %v471
    %489 = vmatprep.subr.bf16.mxu0 0
    %490 = vmatpush1.bf16.msra.mxu0 %v473
    %491 = vmatprep.subr.bf16.mxu0 0
    %492 = vmatpush1.bf16.msra.mxu0 %v474
    %493 = vmatprep.subr.bf16.mxu0 0
    %494 = vmatpush1.bf16.msra.mxu0 %v475
    %495 = vmatprep.subr.bf16.mxu0 0
    %496 = vmatpush1.bf16.msra.mxu0 %v476
    %497 = vmatprep.subr.bf16.mxu0 0
    %498 = vmatpush1.bf16.msra.mxu0 %v477
    %499 = vmatprep.subr.bf16.mxu0 0
    %500 = vmatpush1.bf16.msra.mxu0 %v478
    %501 = vmatprep.subr.bf16.mxu0 0
    %502 = vmatpush1.bf16.msra.mxu0 %v479
    %503 = vmatprep.subr.bf16.mxu0 0
    %504 = vmatpush1.bf16.msra.mxu0 %v480
    %505 = vmatprep.subr.bf16.mxu0 0
    %506 = vmatpush1.bf16.msra.mxu0 0
    %507 = vmatprep.subr.bf16.mxu0 0
    %508 = vmatpush1.bf16.msra.mxu0 0
    %509 = vmatprep.subr.bf16.mxu0 0
    %510 = vmatpush1.bf16.msra.mxu0 0
    %511 = vmatprep.subr.bf16.mxu0 0
    %512 = vmatpush1.bf16.msra.mxu0 0
    %513 = vmatprep.subr.bf16.mxu0 0
    %514 = vmatpush1.bf16.msra.mxu0 0
    %515 = vmatprep.subr.bf16.mxu0 0
    %516 = vmatpush1.bf16.msra.mxu0 0
    %517 = vmatprep.subr.bf16.mxu0 0
    %518 = vmatpush1.bf16.msra.mxu0 0
    %519 = vmatprep.subr.bf16.mxu0 0
    %520 = vmatpush1.bf16.msra.mxu0 0
    %521 = vmatprep.mubr.bf16.mxu0 0
    %522 = vmatmul.mubr.bf16.gmra.mrb[0].mxu0 %v267
    %v523 = vpop.f32.mrb[0].mxu0
    %v524 = vadd.f32 %v435, %v523
    %v525 = vpop.f32.mrb[0].mxu0
    %v526 = vpop.f32.mrb[0].mxu0
    %v527 = vadd.f32 %v438, %v526
    %v528 = vpop.f32.mrb[0].mxu0
    %529 = vdwg.mxu0
    %v530 = vld [vmem:[#allocation2 + $0x10] sm:$0xf]
    %v531 = vld [vmem:[#allocation2 + $0x14] sm:$0xf]
    %v534 = vunpack.c.l.b16 %v530
    %v535 = vunpack.c.l.b16 %v531
    %v536 = vpack.c.b16 %v535, %v534
    %v538 = vsel %vm222, %v536, 0
    %540 = vmatprep.subr.bf16.mxu0 0
    %541 = vmatpush1.bf16.msra.mxu0 %v211
    %542 = vmatprep.subr.bf16.mxu0 0
    %543 = vmatpush1.bf16.msra.mxu0 %v212
    %544 = vmatprep.subr.bf16.mxu0 0
    %545 = vmatpush1.bf16.msra.mxu0 %v213
    %546 = vmatprep.subr.bf16.mxu0 0
    %547 = vmatpush1.bf16.msra.mxu0 %v214
    %548 = vmatprep.subr.bf16.mxu0 0
    %549 = vmatpush1.bf16.msra.mxu0 0
    %550 = vmatprep.subr.bf16.mxu0 0
    %551 = vmatpush1.bf16.msra.mxu0 0
    %552 = vmatprep.subr.bf16.mxu0 0
    %553 = vmatpush1.bf16.msra.mxu0 0
    %554 = vmatprep.subr.bf16.mxu0 0
    %555 = vmatpush1.bf16.msra.mxu0 0
    %556 = vmatprep.subr.bf16.mxu0 0
    %557 = vmatpush1.bf16.msra.mxu0 0
    %558 = vmatprep.subr.bf16.mxu0 0
    %559 = vmatpush1.bf16.msra.mxu0 0
    %560 = vmatprep.subr.bf16.mxu0 0
    %561 = vmatpush1.bf16.msra.mxu0 0
    %562 = vmatprep.subr.bf16.mxu0 0
    %563 = vmatpush1.bf16.msra.mxu0 0
    %564 = vmatprep.subr.bf16.mxu0 0
    %565 = vmatpush1.bf16.msra.mxu0 0
    %566 = vmatprep.subr.bf16.mxu0 0
    %567 = vmatpush1.bf16.msra.mxu0 0
    %568 = vmatprep.subr.bf16.mxu0 0
    %569 = vmatpush1.bf16.msra.mxu0 0
    %570 = vmatprep.subr.bf16.mxu0 0
    %571 = vmatpush1.bf16.msra.mxu0 0
    %572 = vmatprep.mubr.bf16.mxu0 0
    %573 = vmatmul.mubr.bf16.gmra.mrb[0].mxu0 %v538
    %v574 = vpop.f32.mrb[0].mxu0
    %v575 = vadd.f32 0.0, %v574
    %v576 = vpop.f32.mrb[0].mxu0
    %v577 = vpop.f32.mrb[0].mxu0
    %v578 = vadd.f32 0.0, %v577
    %v579 = vpop.f32.mrb[0].mxu0
    %580 = vdwg.mxu0
    %v581 = vpack.c.bf16 %v578, %v575
    %v582 = vld [vmem:[#allocation5 + $0x90] sm:$0xf]
    %v583 = vld [vmem:[#allocation5 + $0x94] sm:$0xf]
    %v584 = vld [vmem:[#allocation5 + $0x98] sm:$0xf]
    %v585 = vld [vmem:[#allocation5 + $0x9c] sm:$0xf]
    %v586 = vld [vmem:[#allocation5 + $0xa0] sm:$0xf]
    %v587 = vld [vmem:[#allocation5 + $0xa4] sm:$0xf]
    %v588 = vld [vmem:[#allocation5 + $0xa8] sm:$0xf]
    %v589 = vld [vmem:[#allocation5 + $0xac] sm:$0xf]
    %v590 = vld [vmem:[#allocation5 + $0xb0] sm:$0xf]
    %v591 = vld [vmem:[#allocation5 + $0xb4] sm:$0xf]
    %v592 = vld [vmem:[#allocation5 + $0xb8] sm:$0xf]
    %v593 = vld [vmem:[#allocation5 + $0xbc] sm:$0xf]
    %v594 = vld [vmem:[#allocation5 + $0xc0] sm:$0xf]
    %v595 = vld [vmem:[#allocation5 + $0xc4] sm:$0xf]
    %v596 = vld [vmem:[#allocation5 + $0xc8] sm:$0xf]
    %v597 = vld [vmem:[#allocation5 + $0xcc] sm:$0xf]
    %v614 = vunpack.c.l.b16 %v582
    %v615 = vunpack.c.l.b16 %v583
    %v616 = vunpack.c.l.b16 %v584
    %v617 = vunpack.c.l.b16 %v585
    %v618 = vunpack.c.l.b16 %v586
    %v619 = vunpack.c.l.b16 %v587
    %v620 = vunpack.c.l.b16 %v588
    %v621 = vunpack.c.l.b16 %v589
    %v622 = vunpack.c.l.b16 %v590
    %v623 = vunpack.c.l.b16 %v591
    %v624 = vunpack.c.l.b16 %v592
    %v625 = vunpack.c.l.b16 %v593
    %v626 = vunpack.c.l.b16 %v594
    %v627 = vunpack.c.l.b16 %v595
    %v628 = vunpack.c.l.b16 %v596
    %v629 = vunpack.c.l.b16 %v597
    %v630 = vpack.c.b16 %v615, %v614
    %v631 = vpack.c.b16 %v617, %v616
    %v632 = vpack.c.b16 %v619, %v618
    %v633 = vpack.c.b16 %v621, %v620
    %v634 = vpack.c.b16 %v623, %v622
    %v635 = vpack.c.b16 %v625, %v624
    %v636 = vpack.c.b16 %v627, %v626
    %v637 = vpack.c.b16 %v629, %v628
    %646 = vmatprep.subr.bf16.mxu0 0
    %647 = vmatpush1.bf16.msra.mxu0 %v630
    %648 = vmatprep.subr.bf16.mxu0 0
    %649 = vmatpush1.bf16.msra.mxu0 %v631
    %650 = vmatprep.subr.bf16.mxu0 0
    %651 = vmatpush1.bf16.msra.mxu0 %v632
    %652 = vmatprep.subr.bf16.mxu0 0
    %653 = vmatpush1.bf16.msra.mxu0 %v633
    %654 = vmatprep.subr.bf16.mxu0 0
    %655 = vmatpush1.bf16.msra.mxu0 %v634
    %656 = vmatprep.subr.bf16.mxu0 0
    %657 = vmatpush1.bf16.msra.mxu0 %v635
    %658 = vmatprep.subr.bf16.mxu0 0
    %659 = vmatpush1.bf16.msra.mxu0 %v636
    %660 = vmatprep.subr.bf16.mxu0 0
    %661 = vmatpush1.bf16.msra.mxu0 %v637
    %662 = vmatprep.subr.bf16.mxu0 0
    %663 = vmatpush1.bf16.msra.mxu0 0
    %664 = vmatprep.subr.bf16.mxu0 0
    %665 = vmatpush1.bf16.msra.mxu0 0
    %666 = vmatprep.subr.bf16.mxu0 0
    %667 = vmatpush1.bf16.msra.mxu0 0
    %668 = vmatprep.subr.bf16.mxu0 0
    %669 = vmatpush1.bf16.msra.mxu0 0
    %670 = vmatprep.subr.bf16.mxu0 0
    %671 = vmatpush1.bf16.msra.mxu0 0
    %672 = vmatprep.subr.bf16.mxu0 0
    %673 = vmatpush1.bf16.msra.mxu0 0
    %674 = vmatprep.subr.bf16.mxu0 0
    %675 = vmatpush1.bf16.msra.mxu0 0
    %676 = vmatprep.subr.bf16.mxu0 0
    %677 = vmatpush1.bf16.msra.mxu0 0
    %678 = vmatprep.mubr.bf16.mxu0 0
    %679 = vmatmul.mubr.bf16.gmra.mrb[0].mxu0 %v581
    %v680 = vpop.f32.mrb[0].mxu0
    %v681 = vadd.f32 0.0, %v680
    %v682 = vpop.f32.mrb[0].mxu0
    %v683 = vpop.f32.mrb[0].mxu0
    %v684 = vadd.f32 0.0, %v683
    %v685 = vpop.f32.mrb[0].mxu0
    %686 = vdwg.mxu0
    %v687 = vadd.f32 %v524, %v681
    %v688 = vadd.f32 %v527, %v684
    %v689 = vld [vmem:[#allocation7 + $0x10] sm:$0x1]
    %v690 = vlaneseq
    %v691 = vshrl.u32 %v690, 7
    %v692 = vsub.s32 0, %v691
    %v693 = vrot.slane %v689, %v692
    %v694 = vadd.f32 %v687, %v693
    %v695 = vadd.f32 %v688, %v693
    %v696 = vld [vmem:[#allocation2 + $0x18] sm:$0xf]
    %v697 = vld [vmem:[#allocation2 + $0x1c] sm:$0xf]
    %v698 = vld [vmem:[#allocation2 + $0x20] sm:$0xf]
    %v699 = vld [vmem:[#allocation2 + $0x24] sm:$0xf]
    %v704 = vunpack.c.l.b16 %v696
    %v705 = vunpack.c.l.b16 %v697
    %v706 = vunpack.c.l.b16 %v698
    %v707 = vunpack.c.l.b16 %v699
    %v708 = vpack.c.b16 %v705, %v704
    %v709 = vpack.c.b16 %v707, %v706
    %v715 = vsel %vm222, %v708, 0
    %v718 = vsel %vm222, %v709, 0
    %720 = vmatprep.subr.bf16.mxu0 0
    %721 = vmatpush1.bf16.msra.mxu0 %v93
    %722 = vmatprep.subr.bf16.mxu0 0
    %723 = vmatpush1.bf16.msra.mxu0 %v94
    %724 = vmatprep.subr.bf16.mxu0 0
    %725 = vmatpush1.bf16.msra.mxu0 %v95
    %726 = vmatprep.subr.bf16.mxu0 0
    %727 = vmatpush1.bf16.msra.mxu0 %v96
    %728 = vmatprep.subr.bf16.mxu0 0
    %729 = vmatpush1.bf16.msra.mxu0 0
    %730 = vmatprep.subr.bf16.mxu0 0
    %731 = vmatpush1.bf16.msra.mxu0 0
    %732 = vmatprep.subr.bf16.mxu0 0
    %733 = vmatpush1.bf16.msra.mxu0 0
    %734 = vmatprep.subr.bf16.mxu0 0
    %735 = vmatpush1.bf16.msra.mxu0 0
    %736 = vmatprep.subr.bf16.mxu0 0
    %737 = vmatpush1.bf16.msra.mxu0 0
    %738 = vmatprep.subr.bf16.mxu0 0
    %739 = vmatpush1.bf16.msra.mxu0 0
    %740 = vmatprep.subr.bf16.mxu0 0
    %741 = vmatpush1.bf16.msra.mxu0 0
    %742 = vmatprep.subr.bf16.mxu0 0
    %743 = vmatpush1.bf16.msra.mxu0 0
    %744 = vmatprep.subr.bf16.mxu0 0
    %745 = vmatpush1.bf16.msra.mxu0 0
    %746 = vmatprep.subr.bf16.mxu0 0
    %747 = vmatpush1.bf16.msra.mxu0 0
    %748 = vmatprep.subr.bf16.mxu0 0
    %749 = vmatpush1.bf16.msra.mxu0 0
    %750 = vmatprep.subr.bf16.mxu0 0
    %751 = vmatpush1.bf16.msra.mxu0 0
    %752 = vmatprep.mubr.bf16.mxu0 0
    %753 = vmatmul.mubr.bf16.gmra.mrb[0].mxu0 %v715
    %v754 = vpop.f32.mrb[0].mxu0
    %v755 = vadd.f32 0.0, %v754
    %v756 = vpop.f32.mrb[0].mxu0
    %v757 = vpop.f32.mrb[0].mxu0
    %v758 = vadd.f32 0.0, %v757
    %v759 = vpop.f32.mrb[0].mxu0
    %760 = vmatprep.mubr.bf16.mxu0 0
    %761 = vmatmul.mubr.bf16.gmra.mrb[0].mxu0 %v718
    %v762 = vpop.f32.mrb[0].mxu0
    %v763 = vadd.f32 0.0, %v762
    %v764 = vpop.f32.mrb[0].mxu0
    %v765 = vpop.f32.mrb[0].mxu0
    %v766 = vadd.f32 0.0, %v765
    %v767 = vpop.f32.mrb[0].mxu0
    %768 = vdwg.mxu0
    %v769 = vpack.c.bf16 %v758, %v755
    %v770 = vpack.c.bf16 %v766, %v763
    %v771 = vld [vmem:[#allocation5 + $0xd0] sm:$0xf]
    %v772 = vld [vmem:[#allocation5 + $0xd4] sm:$0xf]
    %v773 = vld [vmem:[#allocation5 + $0xd8] sm:$0xf]
    %v774 = vld [vmem:[#allocation5 + $0xdc] sm:$0xf]
    %v775 = vld [vmem:[#allocation2 + $0x28] sm:$0xf]
    %v776 = vld [vmem:[#allocation2 + $0x2c] sm:$0xf]
    %v777 = vld [vmem:[#allocation2 + $0x30] sm:$0xf]
    %v778 = vld [vmem:[#allocation2 + $0x34] sm:$0xf]
    %v783 = vunpack.c.l.b16 %v775
    %v784 = vunpack.c.l.b16 %v776
    %v785 = vunpack.c.l.b16 %v777
    %v786 = vunpack.c.l.b16 %v778
    %v787 = vpack.c.b16 %v784, %v783
    %v788 = vpack.c.b16 %v786, %v785
    %v790 = vsel %vm222, %v787, 0
    %v793 = vsel %vm222, %v788, 0
    %795 = vmatprep.subr.bf16.mxu0 0
    %796 = vmatpush1.bf16.msra.mxu0 %v93
    %797 = vmatprep.subr.bf16.mxu0 0
    %798 = vmatpush1.bf16.msra.mxu0 %v94
    %799 = vmatprep.subr.bf16.mxu0 0
    %800 = vmatpush1.bf16.msra.mxu0 %v95
    %801 = vmatprep.subr.bf16.mxu0 0
    %802 = vmatpush1.bf16.msra.mxu0 %v96
    %803 = vmatprep.subr.bf16.mxu0 0
    %804 = vmatpush1.bf16.msra.mxu0 0
    %805 = vmatprep.subr.bf16.mxu0 0
    %806 = vmatpush1.bf16.msra.mxu0 0
    %807 = vmatprep.subr.bf16.mxu0 0
    %808 = vmatpush1.bf16.msra.mxu0 0
    %809 = vmatprep.subr.bf16.mxu0 0
    %810 = vmatpush1.bf16.msra.mxu0 0
    %811 = vmatprep.subr.bf16.mxu0 0
    %812 = vmatpush1.bf16.msra.mxu0 0
    %813 = vmatprep.subr.bf16.mxu0 0
    %814 = vmatpush1.bf16.msra.mxu0 0
    %815 = vmatprep.subr.bf16.mxu0 0
    %816 = vmatpush1.bf16.msra.mxu0 0
    %817 = vmatprep.subr.bf16.mxu0 0
    %818 = vmatpush1.bf16.msra.mxu0 0
    %819 = vmatprep.subr.bf16.mxu0 0
    %820 = vmatpush1.bf16.msra.mxu0 0
    %821 = vmatprep.subr.bf16.mxu0 0
    %822 = vmatpush1.bf16.msra.mxu0 0
    %823 = vmatprep.subr.bf16.mxu0 0
    %824 = vmatpush1.bf16.msra.mxu0 0
    %825 = vmatprep.subr.bf16.mxu0 0
    %826 = vmatpush1.bf16.msra.mxu0 0
    %827 = vmatprep.mubr.bf16.mxu0 0
    %828 = vmatmul.mubr.bf16.gmra.mrb[0].mxu0 %v790
    %v829 = vpop.f32.mrb[0].mxu0
    %v830 = vadd.f32 0.0, %v829
    %v831 = vpop.f32.mrb[0].mxu0
    %v832 = vpop.f32.mrb[0].mxu0
    %v833 = vadd.f32 0.0, %v832
    %v834 = vpop.f32.mrb[0].mxu0
    %835 = vmatprep.mubr.bf16.mxu0 0
    %836 = vmatmul.mubr.bf16.gmra.mrb[0].mxu0 %v793
    %v837 = vpop.f32.mrb[0].mxu0
    %v838 = vadd.f32 0.0, %v837
    %v839 = vpop.f32.mrb[0].mxu0
    %v840 = vpop.f32.mrb[0].mxu0
    %v841 = vadd.f32 0.0, %v840
    %v842 = vpop.f32.mrb[0].mxu0
    %843 = vdwg.mxu0
    %v844 = vpack.c.bf16 %v833, %v830
    %v845 = vpack.c.bf16 %v841, %v838
    %v846 = vld [vmem:[#allocation5 + $0xe0] sm:$0xf]
    %v847 = vld [vmem:[#allocation5 + $0xe4] sm:$0xf]
    %v848 = vld [vmem:[#allocation5 + $0xe8] sm:$0xf]
    %v849 = vld [vmem:[#allocation5 + $0xec] sm:$0xf]
    %v854 = vunpack.c.l.b16 %v846
    %v855 = vunpack.c.l.b16 %v847
    %v856 = vunpack.c.l.b16 %v848
    %v857 = vunpack.c.l.b16 %v849
    %v858 = vpack.c.b16 %v855, %v854
    %v859 = vpack.c.b16 %v857, %v856
    %v863 = vsel %vm109, %v844, 0
    %v866 = vsel %vm109, %v845, 0
    %868 = vmatprep.subr.bf16.mxu0 0
    %869 = vmatpush1.bf16.msra.mxu0 %v858
    %870 = vmatprep.subr.bf16.mxu0 0
    %871 = vmatpush1.bf16.msra.mxu0 %v859
    %872 = vmatprep.subr.bf16.mxu0 0
    %873 = vmatpush1.bf16.msra.mxu0 0
    %874 = vmatprep.subr.bf16.mxu0 0
    %875 = vmatpush1.bf16.msra.mxu0 0
    %876 = vmatprep.subr.bf16.mxu0 0
    %877 = vmatpush1.bf16.msra.mxu0 0
    %878 = vmatprep.subr.bf16.mxu0 0
    %879 = vmatpush1.bf16.msra.mxu0 0
    %880 = vmatprep.subr.bf16.mxu0 0
    %881 = vmatpush1.bf16.msra.mxu0 0
    %882 = vmatprep.subr.bf16.mxu0 0
    %883 = vmatpush1.bf16.msra.mxu0 0
    %884 = vmatprep.subr.bf16.mxu0 0
    %885 = vmatpush1.bf16.msra.mxu0 0
    %886 = vmatprep.subr.bf16.mxu0 0
    %887 = vmatpush1.bf16.msra.mxu0 0
    %888 = vmatprep.subr.bf16.mxu0 0
    %889 = vmatpush1.bf16.msra.mxu0 0
    %890 = vmatprep.subr.bf16.mxu0 0
    %891 = vmatpush1.bf16.msra.mxu0 0
    %892 = vmatprep.subr.bf16.mxu0 0
    %893 = vmatpush1.bf16.msra.mxu0 0
    %894 = vmatprep.subr.bf16.mxu0 0
    %895 = vmatpush1.bf16.msra.mxu0 0
    %896 = vmatprep.subr.bf16.mxu0 0
    %897 = vmatpush1.bf16.msra.mxu0 0
    %898 = vmatprep.subr.bf16.mxu0 0
    %899 = vmatpush1.bf16.msra.mxu0 0
    %900 = vmatprep.mubr.bf16.mxu0 0
    %901 = vmatmul.mubr.bf16.gmra.mrb[0].mxu0 %v863
    %v902 = vpop.f32.mrb[0].mxu0
    %v903 = vadd.f32 0.0, %v902
    %v904 = vpop.f32.mrb[0].mxu0
    %v905 = vpop.f32.mrb[0].mxu0
    %v906 = vadd.f32 0.0, %v905
    %v907 = vpop.f32.mrb[0].mxu0
    %908 = vmatprep.mubr.bf16.mxu0 0
    %909 = vmatmul.mubr.bf16.gmra.mrb[0].mxu0 %v866
    %v910 = vpop.f32.mrb[0].mxu0
    %v911 = vadd.f32 0.0, %v910
    %v912 = vpop.f32.mrb[0].mxu0
    %v913 = vpop.f32.mrb[0].mxu0
    %v914 = vadd.f32 0.0, %v913
    %v915 = vpop.f32.mrb[0].mxu0
    %916 = vdwg.mxu0
    %v921 = vunpack.c.l.b16 %v771
    %v922 = vunpack.c.l.b16 %v772
    %v923 = vunpack.c.l.b16 %v773
    %v924 = vunpack.c.l.b16 %v774
    %v925 = vpack.c.b16 %v922, %v921
    %v926 = vpack.c.b16 %v924, %v923
    %v930 = vsel %vm109, %v769, 0
    %v933 = vsel %vm109, %v770, 0
    %935 = vmatprep.subr.bf16.mxu0 0
    %936 = vmatpush1.bf16.msra.mxu0 %v925
    %937 = vmatprep.subr.bf16.mxu0 0
    %938 = vmatpush1.bf16.msra.mxu0 %v926
    %939 = vmatprep.subr.bf16.mxu0 0
    %940 = vmatpush1.bf16.msra.mxu0 0
    %941 = vmatprep.subr.bf16.mxu0 0
    %942 = vmatpush1.bf16.msra.mxu0 0
    %943 = vmatprep.subr.bf16.mxu0 0
    %944 = vmatpush1.bf16.msra.mxu0 0
    %945 = vmatprep.subr.bf16.mxu0 0
    %946 = vmatpush1.bf16.msra.mxu0 0
    %947 = vmatprep.subr.bf16.mxu0 0
    %948 = vmatpush1.bf16.msra.mxu0 0
    %949 = vmatprep.subr.bf16.mxu0 0
    %950 = vmatpush1.bf16.msra.mxu0 0
    %951 = vmatprep.subr.bf16.mxu0 0
    %952 = vmatpush1.bf16.msra.mxu0 0
    %953 = vmatprep.subr.bf16.mxu0 0
    %954 = vmatpush1.bf16.msra.mxu0 0
    %955 = vmatprep.subr.bf16.mxu0 0
    %956 = vmatpush1.bf16.msra.mxu0 0
    %957 = vmatprep.subr.bf16.mxu0 0
    %958 = vmatpush1.bf16.msra.mxu0 0
    %959 = vmatprep.subr.bf16.mxu0 0
    %960 = vmatpush1.bf16.msra.mxu0 0
    %961 = vmatprep.subr.bf16.mxu0 0
    %962 = vmatpush1.bf16.msra.mxu0 0
    %963 = vmatprep.subr.bf16.mxu0 0
    %964 = vmatpush1.bf16.msra.mxu0 0
    %965 = vmatprep.subr.bf16.mxu0 0
    %966 = vmatpush1.bf16.msra.mxu0 0
    %967 = vmatprep.mubr.bf16.mxu0 0
    %968 = vmatmul.mubr.bf16.gmra.mrb[0].mxu0 %v930
    %v969 = vpop.f32.mrb[0].mxu0
    %v970 = vadd.f32 %v903, %v969
    %v971 = vpop.f32.mrb[0].mxu0
    %v972 = vpop.f32.mrb[0].mxu0
    %v973 = vadd.f32 %v906, %v972
    %v974 = vpop.f32.mrb[0].mxu0
    %975 = vmatprep.mubr.bf16.mxu0 0
    %976 = vmatmul.mubr.bf16.gmra.mrb[0].mxu0 %v933
    %v977 = vpop.f32.mrb[0].mxu0
    %v978 = vadd.f32 %v911, %v977
    %v979 = vpop.f32.mrb[0].mxu0
    %v980 = vpop.f32.mrb[0].mxu0
    %v981 = vadd.f32 %v914, %v980
    %v982 = vpop.f32.mrb[0].mxu0
    %983 = vdwg.mxu0
    %v984 = vld [vmem:[#allocation2 + $0x38] sm:$0xf]
    %v985 = vld [vmem:[#allocation2 + $0x3c] sm:$0xf]
    %v986 = vld [vmem:[#allocation2 + $0x40] sm:$0xf]
    %v987 = vld [vmem:[#allocation2 + $0x44] sm:$0xf]
    %v992 = vunpack.c.l.b16 %v984
    %v993 = vunpack.c.l.b16 %v985
    %v994 = vunpack.c.l.b16 %v986
    %v995 = vunpack.c.l.b16 %v987
    %v996 = vpack.c.b16 %v993, %v992
    %v997 = vpack.c.b16 %v995, %v994
    %v999 = vsel %vm222, %v996, 0
    %v1002 = vsel %vm222, %v997, 0
    %1004 = vmatprep.subr.bf16.mxu0 0
    %1005 = vmatpush1.bf16.msra.mxu0 %v93
    %1006 = vmatprep.subr.bf16.mxu0 0
    %1007 = vmatpush1.bf16.msra.mxu0 %v94
    %1008 = vmatprep.subr.bf16.mxu0 0
    %1009 = vmatpush1.bf16.msra.mxu0 %v95
    %1010 = vmatprep.subr.bf16.mxu0 0
    %1011 = vmatpush1.bf16.msra.mxu0 %v96
    %1012 = vmatprep.subr.bf16.mxu0 0
    %1013 = vmatpush1.bf16.msra.mxu0 0
    %1014 = vmatprep.subr.bf16.mxu0 0
    %1015 = vmatpush1.bf16.msra.mxu0 0
    %1016 = vmatprep.subr.bf16.mxu0 0
    %1017 = vmatpush1.bf16.msra.mxu0 0
    %1018 = vmatprep.subr.bf16.mxu0 0
    %1019 = vmatpush1.bf16.msra.mxu0 0
    %1020 = vmatprep.subr.bf16.mxu0 0
    %1021 = vmatpush1.bf16.msra.mxu0 0
    %1022 = vmatprep.subr.bf16.mxu0 0
    %1023 = vmatpush1.bf16.msra.mxu0 0
    %1024 = vmatprep.subr.bf16.mxu0 0
    %1025 = vmatpush1.bf16.msra.mxu0 0
    %1026 = vmatprep.subr.bf16.mxu0 0
    %1027 = vmatpush1.bf16.msra.mxu0 0
    %1028 = vmatprep.subr.bf16.mxu0 0
    %1029 = vmatpush1.bf16.msra.mxu0 0
    %1030 = vmatprep.subr.bf16.mxu0 0
    %1031 = vmatpush1.bf16.msra.mxu0 0
    %1032 = vmatprep.subr.bf16.mxu0 0
    %1033 = vmatpush1.bf16.msra.mxu0 0
    %1034 = vmatprep.subr.bf16.mxu0 0
    %1035 = vmatpush1.bf16.msra.mxu0 0
    %1036 = vmatprep.mubr.bf16.mxu0 0
    %1037 = vmatmul.mubr.bf16.gmra.mrb[0].mxu0 %v999
    %v1038 = vpop.f32.mrb[0].mxu0
    %v1039 = vadd.f32 0.0, %v1038
    %v1040 = vpop.f32.mrb[0].mxu0
    %v1041 = vpop.f32.mrb[0].mxu0
    %v1042 = vadd.f32 0.0, %v1041
    %v1043 = vpop.f32.mrb[0].mxu0
    %1044 = vmatprep.mubr.bf16.mxu0 0
    %1045 = vmatmul.mubr.bf16.gmra.mrb[0].mxu0 %v1002
    %v1046 = vpop.f32.mrb[0].mxu0
    %v1047 = vadd.f32 0.0, %v1046
    %v1048 = vpop.f32.mrb[0].mxu0
    %v1049 = vpop.f32.mrb[0].mxu0
    %v1050 = vadd.f32 0.0, %v1049
    %v1051 = vpop.f32.mrb[0].mxu0
    %1052 = vdwg.mxu0
    %v1053 = vpack.c.bf16 %v1042, %v1039
    %v1054 = vpack.c.bf16 %v1050, %v1047
    %v1055 = vld [vmem:[#allocation5 + $0xf0] sm:$0xf]
    %v1056 = vld [vmem:[#allocation5 + $0xf4] sm:$0xf]
    %v1057 = vld [vmem:[#allocation5 + $0xf8] sm:$0xf]
    %v1058 = vld [vmem:[#allocation5 + $0xfc] sm:$0xf]
    %v1063 = vunpack.c.l.b16 %v1055
    %v1064 = vunpack.c.l.b16 %v1056
    %v1065 = vunpack.c.l.b16 %v1057
    %v1066 = vunpack.c.l.b16 %v1058
    %v1067 = vpack.c.b16 %v1064, %v1063
    %v1068 = vpack.c.b16 %v1066, %v1065
    %v1072 = vsel %vm109, %v1053, 0
    %v1075 = vsel %vm109, %v1054, 0
    %1077 = vmatprep.subr.bf16.mxu0 0
    %1078 = vmatpush1.bf16.msra.mxu0 %v1067
    %1079 = vmatprep.subr.bf16.mxu0 0
    %1080 = vmatpush1.bf16.msra.mxu0 %v1068
    %1081 = vmatprep.subr.bf16.mxu0 0
    %1082 = vmatpush1.bf16.msra.mxu0 0
    %1083 = vmatprep.subr.bf16.mxu0 0
    %1084 = vmatpush1.bf16.msra.mxu0 0
    %1085 = vmatprep.subr.bf16.mxu0 0
    %1086 = vmatpush1.bf16.msra.mxu0 0
    %1087 = vmatprep.subr.bf16.mxu0 0
    %1088 = vmatpush1.bf16.msra.mxu0 0
    %1089 = vmatprep.subr.bf16.mxu0 0
    %1090 = vmatpush1.bf16.msra.mxu0 0
    %1091 = vmatprep.subr.bf16.mxu0 0
    %1092 = vmatpush1.bf16.msra.mxu0 0
    %1093 = vmatprep.subr.bf16.mxu0 0
    %1094 = vmatpush1.bf16.msra.mxu0 0
    %1095 = vmatprep.subr.bf16.mxu0 0
    %1096 = vmatpush1.bf16.msra.mxu0 0
    %1097 = vmatprep.subr.bf16.mxu0 0
    %1098 = vmatpush1.bf16.msra.mxu0 0
    %1099 = vmatprep.subr.bf16.mxu0 0
    %1100 = vmatpush1.bf16.msra.mxu0 0
    %1101 = vmatprep.subr.bf16.mxu0 0
    %1102 = vmatpush1.bf16.msra.mxu0 0
    %1103 = vmatprep.subr.bf16.mxu0 0
    %1104 = vmatpush1.bf16.msra.mxu0 0
    %1105 = vmatprep.subr.bf16.mxu0 0
    %1106 = vmatpush1.bf16.msra.mxu0 0
    %1107 = vmatprep.subr.bf16.mxu0 0
    %1108 = vmatpush1.bf16.msra.mxu0 0
    %1109 = vmatprep.mubr.bf16.mxu0 0
    %1110 = vmatmul.mubr.bf16.gmra.mrb[0].mxu0 %v1072
    %v1111 = vpop.f32.mrb[0].mxu0
    %v1112 = vadd.f32 0.0, %v1111
    %v1113 = vpop.f32.mrb[0].mxu0
    %v1114 = vpop.f32.mrb[0].mxu0
    %v1115 = vadd.f32 0.0, %v1114
    %v1116 = vpop.f32.mrb[0].mxu0
    %1117 = vmatprep.mubr.bf16.mxu0 0
    %1118 = vmatmul.mubr.bf16.gmra.mrb[0].mxu0 %v1075
    %v1119 = vpop.f32.mrb[0].mxu0
    %v1120 = vadd.f32 0.0, %v1119
    %v1121 = vpop.f32.mrb[0].mxu0
    %v1122 = vpop.f32.mrb[0].mxu0
    %v1123 = vadd.f32 0.0, %v1122
    %v1124 = vpop.f32.mrb[0].mxu0
    %1125 = vdwg.mxu0
    %v1126 = vadd.f32 %v970, %v1112
    %v1127 = vadd.f32 %v973, %v1115
    %v1128 = vadd.f32 %v978, %v1120
    %v1129 = vadd.f32 %v981, %v1123
    %v1130 = vld [vmem:[#allocation7 + $0x20] sm:$0x1]
    %v1131 = vlaneseq
    %v1132 = vshrl.u32 %v1131, 7
    %v1133 = vsub.s32 0, %v1132
    %v1134 = vrot.slane %v1130, %v1133
    %v1135 = vadd.f32 %v1126, %v1134
    %v1136 = vadd.f32 %v1127, %v1134
    %v1137 = vadd.f32 %v1128, %v1134
    %v1138 = vadd.f32 %v1129, %v1134
    %vm1139 = vcmp.ge.f32.partialorder %v1135, 0.0
    %vm1140 = vcmp.ge.f32.partialorder %v1136, 0.0
    %vm1141 = vcmp.ge.f32.partialorder %v1137, 0.0
    %vm1142 = vcmp.ge.f32.partialorder %v1138, 0.0
    %v1143 = vmul.f32 %v1135, 0.1
    %v1144 = vmul.f32 %v1136, 0.1
    %v1145 = vmul.f32 %v1137, 0.1
    %v1146 = vmul.f32 %v1138, 0.1
    %v1147 = vsel %vm1139, %v1135, %v1143
    %v1148 = vsel %vm1140, %v1136, %v1144
    %v1149 = vsel %vm1141, %v1137, %v1145
    %v1150 = vsel %vm1142, %v1138, %v1146
    %v1151 = vpack.c.bf16 %v1148, %v1147
    %v1152 = vpack.c.bf16 %v1150, %v1149
    %v1153 = vld [vmem:[#allocation2 + $0x48] sm:$0xf]
    %v1154 = vld [vmem:[#allocation2 + $0x4c] sm:$0xf]
    %v1155 = vld [vmem:[#allocation2 + $0x50] sm:$0xf]
    %v1156 = vld [vmem:[#allocation2 + $0x54] sm:$0xf]
    %v1161 = vunpack.c.l.b16 %v1153
    %v1162 = vunpack.c.l.b16 %v1154
    %v1163 = vunpack.c.l.b16 %v1155
    %v1164 = vunpack.c.l.b16 %v1156
    %v1165 = vpack.c.b16 %v1162, %v1161
    %v1166 = vpack.c.b16 %v1164, %v1163
    %v1168 = vsel %vm109, %v1165, 0
    %v1171 = vsel %vm109, %v1166, 0
    %1173 = vmatprep.subr.bf16.mxu0 0
    %1174 = vmatpush1.bf16.msra.mxu0 %v1151
    %1175 = vmatprep.subr.bf16.mxu0 0
    %1176 = vmatpush1.bf16.msra.mxu0 %v1152
    %1177 = vmatprep.subr.bf16.mxu0 0
    %1178 = vmatpush1.bf16.msra.mxu0 0
    %1179 = vmatprep.subr.bf16.mxu0 0
    %1180 = vmatpush1.bf16.msra.mxu0 0
    %1181 = vmatprep.subr.bf16.mxu0 0
    %1182 = vmatpush1.bf16.msra.mxu0 0
    %1183 = vmatprep.subr.bf16.mxu0 0
    %1184 = vmatpush1.bf16.msra.mxu0 0
    %1185 = vmatprep.subr.bf16.mxu0 0
    %1186 = vmatpush1.bf16.msra.mxu0 0
    %1187 = vmatprep.subr.bf16.mxu0 0
    %1188 = vmatpush1.bf16.msra.mxu0 0
    %1189 = vmatprep.subr.bf16.mxu0 0
    %1190 = vmatpush1.bf16.msra.mxu0 0
    %1191 = vmatprep.subr.bf16.mxu0 0
    %1192 = vmatpush1.bf16.msra.mxu0 0
    %1193 = vmatprep.subr.bf16.mxu0 0
    %1194 = vmatpush1.bf16.msra.mxu0 0
    %1195 = vmatprep.subr.bf16.mxu0 0
    %1196 = vmatpush1.bf16.msra.mxu0 0
    %1197 = vmatprep.subr.bf16.mxu0 0
    %1198 = vmatpush1.bf16.msra.mxu0 0
    %1199 = vmatprep.subr.bf16.mxu0 0
    %1200 = vmatpush1.bf16.msra.mxu0 0
    %1201 = vmatprep.subr.bf16.mxu0 0
    %1202 = vmatpush1.bf16.msra.mxu0 0
    %1203 = vmatprep.subr.bf16.mxu0 0
    %1204 = vmatpush1.bf16.msra.mxu0 0
    %1205 = vmatprep.mubr.bf16.mxu0 0
    %1206 = vmatmul.mubr.bf16.gmra.mrb[0].mxu0 %v1168
    %v1207 = vpop.f32.mrb[0].mxu0
    %v1208 = vadd.f32 0.0, %v1207
    %v1209 = vpop.f32.mrb[0].mxu0
    %v1210 = vpop.f32.mrb[0].mxu0
    %v1211 = vadd.f32 0.0, %v1210
    %v1212 = vpop.f32.mrb[0].mxu0
    %1213 = vmatprep.mubr.bf16.mxu0 0
    %1214 = vmatmul.mubr.bf16.gmra.mrb[0].mxu0 %v1171
    %v1215 = vpop.f32.mrb[0].mxu0
    %v1216 = vadd.f32 0.0, %v1215
    %v1217 = vpop.f32.mrb[0].mxu0
    %v1218 = vpop.f32.mrb[0].mxu0
    %v1219 = vadd.f32 0.0, %v1218
    %v1220 = vpop.f32.mrb[0].mxu0
    %1221 = vdwg.mxu0
    %v1222 = vpack.c.bf16 %v1211, %v1208
    %v1223 = vpack.c.bf16 %v1219, %v1216
    %v1224 = vld [vmem:[#allocation5 + $0x100] sm:$0xf]
    %v1225 = vld [vmem:[#allocation5 + $0x104] sm:$0xf]
    %v1226 = vld [vmem:[#allocation5 + $0x108] sm:$0xf]
    %v1227 = vld [vmem:[#allocation5 + $0x10c] sm:$0xf]
    %v1228 = vld [vmem:[#allocation5 + $0x110] sm:$0xf]
    %v1229 = vld [vmem:[#allocation5 + $0x114] sm:$0xf]
    %v1230 = vld [vmem:[#allocation5 + $0x118] sm:$0xf]
    %v1231 = vld [vmem:[#allocation5 + $0x11c] sm:$0xf]
    %v1232 = vld [vmem:[#allocation5 + $0x120] sm:$0xf]
    %v1233 = vld [vmem:[#allocation5 + $0x124] sm:$0xf]
    %v1234 = vld [vmem:[#allocation5 + $0x128] sm:$0xf]
    %v1235 = vld [vmem:[#allocation5 + $0x12c] sm:$0xf]
    %v1236 = vld [vmem:[#allocation5 + $0x130] sm:$0xf]
    %v1237 = vld [vmem:[#allocation5 + $0x134] sm:$0xf]
    %v1238 = vld [vmem:[#allocation5 + $0x138] sm:$0xf]
    %v1239 = vld [vmem:[#allocation5 + $0x13c] sm:$0xf]
    %v1248 = vunpack.c.l.b16 %v1232
    %v1249 = vunpack.c.l.b16 %v1233
    %v1250 = vunpack.c.l.b16 %v1234
    %v1251 = vunpack.c.l.b16 %v1235
    %v1252 = vunpack.c.l.b16 %v1236
    %v1253 = vunpack.c.l.b16 %v1237
    %v1254 = vunpack.c.l.b16 %v1238
    %v1255 = vunpack.c.l.b16 %v1239
    %v1256 = vpack.c.b16 %v1249, %v1248
    %v1257 = vpack.c.b16 %v1251, %v1250
    %v1258 = vpack.c.b16 %v1253, %v1252
    %v1259 = vpack.c.b16 %v1255, %v1254
    %v1265 = vsel %vm222, %v1151, 0
    %v1268 = vsel %vm222, %v1152, 0
    %1270 = vmatprep.subr.bf16.mxu0 0
    %1271 = vmatpush1.bf16.msra.mxu0 %v1256
    %1272 = vmatprep.subr.bf16.mxu0 0
    %1273 = vmatpush1.bf16.msra.mxu0 %v1257
    %1274 = vmatprep.subr.bf16.mxu0 0
    %1275 = vmatpush1.bf16.msra.mxu0 %v1258
    %1276 = vmatprep.subr.bf16.mxu0 0
    %1277 = vmatpush1.bf16.msra.mxu0 %v1259
    %1278 = vmatprep.subr.bf16.mxu0 0
    %1279 = vmatpush1.bf16.msra.mxu0 0
    %1280 = vmatprep.subr.bf16.mxu0 0
    %1281 = vmatpush1.bf16.msra.mxu0 0
    %1282 = vmatprep.subr.bf16.mxu0 0
    %1283 = vmatpush1.bf16.msra.mxu0 0
    %1284 = vmatprep.subr.bf16.mxu0 0
    %1285 = vmatpush1.bf16.msra.mxu0 0
    %1286 = vmatprep.subr.bf16.mxu0 0
    %1287 = vmatpush1.bf16.msra.mxu0 0
    %1288 = vmatprep.subr.bf16.mxu0 0
    %1289 = vmatpush1.bf16.msra.mxu0 0
    %1290 = vmatprep.subr.bf16.mxu0 0
    %1291 = vmatpush1.bf16.msra.mxu0 0
    %1292 = vmatprep.subr.bf16.mxu0 0
    %1293 = vmatpush1.bf16.msra.mxu0 0
    %1294 = vmatprep.subr.bf16.mxu0 0
    %1295 = vmatpush1.bf16.msra.mxu0 0
    %1296 = vmatprep.subr.bf16.mxu0 0
    %1297 = vmatpush1.bf16.msra.mxu0 0
    %1298 = vmatprep.subr.bf16.mxu0 0
    %1299 = vmatpush1.bf16.msra.mxu0 0
    %1300 = vmatprep.subr.bf16.mxu0 0
    %1301 = vmatpush1.bf16.msra.mxu0 0
    %1302 = vmatprep.mubr.bf16.mxu0 0
    %1303 = vmatmul.mubr.bf16.gmra.mrb[0].mxu0 %v1265
    %v1304 = vpop.f32.mrb[0].mxu0
    %v1305 = vadd.f32 0.0, %v1304
    %v1306 = vpop.f32.mrb[0].mxu0
    %v1307 = vpop.f32.mrb[0].mxu0
    %v1308 = vadd.f32 0.0, %v1307
    %v1309 = vpop.f32.mrb[0].mxu0
    %1310 = vmatprep.mubr.bf16.mxu0 0
    %1311 = vmatmul.mubr.bf16.gmra.mrb[0].mxu0 %v1268
    %v1312 = vpop.f32.mrb[0].mxu0
    %v1313 = vadd.f32 0.0, %v1312
    %v1314 = vpop.f32.mrb[0].mxu0
    %v1315 = vpop.f32.mrb[0].mxu0
    %v1316 = vadd.f32 0.0, %v1315
    %v1317 = vpop.f32.mrb[0].mxu0
    %1318 = vdwg.mxu0
    %v1327 = vunpack.c.l.b16 %v1224
    %v1328 = vunpack.c.l.b16 %v1225
    %v1329 = vunpack.c.l.b16 %v1226
    %v1330 = vunpack.c.l.b16 %v1227
    %v1331 = vunpack.c.l.b16 %v1228
    %v1332 = vunpack.c.l.b16 %v1229
    %v1333 = vunpack.c.l.b16 %v1230
    %v1334 = vunpack.c.l.b16 %v1231
    %v1335 = vpack.c.b16 %v1328, %v1327
    %v1336 = vpack.c.b16 %v1330, %v1329
    %v1337 = vpack.c.b16 %v1332, %v1331
    %v1338 = vpack.c.b16 %v1334, %v1333
    %v1344 = vsel %vm222, %v1222, 0
    %v1347 = vsel %vm222, %v1223, 0
    %1349 = vmatprep.subr.bf16.mxu0 0
    %1350 = vmatpush1.bf16.msra.mxu0 %v1335
    %1351 = vmatprep.subr.bf16.mxu0 0
    %1352 = vmatpush1.bf16.msra.mxu0 %v1336
    %1353 = vmatprep.subr.bf16.mxu0 0
    %1354 = vmatpush1.bf16.msra.mxu0 %v1337
    %1355 = vmatprep.subr.bf16.mxu0 0
    %1356 = vmatpush1.bf16.msra.mxu0 %v1338
    %1357 = vmatprep.subr.bf16.mxu0 0
    %1358 = vmatpush1.bf16.msra.mxu0 0
    %1359 = vmatprep.subr.bf16.mxu0 0
    %1360 = vmatpush1.bf16.msra.mxu0 0
    %1361 = vmatprep.subr.bf16.mxu0 0
    %1362 = vmatpush1.bf16.msra.mxu0 0
    %1363 = vmatprep.subr.bf16.mxu0 0
    %1364 = vmatpush1.bf16.msra.mxu0 0
    %1365 = vmatprep.subr.bf16.mxu0 0
    %1366 = vmatpush1.bf16.msra.mxu0 0
    %1367 = vmatprep.subr.bf16.mxu0 0
    %1368 = vmatpush1.bf16.msra.mxu0 0
    %1369 = vmatprep.subr.bf16.mxu0 0
    %1370 = vmatpush1.bf16.msra.mxu0 0
    %1371 = vmatprep.subr.bf16.mxu0 0
    %1372 = vmatpush1.bf16.msra.mxu0 0
    %1373 = vmatprep.subr.bf16.mxu0 0
    %1374 = vmatpush1.bf16.msra.mxu0 0
    %1375 = vmatprep.subr.bf16.mxu0 0
    %1376 = vmatpush1.bf16.msra.mxu0 0
    %1377 = vmatprep.subr.bf16.mxu0 0
    %1378 = vmatpush1.bf16.msra.mxu0 0
    %1379 = vmatprep.subr.bf16.mxu0 0
    %1380 = vmatpush1.bf16.msra.mxu0 0
    %1381 = vmatprep.mubr.bf16.mxu0 0
    %1382 = vmatmul.mubr.bf16.gmra.mrb[0].mxu0 %v1344
    %v1383 = vpop.f32.mrb[0].mxu0
    %v1384 = vadd.f32 %v1305, %v1383
    %v1385 = vpop.f32.mrb[0].mxu0
    %v1386 = vpop.f32.mrb[0].mxu0
    %v1387 = vadd.f32 %v1308, %v1386
    %v1388 = vpop.f32.mrb[0].mxu0
    %1389 = vmatprep.mubr.bf16.mxu0 0
    %1390 = vmatmul.mubr.bf16.gmra.mrb[0].mxu0 %v1347
    %v1391 = vpop.f32.mrb[0].mxu0
    %v1392 = vadd.f32 %v1313, %v1391
    %v1393 = vpop.f32.mrb[0].mxu0
    %v1394 = vpop.f32.mrb[0].mxu0
    %v1395 = vadd.f32 %v1316, %v1394
    %v1396 = vpop.f32.mrb[0].mxu0
    %1397 = vdwg.mxu0
    %v1398 = vld [vmem:[#allocation2 + $0x58] sm:$0xf]
    %v1399 = vld [vmem:[#allocation2 + $0x5c] sm:$0xf]
    %v1400 = vld [vmem:[#allocation2 + $0x60] sm:$0xf]
    %v1401 = vld [vmem:[#allocation2 + $0x64] sm:$0xf]
    %v1406 = vunpack.c.l.b16 %v1398
    %v1407 = vunpack.c.l.b16 %v1399
    %v1408 = vunpack.c.l.b16 %v1400
    %v1409 = vunpack.c.l.b16 %v1401
    %v1410 = vpack.c.b16 %v1407, %v1406
    %v1411 = vpack.c.b16 %v1409, %v1408
    %v1413 = vsel %vm109, %v1410, 0
    %v1416 = vsel %vm109, %v1411, 0
    %1418 = vmatprep.subr.bf16.mxu0 0
    %1419 = vmatpush1.bf16.msra.mxu0 %v1151
    %1420 = vmatprep.subr.bf16.mxu0 0
    %1421 = vmatpush1.bf16.msra.mxu0 %v1152
    %1422 = vmatprep.subr.bf16.mxu0 0
    %1423 = vmatpush1.bf16.msra.mxu0 0
    %1424 = vmatprep.subr.bf16.mxu0 0
    %1425 = vmatpush1.bf16.msra.mxu0 0
    %1426 = vmatprep.subr.bf16.mxu0 0
    %1427 = vmatpush1.bf16.msra.mxu0 0
    %1428 = vmatprep.subr.bf16.mxu0 0
    %1429 = vmatpush1.bf16.msra.mxu0 0
    %1430 = vmatprep.subr.bf16.mxu0 0
    %1431 = vmatpush1.bf16.msra.mxu0 0
    %1432 = vmatprep.subr.bf16.mxu0 0
    %1433 = vmatpush1.bf16.msra.mxu0 0
    %1434 = vmatprep.subr.bf16.mxu0 0
    %1435 = vmatpush1.bf16.msra.mxu0 0
    %1436 = vmatprep.subr.bf16.mxu0 0
    %1437 = vmatpush1.bf16.msra.mxu0 0
    %1438 = vmatprep.subr.bf16.mxu0 0
    %1439 = vmatpush1.bf16.msra.mxu0 0
    %1440 = vmatprep.subr.bf16.mxu0 0
    %1441 = vmatpush1.bf16.msra.mxu0 0
    %1442 = vmatprep.subr.bf16.mxu0 0
    %1443 = vmatpush1.bf16.msra.mxu0 0
    %1444 = vmatprep.subr.bf16.mxu0 0
    %1445 = vmatpush1.bf16.msra.mxu0 0
    %1446 = vmatprep.subr.bf16.mxu0 0
    %1447 = vmatpush1.bf16.msra.mxu0 0
    %1448 = vmatprep.subr.bf16.mxu0 0
    %1449 = vmatpush1.bf16.msra.mxu0 0
    %1450 = vmatprep.mubr.bf16.mxu0 0
    %1451 = vmatmul.mubr.bf16.gmra.mrb[0].mxu0 %v1413
    %v1452 = vpop.f32.mrb[0].mxu0
    %v1453 = vadd.f32 0.0, %v1452
    %v1454 = vpop.f32.mrb[0].mxu0
    %v1455 = vpop.f32.mrb[0].mxu0
    %v1456 = vadd.f32 0.0, %v1455
    %v1457 = vpop.f32.mrb[0].mxu0
    %1458 = vmatprep.mubr.bf16.mxu0 0
    %1459 = vmatmul.mubr.bf16.gmra.mrb[0].mxu0 %v1416
    %v1460 = vpop.f32.mrb[0].mxu0
    %v1461 = vadd.f32 0.0, %v1460
    %v1462 = vpop.f32.mrb[0].mxu0
    %v1463 = vpop.f32.mrb[0].mxu0
    %v1464 = vadd.f32 0.0, %v1463
    %v1465 = vpop.f32.mrb[0].mxu0
    %1466 = vdwg.mxu0
    %v1467 = vpack.c.bf16 %v1456, %v1453
    %v1468 = vpack.c.bf16 %v1464, %v1461
    %v1469 = vld [vmem:[#allocation5 + $0x140] sm:$0xf]
    %v1470 = vld [vmem:[#allocation5 + $0x144] sm:$0xf]
    %v1471 = vld [vmem:[#allocation5 + $0x148] sm:$0xf]
    %v1472 = vld [vmem:[#allocation5 + $0x14c] sm:$0xf]
    %v1473 = vld [vmem:[#allocation5 + $0x150] sm:$0xf]
    %v1474 = vld [vmem:[#allocation5 + $0x154] sm:$0xf]
    %v1475 = vld [vmem:[#allocation5 + $0x158] sm:$0xf]
    %v1476 = vld [vmem:[#allocation5 + $0x15c] sm:$0xf]
    %v1485 = vunpack.c.l.b16 %v1469
    %v1486 = vunpack.c.l.b16 %v1470
    %v1487 = vunpack.c.l.b16 %v1471
    %v1488 = vunpack.c.l.b16 %v1472
    %v1489 = vunpack.c.l.b16 %v1473
    %v1490 = vunpack.c.l.b16 %v1474
    %v1491 = vunpack.c.l.b16 %v1475
    %v1492 = vunpack.c.l.b16 %v1476
    %v1493 = vpack.c.b16 %v1486, %v1485
    %v1494 = vpack.c.b16 %v1488, %v1487
    %v1495 = vpack.c.b16 %v1490, %v1489
    %v1496 = vpack.c.b16 %v1492, %v1491
    %v1502 = vsel %vm222, %v1467, 0
    %v1505 = vsel %vm222, %v1468, 0
    %1507 = vmatprep.subr.bf16.mxu0 0
    %1508 = vmatpush1.bf16.msra.mxu0 %v1493
    %1509 = vmatprep.subr.bf16.mxu0 0
    %1510 = vmatpush1.bf16.msra.mxu0 %v1494
    %1511 = vmatprep.subr.bf16.mxu0 0
    %1512 = vmatpush1.bf16.msra.mxu0 %v1495
    %1513 = vmatprep.subr.bf16.mxu0 0
    %1514 = vmatpush1.bf16.msra.mxu0 %v1496
    %1515 = vmatprep.subr.bf16.mxu0 0
    %1516 = vmatpush1.bf16.msra.mxu0 0
    %1517 = vmatprep.subr.bf16.mxu0 0
    %1518 = vmatpush1.bf16.msra.mxu0 0
    %1519 = vmatprep.subr.bf16.mxu0 0
    %1520 = vmatpush1.bf16.msra.mxu0 0
    %1521 = vmatprep.subr.bf16.mxu0 0
    %1522 = vmatpush1.bf16.msra.mxu0 0
    %1523 = vmatprep.subr.bf16.mxu0 0
    %1524 = vmatpush1.bf16.msra.mxu0 0
    %1525 = vmatprep.subr.bf16.mxu0 0
    %1526 = vmatpush1.bf16.msra.mxu0 0
    %1527 = vmatprep.subr.bf16.mxu0 0
    %1528 = vmatpush1.bf16.msra.mxu0 0
    %1529 = vmatprep.subr.bf16.mxu0 0
    %1530 = vmatpush1.bf16.msra.mxu0 0
    %1531 = vmatprep.subr.bf16.mxu0 0
    %1532 = vmatpush1.bf16.msra.mxu0 0
    %1533 = vmatprep.subr.bf16.mxu0 0
    %1534 = vmatpush1.bf16.msra.mxu0 0
    %1535 = vmatprep.subr.bf16.mxu0 0
    %1536 = vmatpush1.bf16.msra.mxu0 0
    %1537 = vmatprep.subr.bf16.mxu0 0
    %1538 = vmatpush1.bf16.msra.mxu0 0
    %1539 = vmatprep.mubr.bf16.mxu0 0
    %1540 = vmatmul.mubr.bf16.gmra.mrb[0].mxu0 %v1502
    %v1541 = vpop.f32.mrb[0].mxu0
    %v1542 = vadd.f32 0.0, %v1541
    %v1543 = vpop.f32.mrb[0].mxu0
    %v1544 = vpop.f32.mrb[0].mxu0
    %v1545 = vadd.f32 0.0, %v1544
    %v1546 = vpop.f32.mrb[0].mxu0
    %1547 = vmatprep.mubr.bf16.mxu0 0
    %1548 = vmatmul.mubr.bf16.gmra.mrb[0].mxu0 %v1505
    %v1549 = vpop.f32.mrb[0].mxu0
    %v1550 = vadd.f32 0.0, %v1549
    %v1551 = vpop.f32.mrb[0].mxu0
    %v1552 = vpop.f32.mrb[0].mxu0
    %v1553 = vadd.f32 0.0, %v1552
    %v1554 = vpop.f32.mrb[0].mxu0
    %1555 = vdwg.mxu0
    %v1556 = vadd.f32 %v1384, %v1542
    %v1557 = vadd.f32 %v1387, %v1545
    %v1558 = vadd.f32 %v1392, %v1550
    %v1559 = vadd.f32 %v1395, %v1553
    %v1560 = vld [vmem:[#allocation7 + $0x30] sm:$0x1]
    %v1561 = vlaneseq
    %v1562 = vshrl.u32 %v1561, 7
    %v1563 = vsub.s32 0, %v1562
    %v1564 = vrot.slane %v1560, %v1563
    %v1565 = vadd.f32 %v1556, %v1564
    %v1566 = vadd.f32 %v1557, %v1564
    %v1567 = vadd.f32 %v1558, %v1564
    %v1568 = vadd.f32 %v1559, %v1564
    %vm1569 = vcmp.ge.f32.partialorder %v1565, 0.0
    %vm1570 = vcmp.ge.f32.partialorder %v1566, 0.0
    %vm1571 = vcmp.ge.f32.partialorder %v1567, 0.0
    %vm1572 = vcmp.ge.f32.partialorder %v1568, 0.0
    %v1573 = vmul.f32 %v1565, 0.1
    %v1574 = vmul.f32 %v1566, 0.1
    %v1575 = vmul.f32 %v1567, 0.1
    %v1576 = vmul.f32 %v1568, 0.1
    %v1577 = vsel %vm1569, %v1565, %v1573
    %v1578 = vsel %vm1570, %v1566, %v1574
    %v1579 = vsel %vm1571, %v1567, %v1575
    %v1580 = vsel %vm1572, %v1568, %v1576
    %v1581 = vpack.c.bf16 %v1578, %v1577
    %v1582 = vpack.c.bf16 %v1580, %v1579
    %v1583 = vld [vmem:[#allocation2 + $0x68] sm:$0xf]
    %v1584 = vld [vmem:[#allocation2 + $0x6c] sm:$0xf]
    %v1587 = vunpack.c.l.b16 %v1583
    %v1588 = vunpack.c.l.b16 %v1584
    %v1589 = vpack.c.b16 %v1588, %v1587
    %v1591 = vsel %vm109, %v1589, 0
    %1593 = vmatprep.subr.bf16.mxu0 0
    %1594 = vmatpush1.bf16.msra.mxu0 %v1581
    %1595 = vmatprep.subr.bf16.mxu0 0
    %1596 = vmatpush1.bf16.msra.mxu0 %v1582
    %1597 = vmatprep.subr.bf16.mxu0 0
    %1598 = vmatpush1.bf16.msra.mxu0 0
    %1599 = vmatprep.subr.bf16.mxu0 0
    %1600 = vmatpush1.bf16.msra.mxu0 0
    %1601 = vmatprep.subr.bf16.mxu0 0
    %1602 = vmatpush1.bf16.msra.mxu0 0
    %1603 = vmatprep.subr.bf16.mxu0 0
    %1604 = vmatpush1.bf16.msra.mxu0 0
    %1605 = vmatprep.subr.bf16.mxu0 0
    %1606 = vmatpush1.bf16.msra.mxu0 0
    %1607 = vmatprep.subr.bf16.mxu0 0
    %1608 = vmatpush1.bf16.msra.mxu0 0
    %1609 = vmatprep.subr.bf16.mxu0 0
    %1610 = vmatpush1.bf16.msra.mxu0 0
    %1611 = vmatprep.subr.bf16.mxu0 0
    %1612 = vmatpush1.bf16.msra.mxu0 0
    %1613 = vmatprep.subr.bf16.mxu0 0
    %1614 = vmatpush1.bf16.msra.mxu0 0
    %1615 = vmatprep.subr.bf16.mxu0 0
    %1616 = vmatpush1.bf16.msra.mxu0 0
    %1617 = vmatprep.subr.bf16.mxu0 0
    %1618 = vmatpush1.bf16.msra.mxu0 0
    %1619 = vmatprep.subr.bf16.mxu0 0
    %1620 = vmatpush1.bf16.msra.mxu0 0
    %1621 = vmatprep.subr.bf16.mxu0 0
    %1622 = vmatpush1.bf16.msra.mxu0 0
    %1623 = vmatprep.subr.bf16.mxu0 0
    %1624 = vmatpush1.bf16.msra.mxu0 0
    %1625 = vmatprep.mubr.bf16.mxu0 0
    %1626 = vmatmul.mubr.bf16.gmra.mrb[0].mxu0 %v1591
    %v1627 = vpop.f32.mrb[0].mxu0
    %v1628 = vadd.f32 0.0, %v1627
    %v1629 = vpop.f32.mrb[0].mxu0
    %v1630 = vpop.f32.mrb[0].mxu0
    %v1631 = vadd.f32 0.0, %v1630
    %v1632 = vpop.f32.mrb[0].mxu0
    %1633 = vdwg.mxu0
    %v1634 = vpack.c.bf16 %v1631, %v1628
    %v1635 = vld [vmem:[#allocation5 + $0x160] sm:$0xf]
    %v1636 = vld [vmem:[#allocation5 + $0x164] sm:$0xf]
    %v1637 = vld [vmem:[#allocation5 + $0x168] sm:$0xf]
    %v1638 = vld [vmem:[#allocation5 + $0x16c] sm:$0xf]
    %v1639 = vld [vmem:[#allocation5 + $0x170] sm:$0xf]
    %v1640 = vld [vmem:[#allocation5 + $0x174] sm:$0xf]
    %v1641 = vld [vmem:[#allocation5 + $0x178] sm:$0xf]
    %v1642 = vld [vmem:[#allocation5 + $0x17c] sm:$0xf]
    %v1643 = vld [vmem:[#allocation2 + $0x70] sm:$0xf]
    %v1644 = vld [vmem:[#allocation2 + $0x74] sm:$0xf]
    %v1647 = vunpack.c.l.b16 %v1643
    %v1648 = vunpack.c.l.b16 %v1644
    %v1649 = vpack.c.b16 %v1648, %v1647
    %v1651 = vsel %vm109, %v1649, 0
    %1653 = vmatprep.subr.bf16.mxu0 0
    %1654 = vmatpush1.bf16.msra.mxu0 %v1581
    %1655 = vmatprep.subr.bf16.mxu0 0
    %1656 = vmatpush1.bf16.msra.mxu0 %v1582
    %1657 = vmatprep.subr.bf16.mxu0 0
    %1658 = vmatpush1.bf16.msra.mxu0 0
    %1659 = vmatprep.subr.bf16.mxu0 0
    %1660 = vmatpush1.bf16.msra.mxu0 0
    %1661 = vmatprep.subr.bf16.mxu0 0
    %1662 = vmatpush1.bf16.msra.mxu0 0
    %1663 = vmatprep.subr.bf16.mxu0 0
    %1664 = vmatpush1.bf16.msra.mxu0 0
    %1665 = vmatprep.subr.bf16.mxu0 0
    %1666 = vmatpush1.bf16.msra.mxu0 0
    %1667 = vmatprep.subr.bf16.mxu0 0
    %1668 = vmatpush1.bf16.msra.mxu0 0
    %1669 = vmatprep.subr.bf16.mxu0 0
    %1670 = vmatpush1.bf16.msra.mxu0 0
    %1671 = vmatprep.subr.bf16.mxu0 0
    %1672 = vmatpush1.bf16.msra.mxu0 0
    %1673 = vmatprep.subr.bf16.mxu0 0
    %1674 = vmatpush1.bf16.msra.mxu0 0
    %1675 = vmatprep.subr.bf16.mxu0 0
    %1676 = vmatpush1.bf16.msra.mxu0 0
    %1677 = vmatprep.subr.bf16.mxu0 0
    %1678 = vmatpush1.bf16.msra.mxu0 0
    %1679 = vmatprep.subr.bf16.mxu0 0
    %1680 = vmatpush1.bf16.msra.mxu0 0
    %1681 = vmatprep.subr.bf16.mxu0 0
    %1682 = vmatpush1.bf16.msra.mxu0 0
    %1683 = vmatprep.subr.bf16.mxu0 0
    %1684 = vmatpush1.bf16.msra.mxu0 0
    %1685 = vmatprep.mubr.bf16.mxu0 0
    %1686 = vmatmul.mubr.bf16.gmra.mrb[0].mxu0 %v1651
    %v1687 = vpop.f32.mrb[0].mxu0
    %v1688 = vadd.f32 0.0, %v1687
    %v1689 = vpop.f32.mrb[0].mxu0
    %v1690 = vpop.f32.mrb[0].mxu0
    %v1691 = vadd.f32 0.0, %v1690
    %v1692 = vpop.f32.mrb[0].mxu0
    %1693 = vdwg.mxu0
    %v1694 = vpack.c.bf16 %v1691, %v1688
    %v1695 = vld [vmem:[#allocation5 + $0x180] sm:$0xf]
    %v1696 = vld [vmem:[#allocation5 + $0x184] sm:$0xf]
    %v1697 = vld [vmem:[#allocation5 + $0x188] sm:$0xf]
    %v1698 = vld [vmem:[#allocation5 + $0x18c] sm:$0xf]
    %v1699 = vld [vmem:[#allocation5 + $0x190] sm:$0xf]
    %v1700 = vld [vmem:[#allocation5 + $0x194] sm:$0xf]
    %v1701 = vld [vmem:[#allocation5 + $0x198] sm:$0xf]
    %v1702 = vld [vmem:[#allocation5 + $0x19c] sm:$0xf]
    %v1711 = vunpack.c.l.b16 %v1695
    %v1712 = vunpack.c.l.b16 %v1696
    %v1713 = vunpack.c.l.b16 %v1697
    %v1714 = vunpack.c.l.b16 %v1698
    %v1715 = vunpack.c.l.b16 %v1699
    %v1716 = vunpack.c.l.b16 %v1700
    %v1717 = vunpack.c.l.b16 %v1701
    %v1718 = vunpack.c.l.b16 %v1702
    %v1719 = vpack.c.b16 %v1712, %v1711
    %v1720 = vpack.c.b16 %v1714, %v1713
    %v1721 = vpack.c.b16 %v1716, %v1715
    %v1722 = vpack.c.b16 %v1718, %v1717
    %v1728 = vsel %vm222, %v1694, 0
    %1730 = vmatprep.subr.bf16.mxu0 0
    %1731 = vmatpush1.bf16.msra.mxu0 %v1719
    %1732 = vmatprep.subr.bf16.mxu0 0
    %1733 = vmatpush1.bf16.msra.mxu0 %v1720
    %1734 = vmatprep.subr.bf16.mxu0 0
    %1735 = vmatpush1.bf16.msra.mxu0 %v1721
    %1736 = vmatprep.subr.bf16.mxu0 0
    %1737 = vmatpush1.bf16.msra.mxu0 %v1722
    %1738 = vmatprep.subr.bf16.mxu0 0
    %1739 = vmatpush1.bf16.msra.mxu0 0
    %1740 = vmatprep.subr.bf16.mxu0 0
    %1741 = vmatpush1.bf16.msra.mxu0 0
    %1742 = vmatprep.subr.bf16.mxu0 0
    %1743 = vmatpush1.bf16.msra.mxu0 0
    %1744 = vmatprep.subr.bf16.mxu0 0
    %1745 = vmatpush1.bf16.msra.mxu0 0
    %1746 = vmatprep.subr.bf16.mxu0 0
    %1747 = vmatpush1.bf16.msra.mxu0 0
    %1748 = vmatprep.subr.bf16.mxu0 0
    %1749 = vmatpush1.bf16.msra.mxu0 0
    %1750 = vmatprep.subr.bf16.mxu0 0
    %1751 = vmatpush1.bf16.msra.mxu0 0
    %1752 = vmatprep.subr.bf16.mxu0 0
    %1753 = vmatpush1.bf16.msra.mxu0 0
    %1754 = vmatprep.subr.bf16.mxu0 0
    %1755 = vmatpush1.bf16.msra.mxu0 0
    %1756 = vmatprep.subr.bf16.mxu0 0
    %1757 = vmatpush1.bf16.msra.mxu0 0
    %1758 = vmatprep.subr.bf16.mxu0 0
    %1759 = vmatpush1.bf16.msra.mxu0 0
    %1760 = vmatprep.subr.bf16.mxu0 0
    %1761 = vmatpush1.bf16.msra.mxu0 0
    %1762 = vmatprep.mubr.bf16.mxu0 0
    %1763 = vmatmul.mubr.bf16.gmra.mrb[0].mxu0 %v1728
    %v1764 = vpop.f32.mrb[0].mxu0
    %v1765 = vadd.f32 0.0, %v1764
    %v1766 = vpop.f32.mrb[0].mxu0
    %v1767 = vpop.f32.mrb[0].mxu0
    %v1768 = vadd.f32 0.0, %v1767
    %v1769 = vpop.f32.mrb[0].mxu0
    %1770 = vdwg.mxu0
    %v1779 = vunpack.c.l.b16 %v1635
    %v1780 = vunpack.c.l.b16 %v1636
    %v1781 = vunpack.c.l.b16 %v1637
    %v1782 = vunpack.c.l.b16 %v1638
    %v1783 = vunpack.c.l.b16 %v1639
    %v1784 = vunpack.c.l.b16 %v1640
    %v1785 = vunpack.c.l.b16 %v1641
    %v1786 = vunpack.c.l.b16 %v1642
    %v1787 = vpack.c.b16 %v1780, %v1779
    %v1788 = vpack.c.b16 %v1782, %v1781
    %v1789 = vpack.c.b16 %v1784, %v1783
    %v1790 = vpack.c.b16 %v1786, %v1785
    %v1796 = vsel %vm222, %v1634, 0
    %1798 = vmatprep.subr.bf16.mxu0 0
    %1799 = vmatpush1.bf16.msra.mxu0 %v1787
    %1800 = vmatprep.subr.bf16.mxu0 0
    %1801 = vmatpush1.bf16.msra.mxu0 %v1788
    %1802 = vmatprep.subr.bf16.mxu0 0
    %1803 = vmatpush1.bf16.msra.mxu0 %v1789
    %1804 = vmatprep.subr.bf16.mxu0 0
    %1805 = vmatpush1.bf16.msra.mxu0 %v1790
    %1806 = vmatprep.subr.bf16.mxu0 0
    %1807 = vmatpush1.bf16.msra.mxu0 0
    %1808 = vmatprep.subr.bf16.mxu0 0
    %1809 = vmatpush1.bf16.msra.mxu0 0
    %1810 = vmatprep.subr.bf16.mxu0 0
    %1811 = vmatpush1.bf16.msra.mxu0 0
    %1812 = vmatprep.subr.bf16.mxu0 0
    %1813 = vmatpush1.bf16.msra.mxu0 0
    %1814 = vmatprep.subr.bf16.mxu0 0
    %1815 = vmatpush1.bf16.msra.mxu0 0
    %1816 = vmatprep.subr.bf16.mxu0 0
    %1817 = vmatpush1.bf16.msra.mxu0 0
    %1818 = vmatprep.subr.bf16.mxu0 0
    %1819 = vmatpush1.bf16.msra.mxu0 0
    %1820 = vmatprep.subr.bf16.mxu0 0
    %1821 = vmatpush1.bf16.msra.mxu0 0
    %1822 = vmatprep.subr.bf16.mxu0 0
    %1823 = vmatpush1.bf16.msra.mxu0 0
    %1824 = vmatprep.subr.bf16.mxu0 0
    %1825 = vmatpush1.bf16.msra.mxu0 0
    %1826 = vmatprep.subr.bf16.mxu0 0
    %1827 = vmatpush1.bf16.msra.mxu0 0
    %1828 = vmatprep.subr.bf16.mxu0 0
    %1829 = vmatpush1.bf16.msra.mxu0 0
    %1830 = vmatprep.mubr.bf16.mxu0 0
    %1831 = vmatmul.mubr.bf16.gmra.mrb[0].mxu0 %v1796
    %v1832 = vpop.f32.mrb[0].mxu0
    %v1833 = vadd.f32 %v1765, %v1832
    %v1834 = vpop.f32.mrb[0].mxu0
    %v1835 = vpop.f32.mrb[0].mxu0
    %v1836 = vadd.f32 %v1768, %v1835
    %v1837 = vpop.f32.mrb[0].mxu0
    %1838 = vdwg.mxu0
    %v1839 = vld [vmem:[#allocation2 + $0x78] sm:$0xf]
    %v1840 = vld [vmem:[#allocation2 + $0x7c] sm:$0xf]
    %v1843 = vunpack.c.l.b16 %v1839
    %v1844 = vunpack.c.l.b16 %v1840
    %v1845 = vpack.c.b16 %v1844, %v1843
    %v1847 = vsel %vm109, %v1845, 0
    %1849 = vmatprep.subr.bf16.mxu0 0
    %1850 = vmatpush1.bf16.msra.mxu0 %v1581
    %1851 = vmatprep.subr.bf16.mxu0 0
    %1852 = vmatpush1.bf16.msra.mxu0 %v1582
    %1853 = vmatprep.subr.bf16.mxu0 0
    %1854 = vmatpush1.bf16.msra.mxu0 0
    %1855 = vmatprep.subr.bf16.mxu0 0
    %1856 = vmatpush1.bf16.msra.mxu0 0
    %1857 = vmatprep.subr.bf16.mxu0 0
    %1858 = vmatpush1.bf16.msra.mxu0 0
    %1859 = vmatprep.subr.bf16.mxu0 0
    %1860 = vmatpush1.bf16.msra.mxu0 0
    %1861 = vmatprep.subr.bf16.mxu0 0
    %1862 = vmatpush1.bf16.msra.mxu0 0
    %1863 = vmatprep.subr.bf16.mxu0 0
    %1864 = vmatpush1.bf16.msra.mxu0 0
    %1865 = vmatprep.subr.bf16.mxu0 0
    %1866 = vmatpush1.bf16.msra.mxu0 0
    %1867 = vmatprep.subr.bf16.mxu0 0
    %1868 = vmatpush1.bf16.msra.mxu0 0
    %1869 = vmatprep.subr.bf16.mxu0 0
    %1870 = vmatpush1.bf16.msra.mxu0 0
    %1871 = vmatprep.subr.bf16.mxu0 0
    %1872 = vmatpush1.bf16.msra.mxu0 0
    %1873 = vmatprep.subr.bf16.mxu0 0
    %1874 = vmatpush1.bf16.msra.mxu0 0
    %1875 = vmatprep.subr.bf16.mxu0 0
    %1876 = vmatpush1.bf16.msra.mxu0 0
    %1877 = vmatprep.subr.bf16.mxu0 0
    %1878 = vmatpush1.bf16.msra.mxu0 0
    %1879 = vmatprep.subr.bf16.mxu0 0
    %1880 = vmatpush1.bf16.msra.mxu0 0
    %1881 = vmatprep.mubr.bf16.mxu0 0
    %1882 = vmatmul.mubr.bf16.gmra.mrb[0].mxu0 %v1847
    %v1883 = vpop.f32.mrb[0].mxu0
    %v1884 = vadd.f32 0.0, %v1883
    %v1885 = vpop.f32.mrb[0].mxu0
    %v1886 = vpop.f32.mrb[0].mxu0
    %v1887 = vadd.f32 0.0, %v1886
    %v1888 = vpop.f32.mrb[0].mxu0
    %1889 = vdwg.mxu0
    %v1890 = vpack.c.bf16 %v1887, %v1884
    %v1891 = vld [vmem:[#allocation5 + $0x1a0] sm:$0xf]
    %v1892 = vld [vmem:[#allocation5 + $0x1a4] sm:$0xf]
    %v1893 = vld [vmem:[#allocation5 + $0x1a8] sm:$0xf]
    %v1894 = vld [vmem:[#allocation5 + $0x1ac] sm:$0xf]
    %v1895 = vld [vmem:[#allocation5 + $0x1b0] sm:$0xf]
    %v1896 = vld [vmem:[#allocation5 + $0x1b4] sm:$0xf]
    %v1897 = vld [vmem:[#allocation5 + $0x1b8] sm:$0xf]
    %v1898 = vld [vmem:[#allocation5 + $0x1bc] sm:$0xf]
    %v1907 = vunpack.c.l.b16 %v1891
    %v1908 = vunpack.c.l.b16 %v1892
    %v1909 = vunpack.c.l.b16 %v1893
    %v1910 = vunpack.c.l.b16 %v1894
    %v1911 = vunpack.c.l.b16 %v1895
    %v1912 = vunpack.c.l.b16 %v1896
    %v1913 = vunpack.c.l.b16 %v1897
    %v1914 = vunpack.c.l.b16 %v1898
    %v1915 = vpack.c.b16 %v1908, %v1907
    %v1916 = vpack.c.b16 %v1910, %v1909
    %v1917 = vpack.c.b16 %v1912, %v1911
    %v1918 = vpack.c.b16 %v1914, %v1913
    %v1924 = vsel %vm222, %v1890, 0
    %1926 = vmatprep.subr.bf16.mxu0 0
    %1927 = vmatpush1.bf16.msra.mxu0 %v1915
    %1928 = vmatprep.subr.bf16.mxu0 0
    %1929 = vmatpush1.bf16.msra.mxu0 %v1916
    %1930 = vmatprep.subr.bf16.mxu0 0
    %1931 = vmatpush1.bf16.msra.mxu0 %v1917
    %1932 = vmatprep.subr.bf16.mxu0 0
    %1933 = vmatpush1.bf16.msra.mxu0 %v1918
    %1934 = vmatprep.subr.bf16.mxu0 0
    %1935 = vmatpush1.bf16.msra.mxu0 0
    %1936 = vmatprep.subr.bf16.mxu0 0
    %1937 = vmatpush1.bf16.msra.mxu0 0
    %1938 = vmatprep.subr.bf16.mxu0 0
    %1939 = vmatpush1.bf16.msra.mxu0 0
    %1940 = vmatprep.subr.bf16.mxu0 0
    %1941 = vmatpush1.bf16.msra.mxu0 0
    %1942 = vmatprep.subr.bf16.mxu0 0
    %1943 = vmatpush1.bf16.msra.mxu0 0
    %1944 = vmatprep.subr.bf16.mxu0 0
    %1945 = vmatpush1.bf16.msra.mxu0 0
    %1946 = vmatprep.subr.bf16.mxu0 0
    %1947 = vmatpush1.bf16.msra.mxu0 0
    %1948 = vmatprep.subr.bf16.mxu0 0
    %1949 = vmatpush1.bf16.msra.mxu0 0
    %1950 = vmatprep.subr.bf16.mxu0 0
    %1951 = vmatpush1.bf16.msra.mxu0 0
    %1952 = vmatprep.subr.bf16.mxu0 0
    %1953 = vmatpush1.bf16.msra.mxu0 0
    %1954 = vmatprep.subr.bf16.mxu0 0
    %1955 = vmatpush1.bf16.msra.mxu0 0
    %1956 = vmatprep.subr.bf16.mxu0 0
    %1957 = vmatpush1.bf16.msra.mxu0 0
    %1958 = vmatprep.mubr.bf16.mxu0 0
    %1959 = vmatmul.mubr.bf16.gmra.mrb[0].mxu0 %v1924
    %v1960 = vpop.f32.mrb[0].mxu0
    %v1961 = vadd.f32 0.0, %v1960
    %v1962 = vpop.f32.mrb[0].mxu0
    %v1963 = vpop.f32.mrb[0].mxu0
    %v1964 = vadd.f32 0.0, %v1963
    %v1965 = vpop.f32.mrb[0].mxu0
    %1966 = vdwg.mxu0
    %v1967 = vadd.f32 %v1833, %v1961
    %v1968 = vadd.f32 %v1836, %v1964
    %v1969 = vld [vmem:[#allocation7 + $0x40] sm:$0x1]
    %v1970 = vlaneseq
    %v1971 = vshrl.u32 %v1970, 7
    %v1972 = vsub.s32 0, %v1971
    %v1973 = vrot.slane %v1969, %v1972
    %v1974 = vadd.f32 %v1967, %v1973
    %v1975 = vadd.f32 %v1968, %v1973
    %vm1976 = vcmp.ge.f32.partialorder %v1974, 0.0
    %vm1977 = vcmp.ge.f32.partialorder %v1975, 0.0
    %v1978 = vmul.f32 %v1974, 0.1
    %v1979 = vmul.f32 %v1975, 0.1
    %v1980 = vsel %vm1976, %v1974, %v1978
    %v1981 = vsel %vm1977, %v1975, %v1979
    %v1982 = vpack.c.bf16 %v1981, %v1980
    %v1983 = vld [vmem:[#allocation2 + $0x80] sm:$0xf]
    %v1984 = vld [vmem:[#allocation2 + $0x84] sm:$0xf]
    %v1987 = vunpack.c.l.b16 %v1983
    %v1988 = vunpack.c.l.b16 %v1984
    %v1989 = vpack.c.b16 %v1988, %v1987
    %vm1990 = vcmask 130048
    %v1992 = vsel %vm1990, %v1989, 0
    %1994 = vmatprep.subr.bf16.mxu0 0
    %1995 = vmatpush1.bf16.msra.mxu0 %v1982
    %1996 = vmatprep.subr.bf16.mxu0 0
    %1997 = vmatpush1.bf16.msra.mxu0 0
    %1998 = vmatprep.subr.bf16.mxu0 0
    %1999 = vmatpush1.bf16.msra.mxu0 0
    %2000 = vmatprep.subr.bf16.mxu0 0
    %2001 = vmatpush1.bf16.msra.mxu0 0
    %2002 = vmatprep.subr.bf16.mxu0 0
    %2003 = vmatpush1.bf16.msra.mxu0 0
    %2004 = vmatprep.subr.bf16.mxu0 0
    %2005 = vmatpush1.bf16.msra.mxu0 0
    %2006 = vmatprep.subr.bf16.mxu0 0
    %2007 = vmatpush1.bf16.msra.mxu0 0
    %2008 = vmatprep.subr.bf16.mxu0 0
    %2009 = vmatpush1.bf16.msra.mxu0 0
    %2010 = vmatprep.subr.bf16.mxu0 0
    %2011 = vmatpush1.bf16.msra.mxu0 0
    %2012 = vmatprep.subr.bf16.mxu0 0
    %2013 = vmatpush1.bf16.msra.mxu0 0
    %2014 = vmatprep.subr.bf16.mxu0 0
    %2015 = vmatpush1.bf16.msra.mxu0 0
    %2016 = vmatprep.subr.bf16.mxu0 0
    %2017 = vmatpush1.bf16.msra.mxu0 0
    %2018 = vmatprep.subr.bf16.mxu0 0
    %2019 = vmatpush1.bf16.msra.mxu0 0
    %2020 = vmatprep.subr.bf16.mxu0 0
    %2021 = vmatpush1.bf16.msra.mxu0 0
    %2022 = vmatprep.subr.bf16.mxu0 0
    %2023 = vmatpush1.bf16.msra.mxu0 0
    %2024 = vmatprep.subr.bf16.mxu0 0
    %2025 = vmatpush1.bf16.msra.mxu0 0
    %2026 = vmatprep.mubr.bf16.mxu0 0
    %2027 = vmatmul.mubr.bf16.gmra.mrb[0].mxu0 %v1992
    %v2028 = vpop.f32.mrb[0].mxu0
    %v2029 = vadd.f32 0.0, %v2028
    %v2030 = vpop.f32.mrb[0].mxu0
    %v2031 = vpop.f32.mrb[0].mxu0
    %v2032 = vadd.f32 0.0, %v2031
    %v2033 = vpop.f32.mrb[0].mxu0
    %2034 = vdwg.mxu0
    %v2035 = vpack.c.bf16 %v2032, %v2029
    %v2036 = vld [vmem:[#allocation5 + $0x1c0] sm:$0xf]
    %v2037 = vld [vmem:[#allocation5 + $0x1c4] sm:$0xf]
    %v2038 = vld [vmem:[#allocation5 + $0x1c8] sm:$0xf]
    %v2039 = vld [vmem:[#allocation5 + $0x1cc] sm:$0xf]
    %v2040 = vld [vmem:[#allocation5 + $0x1d0] sm:$0xf]
    %v2041 = vld [vmem:[#allocation5 + $0x1d4] sm:$0xf]
    %v2042 = vld [vmem:[#allocation5 + $0x1d8] sm:$0xf]
    %v2043 = vld [vmem:[#allocation5 + $0x1dc] sm:$0xf]
    %v2048 = vunpack.c.l.b16 %v2040
    %v2049 = vunpack.c.l.b16 %v2041
    %v2050 = vunpack.c.l.b16 %v2042
    %v2051 = vunpack.c.l.b16 %v2043
    %v2052 = vpack.c.b16 %v2049, %v2048
    %v2053 = vpack.c.b16 %v2051, %v2050
    %v2057 = vsel %vm109, %v1982, 0
    %2059 = vmatprep.subr.bf16.mxu0 0
    %2060 = vmatpush1.bf16.msra.mxu0 %v2052
    %2061 = vmatprep.subr.bf16.mxu0 0
    %2062 = vmatpush1.bf16.msra.mxu0 %v2053
    %2063 = vmatprep.subr.bf16.mxu0 0
    %2064 = vmatpush1.bf16.msra.mxu0 0
    %2065 = vmatprep.subr.bf16.mxu0 0
    %2066 = vmatpush1.bf16.msra.mxu0 0
    %2067 = vmatprep.subr.bf16.mxu0 0
    %2068 = vmatpush1.bf16.msra.mxu0 0
    %2069 = vmatprep.subr.bf16.mxu0 0
    %2070 = vmatpush1.bf16.msra.mxu0 0
    %2071 = vmatprep.subr.bf16.mxu0 0
    %2072 = vmatpush1.bf16.msra.mxu0 0
    %2073 = vmatprep.subr.bf16.mxu0 0
    %2074 = vmatpush1.bf16.msra.mxu0 0
    %2075 = vmatprep.subr.bf16.mxu0 0
    %2076 = vmatpush1.bf16.msra.mxu0 0
    %2077 = vmatprep.subr.bf16.mxu0 0
    %2078 = vmatpush1.bf16.msra.mxu0 0
    %2079 = vmatprep.subr.bf16.mxu0 0
    %2080 = vmatpush1.bf16.msra.mxu0 0
    %2081 = vmatprep.subr.bf16.mxu0 0
    %2082 = vmatpush1.bf16.msra.mxu0 0
    %2083 = vmatprep.subr.bf16.mxu0 0
    %2084 = vmatpush1.bf16.msra.mxu0 0
    %2085 = vmatprep.subr.bf16.mxu0 0
    %2086 = vmatpush1.bf16.msra.mxu0 0
    %2087 = vmatprep.subr.bf16.mxu0 0
    %2088 = vmatpush1.bf16.msra.mxu0 0
    %2089 = vmatprep.subr.bf16.mxu0 0
    %2090 = vmatpush1.bf16.msra.mxu0 0
    %2091 = vmatprep.mubr.bf16.mxu0 0
    %2092 = vmatmul.mubr.bf16.gmra.mrb[0].mxu0 %v2057
    %v2093 = vpop.f32.mrb[0].mxu0
    %v2094 = vadd.f32 0.0, %v2093
    %v2095 = vpop.f32.mrb[0].mxu0
    %v2096 = vpop.f32.mrb[0].mxu0
    %v2097 = vadd.f32 0.0, %v2096
    %v2098 = vpop.f32.mrb[0].mxu0
    %2099 = vdwg.mxu0
    %v2104 = vunpack.c.l.b16 %v2036
    %v2105 = vunpack.c.l.b16 %v2037
    %v2106 = vunpack.c.l.b16 %v2038
    %v2107 = vunpack.c.l.b16 %v2039
    %v2108 = vpack.c.b16 %v2105, %v2104
    %v2109 = vpack.c.b16 %v2107, %v2106
    %v2113 = vsel %vm109, %v2035, 0
    %2115 = vmatprep.subr.bf16.mxu0 0
    %2116 = vmatpush1.bf16.msra.mxu0 %v2108
    %2117 = vmatprep.subr.bf16.mxu0 0
    %2118 = vmatpush1.bf16.msra.mxu0 %v2109
    %2119 = vmatprep.subr.bf16.mxu0 0
    %2120 = vmatpush1.bf16.msra.mxu0 0
    %2121 = vmatprep.subr.bf16.mxu0 0
    %2122 = vmatpush1.bf16.msra.mxu0 0
    %2123 = vmatprep.subr.bf16.mxu0 0
    %2124 = vmatpush1.bf16.msra.mxu0 0
    %2125 = vmatprep.subr.bf16.mxu0 0
    %2126 = vmatpush1.bf16.msra.mxu0 0
    %2127 = vmatprep.subr.bf16.mxu0 0
    %2128 = vmatpush1.bf16.msra.mxu0 0
    %2129 = vmatprep.subr.bf16.mxu0 0
    %2130 = vmatpush1.bf16.msra.mxu0 0
    %2131 = vmatprep.subr.bf16.mxu0 0
    %2132 = vmatpush1.bf16.msra.mxu0 0
    %2133 = vmatprep.subr.bf16.mxu0 0
    %2134 = vmatpush1.bf16.msra.mxu0 0
    %2135 = vmatprep.subr.bf16.mxu0 0
    %2136 = vmatpush1.bf16.msra.mxu0 0
    %2137 = vmatprep.subr.bf16.mxu0 0
    %2138 = vmatpush1.bf16.msra.mxu0 0
    %2139 = vmatprep.subr.bf16.mxu0 0
    %2140 = vmatpush1.bf16.msra.mxu0 0
    %2141 = vmatprep.subr.bf16.mxu0 0
    %2142 = vmatpush1.bf16.msra.mxu0 0
    %2143 = vmatprep.subr.bf16.mxu0 0
    %2144 = vmatpush1.bf16.msra.mxu0 0
    %2145 = vmatprep.subr.bf16.mxu0 0
    %2146 = vmatpush1.bf16.msra.mxu0 0
    %2147 = vmatprep.mubr.bf16.mxu0 0
    %2148 = vmatmul.mubr.bf16.gmra.mrb[0].mxu0 %v2113
    %v2149 = vpop.f32.mrb[0].mxu0
    %v2150 = vadd.f32 %v2094, %v2149
    %v2151 = vpop.f32.mrb[0].mxu0
    %v2152 = vpop.f32.mrb[0].mxu0
    %v2153 = vadd.f32 %v2097, %v2152
    %v2154 = vpop.f32.mrb[0].mxu0
    %2155 = vdwg.mxu0
    %v2156 = vld [vmem:[#allocation2 + $0x88] sm:$0xf]
    %v2157 = vld [vmem:[#allocation2 + $0x8c] sm:$0xf]
    %v2160 = vunpack.c.l.b16 %v2156
    %v2161 = vunpack.c.l.b16 %v2157
    %v2162 = vpack.c.b16 %v2161, %v2160
    %v2164 = vsel %vm1990, %v2162, 0
    %2166 = vmatprep.subr.bf16.mxu0 0
    %2167 = vmatpush1.bf16.msra.mxu0 %v1982
    %2168 = vmatprep.subr.bf16.mxu0 0
    %2169 = vmatpush1.bf16.msra.mxu0 0
    %2170 = vmatprep.subr.bf16.mxu0 0
    %2171 = vmatpush1.bf16.msra.mxu0 0
    %2172 = vmatprep.subr.bf16.mxu0 0
    %2173 = vmatpush1.bf16.msra.mxu0 0
    %2174 = vmatprep.subr.bf16.mxu0 0
    %2175 = vmatpush1.bf16.msra.mxu0 0
    %2176 = vmatprep.subr.bf16.mxu0 0
    %2177 = vmatpush1.bf16.msra.mxu0 0
    %2178 = vmatprep.subr.bf16.mxu0 0
    %2179 = vmatpush1.bf16.msra.mxu0 0
    %2180 = vmatprep.subr.bf16.mxu0 0
    %2181 = vmatpush1.bf16.msra.mxu0 0
    %2182 = vmatprep.subr.bf16.mxu0 0
    %2183 = vmatpush1.bf16.msra.mxu0 0
    %2184 = vmatprep.subr.bf16.mxu0 0
    %2185 = vmatpush1.bf16.msra.mxu0 0
    %2186 = vmatprep.subr.bf16.mxu0 0
    %2187 = vmatpush1.bf16.msra.mxu0 0
    %2188 = vmatprep.subr.bf16.mxu0 0
    %2189 = vmatpush1.bf16.msra.mxu0 0
    %2190 = vmatprep.subr.bf16.mxu0 0
    %2191 = vmatpush1.bf16.msra.mxu0 0
    %2192 = vmatprep.subr.bf16.mxu0 0
    %2193 = vmatpush1.bf16.msra.mxu0 0
    %2194 = vmatprep.subr.bf16.mxu0 0
    %2195 = vmatpush1.bf16.msra.mxu0 0
    %2196 = vmatprep.subr.bf16.mxu0 0
    %2197 = vmatpush1.bf16.msra.mxu0 0
    %2198 = vmatprep.mubr.bf16.mxu0 0
    %2199 = vmatmul.mubr.bf16.gmra.mrb[0].mxu0 %v2164
    %v2200 = vpop.f32.mrb[0].mxu0
    %v2201 = vadd.f32 0.0, %v2200
    %v2202 = vpop.f32.mrb[0].mxu0
    %v2203 = vpop.f32.mrb[0].mxu0
    %v2204 = vadd.f32 0.0, %v2203
    %v2205 = vpop.f32.mrb[0].mxu0
    %2206 = vdwg.mxu0
    %v2207 = vpack.c.bf16 %v2204, %v2201
    %v2208 = vld [vmem:[#allocation5 + $0x1e0] sm:$0xf]
    %v2209 = vld [vmem:[#allocation5 + $0x1e4] sm:$0xf]
    %v2210 = vld [vmem:[#allocation5 + $0x1e8] sm:$0xf]
    %v2211 = vld [vmem:[#allocation5 + $0x1ec] sm:$0xf]
    %v2216 = vunpack.c.l.b16 %v2208
    %v2217 = vunpack.c.l.b16 %v2209
    %v2218 = vunpack.c.l.b16 %v2210
    %v2219 = vunpack.c.l.b16 %v2211
    %v2220 = vpack.c.b16 %v2217, %v2216
    %v2221 = vpack.c.b16 %v2219, %v2218
    %v2225 = vsel %vm109, %v2207, 0
    %2227 = vmatprep.subr.bf16.mxu0 0
    %2228 = vmatpush1.bf16.msra.mxu0 %v2220
    %2229 = vmatprep.subr.bf16.mxu0 0
    %2230 = vmatpush1.bf16.msra.mxu0 %v2221
    %2231 = vmatprep.subr.bf16.mxu0 0
    %2232 = vmatpush1.bf16.msra.mxu0 0
    %2233 = vmatprep.subr.bf16.mxu0 0
    %2234 = vmatpush1.bf16.msra.mxu0 0
    %2235 = vmatprep.subr.bf16.mxu0 0
    %2236 = vmatpush1.bf16.msra.mxu0 0
    %2237 = vmatprep.subr.bf16.mxu0 0
    %2238 = vmatpush1.bf16.msra.mxu0 0
    %2239 = vmatprep.subr.bf16.mxu0 0
    %2240 = vmatpush1.bf16.msra.mxu0 0
    %2241 = vmatprep.subr.bf16.mxu0 0
    %2242 = vmatpush1.bf16.msra.mxu0 0
    %2243 = vmatprep.subr.bf16.mxu0 0
    %2244 = vmatpush1.bf16.msra.mxu0 0
    %2245 = vmatprep.subr.bf16.mxu0 0
    %2246 = vmatpush1.bf16.msra.mxu0 0
    %2247 = vmatprep.subr.bf16.mxu0 0
    %2248 = vmatpush1.bf16.msra.mxu0 0
    %2249 = vmatprep.subr.bf16.mxu0 0
    %2250 = vmatpush1.bf16.msra.mxu0 0
    %2251 = vmatprep.subr.bf16.mxu0 0
    %2252 = vmatpush1.bf16.msra.mxu0 0
    %2253 = vmatprep.subr.bf16.mxu0 0
    %2254 = vmatpush1.bf16.msra.mxu0 0
    %2255 = vmatprep.subr.bf16.mxu0 0
    %2256 = vmatpush1.bf16.msra.mxu0 0
    %2257 = vmatprep.subr.bf16.mxu0 0
    %2258 = vmatpush1.bf16.msra.mxu0 0
    %2259 = vmatprep.mubr.bf16.mxu0 0
    %2260 = vmatmul.mubr.bf16.gmra.mrb[0].mxu0 %v2225
    %v2261 = vpop.f32.mrb[0].mxu0
    %v2262 = vadd.f32 0.0, %v2261
    %v2263 = vpop.f32.mrb[0].mxu0
    %v2264 = vpop.f32.mrb[0].mxu0
    %v2265 = vadd.f32 0.0, %v2264
    %v2266 = vpop.f32.mrb[0].mxu0
    %2267 = vdwg.mxu0
    %v2268 = vadd.f32 %v2150, %v2262
    %v2269 = vadd.f32 %v2153, %v2265
    %v2270 = vld [vmem:[#allocation7 + $0x50] sm:$0x1]
    %v2271 = vlaneseq
    %v2272 = vshrl.u32 %v2271, 7
    %v2273 = vsub.s32 0, %v2272
    %v2274 = vrot.slane %v2270, %v2273
    %v2275 = vadd.f32 %v2268, %v2274
    %v2276 = vadd.f32 %v2269, %v2274
    %vm2277 = vcmp.ge.f32.partialorder %v2275, 0.0
    %vm2278 = vcmp.ge.f32.partialorder %v2276, 0.0
    %v2279 = vmul.f32 %v2275, 0.1
    %v2280 = vmul.f32 %v2276, 0.1
    %v2281 = vsel %vm2277, %v2275, %v2279
    %v2282 = vsel %vm2278, %v2276, %v2280
    %v2283 = vadd.f32 %v2281, %v694
    %v2284 = vadd.f32 %v2282, %v695
    %v2285 = vpack.c.bf16 %v2284, %v2283
    %v2286 = vld [vmem:[#allocation5 + $0x1f0] sm:$0xf]
    %v2287 = vld [vmem:[#allocation5 + $0x1f4] sm:$0xf]
    %v2288 = vld [vmem:[#allocation5 + $0x1f8] sm:$0xf]
    %v2289 = vld [vmem:[#allocation5 + $0x1fc] sm:$0xf]
    %v2290 = vld [vmem:[#allocation7 + $0x60] sm:$0x1]
    %v2291 = vlaneseq
    %v2292 = vshrl.u32 %v2291, 7
    %v2293 = vsub.s32 0, %v2292
    %v2294 = vrot.slane %v2290, %v2293
    %v2299 = vunpack.c.l.b16 %v2286
    %v2300 = vunpack.c.l.b16 %v2287
    %v2301 = vunpack.c.l.b16 %v2288
    %v2302 = vunpack.c.l.b16 %v2289
    %v2303 = vpack.c.b16 %v2300, %v2299
    %v2304 = vpack.c.b16 %v2302, %v2301
    %v2308 = vsel %vm109, %v2285, 0
    %2310 = vmatprep.subr.bf16.mxu0 0
    %2311 = vmatpush1.bf16.msra.mxu0 %v2303
    %2312 = vmatprep.subr.bf16.mxu0 0
    %2313 = vmatpush1.bf16.msra.mxu0 %v2304
    %2314 = vmatprep.subr.bf16.mxu0 0
    %2315 = vmatpush1.bf16.msra.mxu0 0
    %2316 = vmatprep.subr.bf16.mxu0 0
    %2317 = vmatpush1.bf16.msra.mxu0 0
    %2318 = vmatprep.subr.bf16.mxu0 0
    %2319 = vmatpush1.bf16.msra.mxu0 0
    %2320 = vmatprep.subr.bf16.mxu0 0
    %2321 = vmatpush1.bf16.msra.mxu0 0
    %2322 = vmatprep.subr.bf16.mxu0 0
    %2323 = vmatpush1.bf16.msra.mxu0 0
    %2324 = vmatprep.subr.bf16.mxu0 0
    %2325 = vmatpush1.bf16.msra.mxu0 0
    %2326 = vmatprep.subr.bf16.mxu0 0
    %2327 = vmatpush1.bf16.msra.mxu0 0
    %2328 = vmatprep.subr.bf16.mxu0 0
    %2329 = vmatpush1.bf16.msra.mxu0 0
    %2330 = vmatprep.subr.bf16.mxu0 0
    %2331 = vmatpush1.bf16.msra.mxu0 0
    %2332 = vmatprep.subr.bf16.mxu0 0
    %2333 = vmatpush1.bf16.msra.mxu0 0
    %2334 = vmatprep.subr.bf16.mxu0 0
    %2335 = vmatpush1.bf16.msra.mxu0 0
    %2336 = vmatprep.subr.bf16.mxu0 0
    %2337 = vmatpush1.bf16.msra.mxu0 0
    %2338 = vmatprep.subr.bf16.mxu0 0
    %2339 = vmatpush1.bf16.msra.mxu0 0
    %2340 = vmatprep.subr.bf16.mxu0 0
    %2341 = vmatpush1.bf16.msra.mxu0 0
    %2342 = vmatprep.mubr.bf16.mxu0 0
    %2343 = vmatmul.mubr.bf16.gmra.mrb[0].mxu0 %v2308
    %v2344 = vpop.f32.mrb[0].mxu0
    %v2345 = vadd.f32 %v2294, %v2344
    %v2346 = vpop.f32.mrb[0].mxu0
    %v2347 = vpop.f32.mrb[0].mxu0
    %v2348 = vadd.f32 %v2294, %v2347
    %v2349 = vpop.f32.mrb[0].mxu0
    %2350 = vdwg.mxu0
    %vm2351 = vcmp.ge.f32.partialorder %v2345, 0.0
    %vm2352 = vcmp.ge.f32.partialorder %v2348, 0.0
    %v2353 = vmul.f32 %v2345, 0.1
    %v2354 = vmul.f32 %v2348, 0.1
    %v2355 = vsel %vm2351, %v2345, %v2353
    %v2356 = vsel %vm2352, %v2348, %v2354
    %v2357 = vpack.c.bf16 %v2356, %v2355
    %v2358 = vld [vmem:[#allocation2 + $0x90] sm:$0x3]
    %v2360 = vsel %vm1990, %v2358, 0
    %2362 = vmatprep.subr.bf16.mxu0 0
    %2363 = vmatpush1.bf16.msra.mxu0 %v2357
    %2364 = vmatprep.subr.bf16.mxu0 0
    %2365 = vmatpush1.bf16.msra.mxu0 0
    %2366 = vmatprep.subr.bf16.mxu0 0
    %2367 = vmatpush1.bf16.msra.mxu0 0
    %2368 = vmatprep.subr.bf16.mxu0 0
    %2369 = vmatpush1.bf16.msra.mxu0 0
    %2370 = vmatprep.subr.bf16.mxu0 0
    %2371 = vmatpush1.bf16.msra.mxu0 0
    %2372 = vmatprep.subr.bf16.mxu0 0
    %2373 = vmatpush1.bf16.msra.mxu0 0
    %2374 = vmatprep.subr.bf16.mxu0 0
    %2375 = vmatpush1.bf16.msra.mxu0 0
    %2376 = vmatprep.subr.bf16.mxu0 0
    %2377 = vmatpush1.bf16.msra.mxu0 0
    %2378 = vmatprep.subr.bf16.mxu0 0
    %2379 = vmatpush1.bf16.msra.mxu0 0
    %2380 = vmatprep.subr.bf16.mxu0 0
    %2381 = vmatpush1.bf16.msra.mxu0 0
    %2382 = vmatprep.subr.bf16.mxu0 0
    %2383 = vmatpush1.bf16.msra.mxu0 0
    %2384 = vmatprep.subr.bf16.mxu0 0
    %2385 = vmatpush1.bf16.msra.mxu0 0
    %2386 = vmatprep.subr.bf16.mxu0 0
    %2387 = vmatpush1.bf16.msra.mxu0 0
    %2388 = vmatprep.subr.bf16.mxu0 0
    %2389 = vmatpush1.bf16.msra.mxu0 0
    %2390 = vmatprep.subr.bf16.mxu0 0
    %2391 = vmatpush1.bf16.msra.mxu0 0
    %2392 = vmatprep.subr.bf16.mxu0 0
    %2393 = vmatpush1.bf16.msra.mxu0 0
    %2394 = vmatprep.mubr.bf16.mxu0 0
    %2395 = vmatmul.mubr.bf16.gmra.mrb[0].mxu0 %v2360
    %v2396 = vpop.f32.mrb[0].mxu0
    %v2397 = vadd.f32 0.0, %v2396
    %v2398 = vpop.f32.mrb[0].mxu0
    %v2399 = vpop.f32.mrb[0].mxu0
    %v2400 = vpop.f32.mrb[0].mxu0
    %2401 = vdwg.mxu0
    %v2402 = vpack.c.bf16 %v2397, %v2397
    %v2403 = vld [vmem:[#allocation5 + $0x200] sm:$0xf]
    %v2404 = vld [vmem:[#allocation5 + $0x204] sm:$0xf]
    %v2405 = vld [vmem:[#allocation5 + $0x208] sm:$0xf]
    %v2406 = vld [vmem:[#allocation5 + $0x20c] sm:$0xf]
    %v2407 = vld [vmem:[#allocation5 + $0x210] sm:$0xf]
    %v2408 = vld [vmem:[#allocation5 + $0x214] sm:$0xf]
    %v2409 = vld [vmem:[#allocation5 + $0x218] sm:$0xf]
    %v2410 = vld [vmem:[#allocation5 + $0x21c] sm:$0xf]
    %v2411 = vld [vmem:[#allocation2 + $0x98] sm:$0x3]
    %v2413 = vsel %vm1990, %v2411, 0
    %2415 = vmatprep.subr.bf16.mxu0 0
    %2416 = vmatpush1.bf16.msra.mxu0 %v2357
    %2417 = vmatprep.subr.bf16.mxu0 0
    %2418 = vmatpush1.bf16.msra.mxu0 0
    %2419 = vmatprep.subr.bf16.mxu0 0
    %2420 = vmatpush1.bf16.msra.mxu0 0
    %2421 = vmatprep.subr.bf16.mxu0 0
    %2422 = vmatpush1.bf16.msra.mxu0 0
    %2423 = vmatprep.subr.bf16.mxu0 0
    %2424 = vmatpush1.bf16.msra.mxu0 0
    %2425 = vmatprep.subr.bf16.mxu0 0
    %2426 = vmatpush1.bf16.msra.mxu0 0
    %2427 = vmatprep.subr.bf16.mxu0 0
    %2428 = vmatpush1.bf16.msra.mxu0 0
    %2429 = vmatprep.subr.bf16.mxu0 0
    %2430 = vmatpush1.bf16.msra.mxu0 0
    %2431 = vmatprep.subr.bf16.mxu0 0
    %2432 = vmatpush1.bf16.msra.mxu0 0
    %2433 = vmatprep.subr.bf16.mxu0 0
    %2434 = vmatpush1.bf16.msra.mxu0 0
    %2435 = vmatprep.subr.bf16.mxu0 0
    %2436 = vmatpush1.bf16.msra.mxu0 0
    %2437 = vmatprep.subr.bf16.mxu0 0
    %2438 = vmatpush1.bf16.msra.mxu0 0
    %2439 = vmatprep.subr.bf16.mxu0 0
    %2440 = vmatpush1.bf16.msra.mxu0 0
    %2441 = vmatprep.subr.bf16.mxu0 0
    %2442 = vmatpush1.bf16.msra.mxu0 0
    %2443 = vmatprep.subr.bf16.mxu0 0
    %2444 = vmatpush1.bf16.msra.mxu0 0
    %2445 = vmatprep.subr.bf16.mxu0 0
    %2446 = vmatpush1.bf16.msra.mxu0 0
    %2447 = vmatprep.mubr.bf16.mxu0 0
    %2448 = vmatmul.mubr.bf16.gmra.mrb[0].mxu0 %v2413
    %v2449 = vpop.f32.mrb[0].mxu0
    %v2450 = vadd.f32 0.0, %v2449
    %v2451 = vpop.f32.mrb[0].mxu0
    %v2452 = vpop.f32.mrb[0].mxu0
    %v2453 = vpop.f32.mrb[0].mxu0
    %2454 = vdwg.mxu0
    %v2455 = vpack.c.bf16 %v2450, %v2450
    %v2456 = vld [vmem:[#allocation5 + $0x220] sm:$0xf]
    %v2457 = vld [vmem:[#allocation5 + $0x224] sm:$0xf]
    %v2458 = vld [vmem:[#allocation5 + $0x228] sm:$0xf]
    %v2459 = vld [vmem:[#allocation5 + $0x22c] sm:$0xf]
    %v2460 = vld [vmem:[#allocation5 + $0x230] sm:$0xf]
    %v2461 = vld [vmem:[#allocation5 + $0x234] sm:$0xf]
    %v2462 = vld [vmem:[#allocation5 + $0x238] sm:$0xf]
    %v2463 = vld [vmem:[#allocation5 + $0x23c] sm:$0xf]
    %v2472 = vunpack.c.l.b16 %v2456
    %v2473 = vunpack.c.l.b16 %v2457
    %v2474 = vunpack.c.l.b16 %v2458
    %v2475 = vunpack.c.l.b16 %v2459
    %v2476 = vunpack.c.l.b16 %v2460
    %v2477 = vunpack.c.l.b16 %v2461
    %v2478 = vunpack.c.l.b16 %v2462
    %v2479 = vunpack.c.l.b16 %v2463
    %v2480 = vpack.c.b16 %v2473, %v2472
    %v2481 = vpack.c.b16 %v2475, %v2474
    %v2482 = vpack.c.b16 %v2477, %v2476
    %v2483 = vpack.c.b16 %v2479, %v2478
    %v2489 = vsel %vm222, %v2455, 0
    %2491 = vmatprep.subr.bf16.mxu0 0
    %2492 = vmatpush1.bf16.msra.mxu0 %v2480
    %2493 = vmatprep.subr.bf16.mxu0 0
    %2494 = vmatpush1.bf16.msra.mxu0 %v2481
    %2495 = vmatprep.subr.bf16.mxu0 0
    %2496 = vmatpush1.bf16.msra.mxu0 %v2482
    %2497 = vmatprep.subr.bf16.mxu0 0
    %2498 = vmatpush1.bf16.msra.mxu0 %v2483
    %2499 = vmatprep.subr.bf16.mxu0 0
    %2500 = vmatpush1.bf16.msra.mxu0 0
    %2501 = vmatprep.subr.bf16.mxu0 0
    %2502 = vmatpush1.bf16.msra.mxu0 0
    %2503 = vmatprep.subr.bf16.mxu0 0
    %2504 = vmatpush1.bf16.msra.mxu0 0
    %2505 = vmatprep.subr.bf16.mxu0 0
    %2506 = vmatpush1.bf16.msra.mxu0 0
    %2507 = vmatprep.subr.bf16.mxu0 0
    %2508 = vmatpush1.bf16.msra.mxu0 0
    %2509 = vmatprep.subr.bf16.mxu0 0
    %2510 = vmatpush1.bf16.msra.mxu0 0
    %2511 = vmatprep.subr.bf16.mxu0 0
    %2512 = vmatpush1.bf16.msra.mxu0 0
    %2513 = vmatprep.subr.bf16.mxu0 0
    %2514 = vmatpush1.bf16.msra.mxu0 0
    %2515 = vmatprep.subr.bf16.mxu0 0
    %2516 = vmatpush1.bf16.msra.mxu0 0
    %2517 = vmatprep.subr.bf16.mxu0 0
    %2518 = vmatpush1.bf16.msra.mxu0 0
    %2519 = vmatprep.subr.bf16.mxu0 0
    %2520 = vmatpush1.bf16.msra.mxu0 0
    %2521 = vmatprep.subr.bf16.mxu0 0
    %2522 = vmatpush1.bf16.msra.mxu0 0
    %2523 = vmatprep.mubr.bf16.mxu0 0
    %2524 = vmatmul.mubr.bf16.gmra.mrb[0].mxu0 %v2489
    %v2525 = vpop.f32.mrb[0].mxu0
    %v2526 = vadd.f32 0.0, %v2525
    %v2527 = vpop.f32.mrb[0].mxu0
    %v2528 = vpop.f32.mrb[0].mxu0
    %v2529 = vpop.f32.mrb[0].mxu0
    %2530 = vdwg.mxu0
    %v2539 = vunpack.c.l.b16 %v2403
    %v2540 = vunpack.c.l.b16 %v2404
    %v2541 = vunpack.c.l.b16 %v2405
    %v2542 = vunpack.c.l.b16 %v2406
    %v2543 = vunpack.c.l.b16 %v2407
    %v2544 = vunpack.c.l.b16 %v2408
    %v2545 = vunpack.c.l.b16 %v2409
    %v2546 = vunpack.c.l.b16 %v2410
    %v2547 = vpack.c.b16 %v2540, %v2539
    %v2548 = vpack.c.b16 %v2542, %v2541
    %v2549 = vpack.c.b16 %v2544, %v2543
    %v2550 = vpack.c.b16 %v2546, %v2545
    %v2556 = vsel %vm222, %v2402, 0
    %2558 = vmatprep.subr.bf16.mxu0 0
    %2559 = vmatpush1.bf16.msra.mxu0 %v2547
    %2560 = vmatprep.subr.bf16.mxu0 0
    %2561 = vmatpush1.bf16.msra.mxu0 %v2548
    %2562 = vmatprep.subr.bf16.mxu0 0
    %2563 = vmatpush1.bf16.msra.mxu0 %v2549
    %2564 = vmatprep.subr.bf16.mxu0 0
    %2565 = vmatpush1.bf16.msra.mxu0 %v2550
    %2566 = vmatprep.subr.bf16.mxu0 0
    %2567 = vmatpush1.bf16.msra.mxu0 0
    %2568 = vmatprep.subr.bf16.mxu0 0
    %2569 = vmatpush1.bf16.msra.mxu0 0
    %2570 = vmatprep.subr.bf16.mxu0 0
    %2571 = vmatpush1.bf16.msra.mxu0 0
    %2572 = vmatprep.subr.bf16.mxu0 0
    %2573 = vmatpush1.bf16.msra.mxu0 0
    %2574 = vmatprep.subr.bf16.mxu0 0
    %2575 = vmatpush1.bf16.msra.mxu0 0
    %2576 = vmatprep.subr.bf16.mxu0 0
    %2577 = vmatpush1.bf16.msra.mxu0 0
    %2578 = vmatprep.subr.bf16.mxu0 0
    %2579 = vmatpush1.bf16.msra.mxu0 0
    %2580 = vmatprep.subr.bf16.mxu0 0
    %2581 = vmatpush1.bf16.msra.mxu0 0
    %2582 = vmatprep.subr.bf16.mxu0 0
    %2583 = vmatpush1.bf16.msra.mxu0 0
    %2584 = vmatprep.subr.bf16.mxu0 0
    %2585 = vmatpush1.bf16.msra.mxu0 0
    %2586 = vmatprep.subr.bf16.mxu0 0
    %2587 = vmatpush1.bf16.msra.mxu0 0
    %2588 = vmatprep.subr.bf16.mxu0 0
    %2589 = vmatpush1.bf16.msra.mxu0 0
    %2590 = vmatprep.mubr.bf16.mxu0 0
    %2591 = vmatmul.mubr.bf16.gmra.mrb[0].mxu0 %v2556
    %v2592 = vpop.f32.mrb[0].mxu0
    %v2593 = vadd.f32 %v2526, %v2592
    %v2594 = vpop.f32.mrb[0].mxu0
    %v2595 = vpop.f32.mrb[0].mxu0
    %v2596 = vpop.f32.mrb[0].mxu0
    %2597 = vdwg.mxu0
    %v2598 = vld [vmem:[#allocation2 + $0xa0] sm:$0x3]
    %v2600 = vsel %vm1990, %v2598, 0
    %2602 = vmatprep.subr.bf16.mxu0 0
    %2603 = vmatpush1.bf16.msra.mxu0 %v2357
    %2604 = vmatprep.subr.bf16.mxu0 0
    %2605 = vmatpush1.bf16.msra.mxu0 0
    %2606 = vmatprep.subr.bf16.mxu0 0
    %2607 = vmatpush1.bf16.msra.mxu0 0
    %2608 = vmatprep.subr.bf16.mxu0 0
    %2609 = vmatpush1.bf16.msra.mxu0 0
    %2610 = vmatprep.subr.bf16.mxu0 0
    %2611 = vmatpush1.bf16.msra.mxu0 0
    %2612 = vmatprep.subr.bf16.mxu0 0
    %2613 = vmatpush1.bf16.msra.mxu0 0
    %2614 = vmatprep.subr.bf16.mxu0 0
    %2615 = vmatpush1.bf16.msra.mxu0 0
    %2616 = vmatprep.subr.bf16.mxu0 0
    %2617 = vmatpush1.bf16.msra.mxu0 0
    %2618 = vmatprep.subr.bf16.mxu0 0
    %2619 = vmatpush1.bf16.msra.mxu0 0
    %2620 = vmatprep.subr.bf16.mxu0 0
    %2621 = vmatpush1.bf16.msra.mxu0 0
    %2622 = vmatprep.subr.bf16.mxu0 0
    %2623 = vmatpush1.bf16.msra.mxu0 0
    %2624 = vmatprep.subr.bf16.mxu0 0
    %2625 = vmatpush1.bf16.msra.mxu0 0
    %2626 = vmatprep.subr.bf16.mxu0 0
    %2627 = vmatpush1.bf16.msra.mxu0 0
    %2628 = vmatprep.subr.bf16.mxu0 0
    %2629 = vmatpush1.bf16.msra.mxu0 0
    %2630 = vmatprep.subr.bf16.mxu0 0
    %2631 = vmatpush1.bf16.msra.mxu0 0
    %2632 = vmatprep.subr.bf16.mxu0 0
    %2633 = vmatpush1.bf16.msra.mxu0 0
    %2634 = vmatprep.mubr.bf16.mxu0 0
    %2635 = vmatmul.mubr.bf16.gmra.mrb[0].mxu0 %v2600
    %v2636 = vpop.f32.mrb[0].mxu0
    %v2637 = vadd.f32 0.0, %v2636
    %v2638 = vpop.f32.mrb[0].mxu0
    %v2639 = vpop.f32.mrb[0].mxu0
    %v2640 = vpop.f32.mrb[0].mxu0
    %2641 = vdwg.mxu0
    %v2642 = vpack.c.bf16 %v2637, %v2637
    %v2643 = vld [vmem:[#allocation5 + $0x240] sm:$0xf]
    %v2644 = vld [vmem:[#allocation5 + $0x244] sm:$0xf]
    %v2645 = vld [vmem:[#allocation5 + $0x248] sm:$0xf]
    %v2646 = vld [vmem:[#allocation5 + $0x24c] sm:$0xf]
    %v2647 = vld [vmem:[#allocation5 + $0x250] sm:$0xf]
    %v2648 = vld [vmem:[#allocation5 + $0x254] sm:$0xf]
    %v2649 = vld [vmem:[#allocation5 + $0x258] sm:$0xf]
    %v2650 = vld [vmem:[#allocation5 + $0x25c] sm:$0xf]
    %v2659 = vunpack.c.l.b16 %v2643
    %v2660 = vunpack.c.l.b16 %v2644
    %v2661 = vunpack.c.l.b16 %v2645
    %v2662 = vunpack.c.l.b16 %v2646
    %v2663 = vunpack.c.l.b16 %v2647
    %v2664 = vunpack.c.l.b16 %v2648
    %v2665 = vunpack.c.l.b16 %v2649
    %v2666 = vunpack.c.l.b16 %v2650
    %v2667 = vpack.c.b16 %v2660, %v2659
    %v2668 = vpack.c.b16 %v2662, %v2661
    %v2669 = vpack.c.b16 %v2664, %v2663
    %v2670 = vpack.c.b16 %v2666, %v2665
    %v2676 = vsel %vm222, %v2642, 0
    %2678 = vmatprep.subr.bf16.mxu0 0
    %2679 = vmatpush1.bf16.msra.mxu0 %v2667
    %2680 = vmatprep.subr.bf16.mxu0 0
    %2681 = vmatpush1.bf16.msra.mxu0 %v2668
    %2682 = vmatprep.subr.bf16.mxu0 0
    %2683 = vmatpush1.bf16.msra.mxu0 %v2669
    %2684 = vmatprep.subr.bf16.mxu0 0
    %2685 = vmatpush1.bf16.msra.mxu0 %v2670
    %2686 = vmatprep.subr.bf16.mxu0 0
    %2687 = vmatpush1.bf16.msra.mxu0 0
    %2688 = vmatprep.subr.bf16.mxu0 0
    %2689 = vmatpush1.bf16.msra.mxu0 0
    %2690 = vmatprep.subr.bf16.mxu0 0
    %2691 = vmatpush1.bf16.msra.mxu0 0
    %2692 = vmatprep.subr.bf16.mxu0 0
    %2693 = vmatpush1.bf16.msra.mxu0 0
    %2694 = vmatprep.subr.bf16.mxu0 0
    %2695 = vmatpush1.bf16.msra.mxu0 0
    %2696 = vmatprep.subr.bf16.mxu0 0
    %2697 = vmatpush1.bf16.msra.mxu0 0
    %2698 = vmatprep.subr.bf16.mxu0 0
    %2699 = vmatpush1.bf16.msra.mxu0 0
    %2700 = vmatprep.subr.bf16.mxu0 0
    %2701 = vmatpush1.bf16.msra.mxu0 0
    %2702 = vmatprep.subr.bf16.mxu0 0
    %2703 = vmatpush1.bf16.msra.mxu0 0
    %2704 = vmatprep.subr.bf16.mxu0 0
    %2705 = vmatpush1.bf16.msra.mxu0 0
    %2706 = vmatprep.subr.bf16.mxu0 0
    %2707 = vmatpush1.bf16.msra.mxu0 0
    %2708 = vmatprep.subr.bf16.mxu0 0
    %2709 = vmatpush1.bf16.msra.mxu0 0
    %2710 = vmatprep.mubr.bf16.mxu0 0
    %2711 = vmatmul.mubr.bf16.gmra.mrb[0].mxu0 %v2676
    %v2712 = vpop.f32.mrb[0].mxu0
    %v2713 = vadd.f32 0.0, %v2712
    %v2714 = vpop.f32.mrb[0].mxu0
    %v2715 = vpop.f32.mrb[0].mxu0
    %v2716 = vpop.f32.mrb[0].mxu0
    %2717 = vdwg.mxu0
    %v2718 = vadd.f32 %v2593, %v2713
    %v2719 = vld [vmem:[#allocation7 + $0x70] sm:$0x1]
    %v2720 = vlaneseq
    %v2721 = vshrl.u32 %v2720, 7
    %v2722 = vsub.s32 0, %v2721
    %v2723 = vrot.slane %v2719, %v2722
    %v2724 = vadd.f32 %v2718, %v2723
    %v2725 = vld [vmem:[#allocation2 + $0xa8] sm:$0xf]
    %v2727 = vsel %vm1990, %v2725, 0
    %2729 = vmatprep.subr.bf16.mxu0 0
    %2730 = vmatpush1.bf16.msra.mxu0 %v2285
    %2731 = vmatprep.subr.bf16.mxu0 0
    %2732 = vmatpush1.bf16.msra.mxu0 0
    %2733 = vmatprep.subr.bf16.mxu0 0
    %2734 = vmatpush1.bf16.msra.mxu0 0
    %2735 = vmatprep.subr.bf16.mxu0 0
    %2736 = vmatpush1.bf16.msra.mxu0 0
    %2737 = vmatprep.subr.bf16.mxu0 0
    %2738 = vmatpush1.bf16.msra.mxu0 0
    %2739 = vmatprep.subr.bf16.mxu0 0
    %2740 = vmatpush1.bf16.msra.mxu0 0
    %2741 = vmatprep.subr.bf16.mxu0 0
    %2742 = vmatpush1.bf16.msra.mxu0 0
    %2743 = vmatprep.subr.bf16.mxu0 0
    %2744 = vmatpush1.bf16.msra.mxu0 0
    %2745 = vmatprep.subr.bf16.mxu0 0
    %2746 = vmatpush1.bf16.msra.mxu0 0
    %2747 = vmatprep.subr.bf16.mxu0 0
    %2748 = vmatpush1.bf16.msra.mxu0 0
    %2749 = vmatprep.subr.bf16.mxu0 0
    %2750 = vmatpush1.bf16.msra.mxu0 0
    %2751 = vmatprep.subr.bf16.mxu0 0
    %2752 = vmatpush1.bf16.msra.mxu0 0
    %2753 = vmatprep.subr.bf16.mxu0 0
    %2754 = vmatpush1.bf16.msra.mxu0 0
    %2755 = vmatprep.subr.bf16.mxu0 0
    %2756 = vmatpush1.bf16.msra.mxu0 0
    %2757 = vmatprep.subr.bf16.mxu0 0
    %2758 = vmatpush1.bf16.msra.mxu0 0
    %2759 = vmatprep.subr.bf16.mxu0 0
    %2760 = vmatpush1.bf16.msra.mxu0 0
    %2761 = vmatprep.mubr.bf16.mxu0 0
    %2762 = vmatmul.mubr.bf16.gmra.mrb[0].mxu0 %v2727
    %v2763 = vpop.f32.mrb[0].mxu0
    %v2764 = vadd.f32 0.0, %v2763
    %v2765 = vpop.f32.mrb[0].mxu0
    %v2766 = vpop.f32.mrb[0].mxu0
    %v2767 = vpop.f32.mrb[0].mxu0
    %2768 = vdwg.mxu0
    %v2769 = vpack.c.bf16 %v2764, %v2764
    %v2770 = vld [vmem:[#allocation5 + $0x260] sm:$0xf]
    %v2771 = vld [vmem:[#allocation5 + $0x264] sm:$0xf]
    %v2772 = vld [vmem:[#allocation5 + $0x268] sm:$0xf]
    %v2773 = vld [vmem:[#allocation5 + $0x26c] sm:$0xf]
    %v2774 = vld [vmem:[#allocation2 + $0xb0] sm:$0xf]
    %v2776 = vsel %vm1990, %v2774, 0
    %2778 = vmatprep.subr.bf16.mxu0 0
    %2779 = vmatpush1.bf16.msra.mxu0 %v2285
    %2780 = vmatprep.subr.bf16.mxu0 0
    %2781 = vmatpush1.bf16.msra.mxu0 0
    %2782 = vmatprep.subr.bf16.mxu0 0
    %2783 = vmatpush1.bf16.msra.mxu0 0
    %2784 = vmatprep.subr.bf16.mxu0 0
    %2785 = vmatpush1.bf16.msra.mxu0 0
    %2786 = vmatprep.subr.bf16.mxu0 0
    %2787 = vmatpush1.bf16.msra.mxu0 0
    %2788 = vmatprep.subr.bf16.mxu0 0
    %2789 = vmatpush1.bf16.msra.mxu0 0
    %2790 = vmatprep.subr.bf16.mxu0 0
    %2791 = vmatpush1.bf16.msra.mxu0 0
    %2792 = vmatprep.subr.bf16.mxu0 0
    %2793 = vmatpush1.bf16.msra.mxu0 0
    %2794 = vmatprep.subr.bf16.mxu0 0
    %2795 = vmatpush1.bf16.msra.mxu0 0
    %2796 = vmatprep.subr.bf16.mxu0 0
    %2797 = vmatpush1.bf16.msra.mxu0 0
    %2798 = vmatprep.subr.bf16.mxu0 0
    %2799 = vmatpush1.bf16.msra.mxu0 0
    %2800 = vmatprep.subr.bf16.mxu0 0
    %2801 = vmatpush1.bf16.msra.mxu0 0
    %2802 = vmatprep.subr.bf16.mxu0 0
    %2803 = vmatpush1.bf16.msra.mxu0 0
    %2804 = vmatprep.subr.bf16.mxu0 0
    %2805 = vmatpush1.bf16.msra.mxu0 0
    %2806 = vmatprep.subr.bf16.mxu0 0
    %2807 = vmatpush1.bf16.msra.mxu0 0
    %2808 = vmatprep.subr.bf16.mxu0 0
    %2809 = vmatpush1.bf16.msra.mxu0 0
    %2810 = vmatprep.mubr.bf16.mxu0 0
    %2811 = vmatmul.mubr.bf16.gmra.mrb[0].mxu0 %v2776
    %v2812 = vpop.f32.mrb[0].mxu0
    %v2813 = vadd.f32 0.0, %v2812
    %v2814 = vpop.f32.mrb[0].mxu0
    %v2815 = vpop.f32.mrb[0].mxu0
    %v2816 = vpop.f32.mrb[0].mxu0
    %2817 = vdwg.mxu0
    %v2818 = vpack.c.bf16 %v2813, %v2813
    %v2819 = vld [vmem:[#allocation5 + $0x270] sm:$0xf]
    %v2820 = vld [vmem:[#allocation5 + $0x274] sm:$0xf]
    %v2821 = vld [vmem:[#allocation5 + $0x278] sm:$0xf]
    %v2822 = vld [vmem:[#allocation5 + $0x27c] sm:$0xf]
    %v2827 = vunpack.c.l.b16 %v2819
    %v2828 = vunpack.c.l.b16 %v2820
    %v2829 = vunpack.c.l.b16 %v2821
    %v2830 = vunpack.c.l.b16 %v2822
    %v2831 = vpack.c.b16 %v2828, %v2827
    %v2832 = vpack.c.b16 %v2830, %v2829
    %v2836 = vsel %vm109, %v2818, 0
    %2838 = vmatprep.subr.bf16.mxu0 0
    %2839 = vmatpush1.bf16.msra.mxu0 %v2831
    %2840 = vmatprep.subr.bf16.mxu0 0
    %2841 = vmatpush1.bf16.msra.mxu0 %v2832
    %2842 = vmatprep.subr.bf16.mxu0 0
    %2843 = vmatpush1.bf16.msra.mxu0 0
    %2844 = vmatprep.subr.bf16.mxu0 0
    %2845 = vmatpush1.bf16.msra.mxu0 0
    %2846 = vmatprep.subr.bf16.mxu0 0
    %2847 = vmatpush1.bf16.msra.mxu0 0
    %2848 = vmatprep.subr.bf16.mxu0 0
    %2849 = vmatpush1.bf16.msra.mxu0 0
    %2850 = vmatprep.subr.bf16.mxu0 0
    %2851 = vmatpush1.bf16.msra.mxu0 0
    %2852 = vmatprep.subr.bf16.mxu0 0
    %2853 = vmatpush1.bf16.msra.mxu0 0
    %2854 = vmatprep.subr.bf16.mxu0 0
    %2855 = vmatpush1.bf16.msra.mxu0 0
    %2856 = vmatprep.subr.bf16.mxu0 0
    %2857 = vmatpush1.bf16.msra.mxu0 0
    %2858 = vmatprep.subr.bf16.mxu0 0
    %2859 = vmatpush1.bf16.msra.mxu0 0
    %2860 = vmatprep.subr.bf16.mxu0 0
    %2861 = vmatpush1.bf16.msra.mxu0 0
    %2862 = vmatprep.subr.bf16.mxu0 0
    %2863 = vmatpush1.bf16.msra.mxu0 0
    %2864 = vmatprep.subr.bf16.mxu0 0
    %2865 = vmatpush1.bf16.msra.mxu0 0
    %2866 = vmatprep.subr.bf16.mxu0 0
    %2867 = vmatpush1.bf16.msra.mxu0 0
    %2868 = vmatprep.subr.bf16.mxu0 0
    %2869 = vmatpush1.bf16.msra.mxu0 0
    %2870 = vmatprep.mubr.bf16.mxu0 0
    %2871 = vmatmul.mubr.bf16.gmra.mrb[0].mxu0 %v2836
    %v2872 = vpop.f32.mrb[0].mxu0
    %v2873 = vadd.f32 0.0, %v2872
    %v2874 = vpop.f32.mrb[0].mxu0
    %v2875 = vpop.f32.mrb[0].mxu0
    %v2876 = vpop.f32.mrb[0].mxu0
    %2877 = vdwg.mxu0
    %v2882 = vunpack.c.l.b16 %v2770
    %v2883 = vunpack.c.l.b16 %v2771
    %v2884 = vunpack.c.l.b16 %v2772
    %v2885 = vunpack.c.l.b16 %v2773
    %v2886 = vpack.c.b16 %v2883, %v2882
    %v2887 = vpack.c.b16 %v2885, %v2884
    %v2891 = vsel %vm109, %v2769, 0
    %2893 = vmatprep.subr.bf16.mxu0 0
    %2894 = vmatpush1.bf16.msra.mxu0 %v2886
    %2895 = vmatprep.subr.bf16.mxu0 0
    %2896 = vmatpush1.bf16.msra.mxu0 %v2887
    %2897 = vmatprep.subr.bf16.mxu0 0
    %2898 = vmatpush1.bf16.msra.mxu0 0
    %2899 = vmatprep.subr.bf16.mxu0 0
    %2900 = vmatpush1.bf16.msra.mxu0 0
    %2901 = vmatprep.subr.bf16.mxu0 0
    %2902 = vmatpush1.bf16.msra.mxu0 0
    %2903 = vmatprep.subr.bf16.mxu0 0
    %2904 = vmatpush1.bf16.msra.mxu0 0
    %2905 = vmatprep.subr.bf16.mxu0 0
    %2906 = vmatpush1.bf16.msra.mxu0 0
    %2907 = vmatprep.subr.bf16.mxu0 0
    %2908 = vmatpush1.bf16.msra.mxu0 0
    %2909 = vmatprep.subr.bf16.mxu0 0
    %2910 = vmatpush1.bf16.msra.mxu0 0
    %2911 = vmatprep.subr.bf16.mxu0 0
    %2912 = vmatpush1.bf16.msra.mxu0 0
    %2913 = vmatprep.subr.bf16.mxu0 0
    %2914 = vmatpush1.bf16.msra.mxu0 0
    %2915 = vmatprep.subr.bf16.mxu0 0
    %2916 = vmatpush1.bf16.msra.mxu0 0
    %2917 = vmatprep.subr.bf16.mxu0 0
    %2918 = vmatpush1.bf16.msra.mxu0 0
    %2919 = vmatprep.subr.bf16.mxu0 0
    %2920 = vmatpush1.bf16.msra.mxu0 0
    %2921 = vmatprep.subr.bf16.mxu0 0
    %2922 = vmatpush1.bf16.msra.mxu0 0
    %2923 = vmatprep.subr.bf16.mxu0 0
    %2924 = vmatpush1.bf16.msra.mxu0 0
    %2925 = vmatprep.mubr.bf16.mxu0 0
    %2926 = vmatmul.mubr.bf16.gmra.mrb[0].mxu0 %v2891
    %v2927 = vpop.f32.mrb[0].mxu0
    %v2928 = vadd.f32 %v2873, %v2927
    %v2929 = vpop.f32.mrb[0].mxu0
    %v2930 = vpop.f32.mrb[0].mxu0
    %v2931 = vpop.f32.mrb[0].mxu0
    %2932 = vdwg.mxu0
    %v2933 = vld [vmem:[#allocation2 + $0xb8] sm:$0xf]
    %v2935 = vsel %vm1990, %v2933, 0
    %2937 = vmatprep.subr.bf16.mxu0 0
    %2938 = vmatpush1.bf16.msra.mxu0 %v2285
    %2939 = vmatprep.subr.bf16.mxu0 0
    %2940 = vmatpush1.bf16.msra.mxu0 0
    %2941 = vmatprep.subr.bf16.mxu0 0
    %2942 = vmatpush1.bf16.msra.mxu0 0
    %2943 = vmatprep.subr.bf16.mxu0 0
    %2944 = vmatpush1.bf16.msra.mxu0 0
    %2945 = vmatprep.subr.bf16.mxu0 0
    %2946 = vmatpush1.bf16.msra.mxu0 0
    %2947 = vmatprep.subr.bf16.mxu0 0
    %2948 = vmatpush1.bf16.msra.mxu0 0
    %2949 = vmatprep.subr.bf16.mxu0 0
    %2950 = vmatpush1.bf16.msra.mxu0 0
    %2951 = vmatprep.subr.bf16.mxu0 0
    %2952 = vmatpush1.bf16.msra.mxu0 0
    %2953 = vmatprep.subr.bf16.mxu0 0
    %2954 = vmatpush1.bf16.msra.mxu0 0
    %2955 = vmatprep.subr.bf16.mxu0 0
    %2956 = vmatpush1.bf16.msra.mxu0 0
    %2957 = vmatprep.subr.bf16.mxu0 0
    %2958 = vmatpush1.bf16.msra.mxu0 0
    %2959 = vmatprep.subr.bf16.mxu0 0
    %2960 = vmatpush1.bf16.msra.mxu0 0
    %2961 = vmatprep.subr.bf16.mxu0 0
    %2962 = vmatpush1.bf16.msra.mxu0 0
    %2963 = vmatprep.subr.bf16.mxu0 0
    %2964 = vmatpush1.bf16.msra.mxu0 0
    %2965 = vmatprep.subr.bf16.mxu0 0
    %2966 = vmatpush1.bf16.msra.mxu0 0
    %2967 = vmatprep.subr.bf16.mxu0 0
    %2968 = vmatpush1.bf16.msra.mxu0 0
    %2969 = vmatprep.mubr.bf16.mxu0 0
    %2970 = vmatmul.mubr.bf16.gmra.mrb[0].mxu0 %v2935
    %v2971 = vpop.f32.mrb[0].mxu0
    %v2972 = vadd.f32 0.0, %v2971
    %v2973 = vpop.f32.mrb[0].mxu0
    %v2974 = vpop.f32.mrb[0].mxu0
    %v2975 = vpop.f32.mrb[0].mxu0
    %2976 = vdwg.mxu0
    %v2977 = vpack.c.bf16 %v2972, %v2972
    %v2978 = vld [vmem:[#allocation5 + $0x280] sm:$0xf]
    %v2979 = vld [vmem:[#allocation5 + $0x284] sm:$0xf]
    %v2980 = vld [vmem:[#allocation5 + $0x288] sm:$0xf]
    %v2981 = vld [vmem:[#allocation5 + $0x28c] sm:$0xf]
    %v2986 = vunpack.c.l.b16 %v2978
    %v2987 = vunpack.c.l.b16 %v2979
    %v2988 = vunpack.c.l.b16 %v2980
    %v2989 = vunpack.c.l.b16 %v2981
    %v2990 = vpack.c.b16 %v2987, %v2986
    %v2991 = vpack.c.b16 %v2989, %v2988
    %v2995 = vsel %vm109, %v2977, 0
    %2997 = vmatprep.subr.bf16.mxu0 0
    %2998 = vmatpush1.bf16.msra.mxu0 %v2990
    %2999 = vmatprep.subr.bf16.mxu0 0
    %3000 = vmatpush1.bf16.msra.mxu0 %v2991
    %3001 = vmatprep.subr.bf16.mxu0 0
    %3002 = vmatpush1.bf16.msra.mxu0 0
    %3003 = vmatprep.subr.bf16.mxu0 0
    %3004 = vmatpush1.bf16.msra.mxu0 0
    %3005 = vmatprep.subr.bf16.mxu0 0
    %3006 = vmatpush1.bf16.msra.mxu0 0
    %3007 = vmatprep.subr.bf16.mxu0 0
    %3008 = vmatpush1.bf16.msra.mxu0 0
    %3009 = vmatprep.subr.bf16.mxu0 0
    %3010 = vmatpush1.bf16.msra.mxu0 0
    %3011 = vmatprep.subr.bf16.mxu0 0
    %3012 = vmatpush1.bf16.msra.mxu0 0
    %3013 = vmatprep.subr.bf16.mxu0 0
    %3014 = vmatpush1.bf16.msra.mxu0 0
    %3015 = vmatprep.subr.bf16.mxu0 0
    %3016 = vmatpush1.bf16.msra.mxu0 0
    %3017 = vmatprep.subr.bf16.mxu0 0
    %3018 = vmatpush1.bf16.msra.mxu0 0
    %3019 = vmatprep.subr.bf16.mxu0 0
    %3020 = vmatpush1.bf16.msra.mxu0 0
    %3021 = vmatprep.subr.bf16.mxu0 0
    %3022 = vmatpush1.bf16.msra.mxu0 0
    %3023 = vmatprep.subr.bf16.mxu0 0
    %3024 = vmatpush1.bf16.msra.mxu0 0
    %3025 = vmatprep.subr.bf16.mxu0 0
    %3026 = vmatpush1.bf16.msra.mxu0 0
    %3027 = vmatprep.subr.bf16.mxu0 0
    %3028 = vmatpush1.bf16.msra.mxu0 0
    %3029 = vmatprep.mubr.bf16.mxu0 0
    %3030 = vmatmul.mubr.bf16.gmra.mrb[0].mxu0 %v2995
    %v3031 = vpop.f32.mrb[0].mxu0
    %v3032 = vadd.f32 0.0, %v3031
    %v3033 = vpop.f32.mrb[0].mxu0
    %v3034 = vpop.f32.mrb[0].mxu0
    %v3035 = vpop.f32.mrb[0].mxu0
    %3036 = vdwg.mxu0
    %v3037 = vadd.f32 %v2928, %v3032
    %v3038 = vld [vmem:[#allocation7 + $0x80] sm:$0x1]
    %v3039 = vlaneseq
    %v3040 = vshrl.u32 %v3039, 7
    %v3041 = vsub.s32 0, %v3040
    %v3042 = vrot.slane %v3038, %v3041
    %v3043 = vadd.f32 %v3037, %v3042
    %vm3044 = vcmp.ge.f32.partialorder %v3043, 0.0
    %v3045 = vmul.f32 %v3043, 0.1
    %v3046 = vsel %vm3044, %v3043, %v3045
    %v3047 = vpack.c.bf16 %v3046, %v3046
    %v3048 = vld [vmem:[#allocation2 + $0xc0] sm:$0xf]
    %vm3049 = vcmask 64512
    %v3051 = vsel %vm3049, %v3048, 0
    %vm3053 = vcmask 1043456
    %v3055 = vsel %vm3053, %v3047, 0
    %3057 = vmatprep.subr.bf16.mxu0 0
    %3058 = vmatpush1.bf16.msra.mxu0 %v3055
    %3059 = vmatprep.subr.bf16.mxu0 0
    %3060 = vmatpush1.bf16.msra.mxu0 0
    %3061 = vmatprep.subr.bf16.mxu0 0
    %3062 = vmatpush1.bf16.msra.mxu0 0
    %3063 = vmatprep.subr.bf16.mxu0 0
    %3064 = vmatpush1.bf16.msra.mxu0 0
    %3065 = vmatprep.subr.bf16.mxu0 0
    %3066 = vmatpush1.bf16.msra.mxu0 0
    %3067 = vmatprep.subr.bf16.mxu0 0
    %3068 = vmatpush1.bf16.msra.mxu0 0
    %3069 = vmatprep.subr.bf16.mxu0 0
    %3070 = vmatpush1.bf16.msra.mxu0 0
    %3071 = vmatprep.subr.bf16.mxu0 0
    %3072 = vmatpush1.bf16.msra.mxu0 0
    %3073 = vmatprep.subr.bf16.mxu0 0
    %3074 = vmatpush1.bf16.msra.mxu0 0
    %3075 = vmatprep.subr.bf16.mxu0 0
    %3076 = vmatpush1.bf16.msra.mxu0 0
    %3077 = vmatprep.subr.bf16.mxu0 0
    %3078 = vmatpush1.bf16.msra.mxu0 0
    %3079 = vmatprep.subr.bf16.mxu0 0
    %3080 = vmatpush1.bf16.msra.mxu0 0
    %3081 = vmatprep.subr.bf16.mxu0 0
    %3082 = vmatpush1.bf16.msra.mxu0 0
    %3083 = vmatprep.subr.bf16.mxu0 0
    %3084 = vmatpush1.bf16.msra.mxu0 0
    %3085 = vmatprep.subr.bf16.mxu0 0
    %3086 = vmatpush1.bf16.msra.mxu0 0
    %3087 = vmatprep.subr.bf16.mxu0 0
    %3088 = vmatpush1.bf16.msra.mxu0 0
    %3089 = vmatprep.mubr.bf16.mxu0 0
    %3090 = vmatmul.mubr.bf16.gmra.mrb[0].mxu0 %v3051
    %v3091 = vpop.f32.mrb[0].mxu0
    %v3092 = vadd.f32 0.0, %v3091
    %v3093 = vpop.f32.mrb[0].mxu0
    %v3094 = vpop.f32.mrb[0].mxu0
    %v3095 = vpop.f32.mrb[0].mxu0
    %3096 = vdwg.mxu0
    %v3097 = vpack.c.bf16 %v3092, %v3092
    %v3098 = vld [vmem:[#allocation5 + $0x290] sm:$0xf]
    %v3099 = vld [vmem:[#allocation5 + $0x294] sm:$0xf]
    %v3100 = vld [vmem:[#allocation5 + $0x298] sm:$0xf]
    %v3101 = vld [vmem:[#allocation5 + $0x29c] sm:$0xf]
    %v3102 = vld [vmem:[#allocation5 + $0x2a0] sm:$0xf]
    %v3103 = vld [vmem:[#allocation5 + $0x2a4] sm:$0xf]
    %v3104 = vld [vmem:[#allocation5 + $0x2a8] sm:$0xf]
    %v3105 = vld [vmem:[#allocation5 + $0x2ac] sm:$0xf]
    %v3110 = vunpack.c.l.b16 %v3102
    %v3111 = vunpack.c.l.b16 %v3103
    %v3112 = vunpack.c.l.b16 %v3104
    %v3113 = vunpack.c.l.b16 %v3105
    %v3114 = vpack.c.b16 %v3111, %v3110
    %v3115 = vpack.c.b16 %v3113, %v3112
    %v3118 = vsel %vm109, %v3047, 0
    %3120 = vmatprep.subr.bf16.mxu0 0
    %3121 = vmatpush1.bf16.msra.mxu0 %v3114
    %3122 = vmatprep.subr.bf16.mxu0 0
    %3123 = vmatpush1.bf16.msra.mxu0 %v3115
    %3124 = vmatprep.subr.bf16.mxu0 0
    %3125 = vmatpush1.bf16.msra.mxu0 0
    %3126 = vmatprep.subr.bf16.mxu0 0
    %3127 = vmatpush1.bf16.msra.mxu0 0
    %3128 = vmatprep.subr.bf16.mxu0 0
    %3129 = vmatpush1.bf16.msra.mxu0 0
    %3130 = vmatprep.subr.bf16.mxu0 0
    %3131 = vmatpush1.bf16.msra.mxu0 0
    %3132 = vmatprep.subr.bf16.mxu0 0
    %3133 = vmatpush1.bf16.msra.mxu0 0
    %3134 = vmatprep.subr.bf16.mxu0 0
    %3135 = vmatpush1.bf16.msra.mxu0 0
    %3136 = vmatprep.subr.bf16.mxu0 0
    %3137 = vmatpush1.bf16.msra.mxu0 0
    %3138 = vmatprep.subr.bf16.mxu0 0
    %3139 = vmatpush1.bf16.msra.mxu0 0
    %3140 = vmatprep.subr.bf16.mxu0 0
    %3141 = vmatpush1.bf16.msra.mxu0 0
    %3142 = vmatprep.subr.bf16.mxu0 0
    %3143 = vmatpush1.bf16.msra.mxu0 0
    %3144 = vmatprep.subr.bf16.mxu0 0
    %3145 = vmatpush1.bf16.msra.mxu0 0
    %3146 = vmatprep.subr.bf16.mxu0 0
    %3147 = vmatpush1.bf16.msra.mxu0 0
    %3148 = vmatprep.subr.bf16.mxu0 0
    %3149 = vmatpush1.bf16.msra.mxu0 0
    %3150 = vmatprep.subr.bf16.mxu0 0
    %3151 = vmatpush1.bf16.msra.mxu0 0
    %3152 = vmatprep.mubr.bf16.mxu0 0
    %3153 = vmatmul.mubr.bf16.gmra.mrb[0].mxu0 %v3118
    %v3154 = vpop.f32.mrb[0].mxu0
    %v3155 = vadd.f32 0.0, %v3154
    %v3156 = vpop.f32.mrb[0].mxu0
    %v3157 = vpop.f32.mrb[0].mxu0
    %v3158 = vpop.f32.mrb[0].mxu0
    %3159 = vdwg.mxu0
    %v3164 = vunpack.c.l.b16 %v3098
    %v3165 = vunpack.c.l.b16 %v3099
    %v3166 = vunpack.c.l.b16 %v3100
    %v3167 = vunpack.c.l.b16 %v3101
    %v3168 = vpack.c.b16 %v3165, %v3164
    %v3169 = vpack.c.b16 %v3167, %v3166
    %v3173 = vsel %vm109, %v3097, 0
    %3175 = vmatprep.subr.bf16.mxu0 0
    %3176 = vmatpush1.bf16.msra.mxu0 %v3168
    %3177 = vmatprep.subr.bf16.mxu0 0
    %3178 = vmatpush1.bf16.msra.mxu0 %v3169
    %3179 = vmatprep.subr.bf16.mxu0 0
    %3180 = vmatpush1.bf16.msra.mxu0 0
    %3181 = vmatprep.subr.bf16.mxu0 0
    %3182 = vmatpush1.bf16.msra.mxu0 0
    %3183 = vmatprep.subr.bf16.mxu0 0
    %3184 = vmatpush1.bf16.msra.mxu0 0
    %3185 = vmatprep.subr.bf16.mxu0 0
    %3186 = vmatpush1.bf16.msra.mxu0 0
    %3187 = vmatprep.subr.bf16.mxu0 0
    %3188 = vmatpush1.bf16.msra.mxu0 0
    %3189 = vmatprep.subr.bf16.mxu0 0
    %3190 = vmatpush1.bf16.msra.mxu0 0
    %3191 = vmatprep.subr.bf16.mxu0 0
    %3192 = vmatpush1.bf16.msra.mxu0 0
    %3193 = vmatprep.subr.bf16.mxu0 0
    %3194 = vmatpush1.bf16.msra.mxu0 0
    %3195 = vmatprep.subr.bf16.mxu0 0
    %3196 = vmatpush1.bf16.msra.mxu0 0
    %3197 = vmatprep.subr.bf16.mxu0 0
    %3198 = vmatpush1.bf16.msra.mxu0 0
    %3199 = vmatprep.subr.bf16.mxu0 0
    %3200 = vmatpush1.bf16.msra.mxu0 0
    %3201 = vmatprep.subr.bf16.mxu0 0
    %3202 = vmatpush1.bf16.msra.mxu0 0
    %3203 = vmatprep.subr.bf16.mxu0 0
    %3204 = vmatpush1.bf16.msra.mxu0 0
    %3205 = vmatprep.subr.bf16.mxu0 0
    %3206 = vmatpush1.bf16.msra.mxu0 0
    %3207 = vmatprep.mubr.bf16.mxu0 0
    %3208 = vmatmul.mubr.bf16.gmra.mrb[0].mxu0 %v3173
    %v3209 = vpop.f32.mrb[0].mxu0
    %v3210 = vadd.f32 %v3155, %v3209
    %v3211 = vpop.f32.mrb[0].mxu0
    %v3212 = vpop.f32.mrb[0].mxu0
    %v3213 = vpop.f32.mrb[0].mxu0
    %3214 = vdwg.mxu0
    %v3215 = vld [vmem:[#allocation2 + $0xc8] sm:$0xf]
    %v3217 = vsel %vm3049, %v3215, 0
    %3219 = vmatprep.subr.bf16.mxu0 0
    %3220 = vmatpush1.bf16.msra.mxu0 %v3055
    %3221 = vmatprep.subr.bf16.mxu0 0
    %3222 = vmatpush1.bf16.msra.mxu0 0
    %3223 = vmatprep.subr.bf16.mxu0 0
    %3224 = vmatpush1.bf16.msra.mxu0 0
    %3225 = vmatprep.subr.bf16.mxu0 0
    %3226 = vmatpush1.bf16.msra.mxu0 0
    %3227 = vmatprep.subr.bf16.mxu0 0
    %3228 = vmatpush1.bf16.msra.mxu0 0
    %3229 = vmatprep.subr.bf16.mxu0 0
    %3230 = vmatpush1.bf16.msra.mxu0 0
    %3231 = vmatprep.subr.bf16.mxu0 0
    %3232 = vmatpush1.bf16.msra.mxu0 0
    %3233 = vmatprep.subr.bf16.mxu0 0
    %3234 = vmatpush1.bf16.msra.mxu0 0
    %3235 = vmatprep.subr.bf16.mxu0 0
    %3236 = vmatpush1.bf16.msra.mxu0 0
    %3237 = vmatprep.subr.bf16.mxu0 0
    %3238 = vmatpush1.bf16.msra.mxu0 0
    %3239 = vmatprep.subr.bf16.mxu0 0
    %3240 = vmatpush1.bf16.msra.mxu0 0
    %3241 = vmatprep.subr.bf16.mxu0 0
    %3242 = vmatpush1.bf16.msra.mxu0 0
    %3243 = vmatprep.subr.bf16.mxu0 0
    %3244 = vmatpush1.bf16.msra.mxu0 0
    %3245 = vmatprep.subr.bf16.mxu0 0
    %3246 = vmatpush1.bf16.msra.mxu0 0
    %3247 = vmatprep.subr.bf16.mxu0 0
    %3248 = vmatpush1.bf16.msra.mxu0 0
    %3249 = vmatprep.subr.bf16.mxu0 0
    %3250 = vmatpush1.bf16.msra.mxu0 0
    %3251 = vmatprep.mubr.bf16.mxu0 0
    %3252 = vmatmul.mubr.bf16.gmra.mrb[0].mxu0 %v3217
    %v3253 = vpop.f32.mrb[0].mxu0
    %v3254 = vadd.f32 0.0, %v3253
    %v3255 = vpop.f32.mrb[0].mxu0
    %v3256 = vpop.f32.mrb[0].mxu0
    %v3257 = vpop.f32.mrb[0].mxu0
    %3258 = vdwg.mxu0
    %v3259 = vpack.c.bf16 %v3254, %v3254
    %v3260 = vld [vmem:[#allocation5 + $0x2b0] sm:$0xf]
    %v3261 = vld [vmem:[#allocation5 + $0x2b4] sm:$0xf]
    %v3262 = vld [vmem:[#allocation5 + $0x2b8] sm:$0xf]
    %v3263 = vld [vmem:[#allocation5 + $0x2bc] sm:$0xf]
    %v3268 = vunpack.c.l.b16 %v3260
    %v3269 = vunpack.c.l.b16 %v3261
    %v3270 = vunpack.c.l.b16 %v3262
    %v3271 = vunpack.c.l.b16 %v3263
    %v3272 = vpack.c.b16 %v3269, %v3268
    %v3273 = vpack.c.b16 %v3271, %v3270
    %v3277 = vsel %vm109, %v3259, 0
    %3279 = vmatprep.subr.bf16.mxu0 0
    %3280 = vmatpush1.bf16.msra.mxu0 %v3272
    %3281 = vmatprep.subr.bf16.mxu0 0
    %3282 = vmatpush1.bf16.msra.mxu0 %v3273
    %3283 = vmatprep.subr.bf16.mxu0 0
    %3284 = vmatpush1.bf16.msra.mxu0 0
    %3285 = vmatprep.subr.bf16.mxu0 0
    %3286 = vmatpush1.bf16.msra.mxu0 0
    %3287 = vmatprep.subr.bf16.mxu0 0
    %3288 = vmatpush1.bf16.msra.mxu0 0
    %3289 = vmatprep.subr.bf16.mxu0 0
    %3290 = vmatpush1.bf16.msra.mxu0 0
    %3291 = vmatprep.subr.bf16.mxu0 0
    %3292 = vmatpush1.bf16.msra.mxu0 0
    %3293 = vmatprep.subr.bf16.mxu0 0
    %3294 = vmatpush1.bf16.msra.mxu0 0
    %3295 = vmatprep.subr.bf16.mxu0 0
    %3296 = vmatpush1.bf16.msra.mxu0 0
    %3297 = vmatprep.subr.bf16.mxu0 0
    %3298 = vmatpush1.bf16.msra.mxu0 0
    %3299 = vmatprep.subr.bf16.mxu0 0
    %3300 = vmatpush1.bf16.msra.mxu0 0
    %3301 = vmatprep.subr.bf16.mxu0 0
    %3302 = vmatpush1.bf16.msra.mxu0 0
    %3303 = vmatprep.subr.bf16.mxu0 0
    %3304 = vmatpush1.bf16.msra.mxu0 0
    %3305 = vmatprep.subr.bf16.mxu0 0
    %3306 = vmatpush1.bf16.msra.mxu0 0
    %3307 = vmatprep.subr.bf16.mxu0 0
    %3308 = vmatpush1.bf16.msra.mxu0 0
    %3309 = vmatprep.subr.bf16.mxu0 0
    %3310 = vmatpush1.bf16.msra.mxu0 0
    %3311 = vmatprep.mubr.bf16.mxu0 0
    %3312 = vmatmul.mubr.bf16.gmra.mrb[0].mxu0 %v3277
    %v3313 = vpop.f32.mrb[0].mxu0
    %v3314 = vadd.f32 0.0, %v3313
    %v3315 = vpop.f32.mrb[0].mxu0
    %v3316 = vpop.f32.mrb[0].mxu0
    %v3317 = vpop.f32.mrb[0].mxu0
    %3318 = vdwg.mxu0
    %v3319 = vadd.f32 %v3210, %v3314
    %v3320 = vld [vmem:[#allocation7 + $0x90] sm:$0x1]
    %v3321 = vlaneseq
    %v3322 = vshrl.u32 %v3321, 7
    %v3323 = vsub.s32 0, %v3322
    %v3324 = vrot.slane %v3320, %v3323
    %v3325 = vadd.f32 %v3319, %v3324
    %vm3326 = vcmp.ge.f32.partialorder %v3325, 0.0
    %v3327 = vmul.f32 %v3325, 0.1
    %v3328 = vsel %vm3326, %v3325, %v3327
    %v3329 = vpack.c.bf16 %v3328, %v3328
    %v3330 = vld [vmem:[#allocation2 + $0xd0] sm:$0x3]
    %v3332 = vsel %vm3049, %v3330, 0
    %v3335 = vsel %vm3053, %v3329, 0
    %3337 = vmatprep.subr.bf16.mxu0 0
    %3338 = vmatpush1.bf16.msra.mxu0 %v3335
    %3339 = vmatprep.subr.bf16.mxu0 0
    %3340 = vmatpush1.bf16.msra.mxu0 0
    %3341 = vmatprep.subr.bf16.mxu0 0
    %3342 = vmatpush1.bf16.msra.mxu0 0
    %3343 = vmatprep.subr.bf16.mxu0 0
    %3344 = vmatpush1.bf16.msra.mxu0 0
    %3345 = vmatprep.subr.bf16.mxu0 0
    %3346 = vmatpush1.bf16.msra.mxu0 0
    %3347 = vmatprep.subr.bf16.mxu0 0
    %3348 = vmatpush1.bf16.msra.mxu0 0
    %3349 = vmatprep.subr.bf16.mxu0 0
    %3350 = vmatpush1.bf16.msra.mxu0 0
    %3351 = vmatprep.subr.bf16.mxu0 0
    %3352 = vmatpush1.bf16.msra.mxu0 0
    %3353 = vmatprep.subr.bf16.mxu0 0
    %3354 = vmatpush1.bf16.msra.mxu0 0
    %3355 = vmatprep.subr.bf16.mxu0 0
    %3356 = vmatpush1.bf16.msra.mxu0 0
    %3357 = vmatprep.subr.bf16.mxu0 0
    %3358 = vmatpush1.bf16.msra.mxu0 0
    %3359 = vmatprep.subr.bf16.mxu0 0
    %3360 = vmatpush1.bf16.msra.mxu0 0
    %3361 = vmatprep.subr.bf16.mxu0 0
    %3362 = vmatpush1.bf16.msra.mxu0 0
    %3363 = vmatprep.subr.bf16.mxu0 0
    %3364 = vmatpush1.bf16.msra.mxu0 0
    %3365 = vmatprep.subr.bf16.mxu0 0
    %3366 = vmatpush1.bf16.msra.mxu0 0
    %3367 = vmatprep.subr.bf16.mxu0 0
    %3368 = vmatpush1.bf16.msra.mxu0 0
    %3369 = vmatprep.mubr.bf16.mxu0 0
    %3370 = vmatmul.mubr.bf16.gmra.mrb[0].mxu0 %v3332
    %v3371 = vpop.f32.mrb[0].mxu0
    %v3372 = vadd.f32 0.0, %v3371
    %v3373 = vpop.f32.mrb[0].mxu0
    %v3374 = vpop.f32.mrb[0].mxu0
    %v3375 = vpop.f32.mrb[0].mxu0
    %3376 = vdwg.mxu0
    %v3377 = vpack.c.bf16 %v3372, %v3372
    %v3378 = vld [vmem:[#allocation5 + $0x2c0] sm:$0xf]
    %v3379 = vld [vmem:[#allocation5 + $0x2c4] sm:$0xf]
    %v3380 = vld [vmem:[#allocation5 + $0x2c8] sm:$0xf]
    %v3381 = vld [vmem:[#allocation5 + $0x2cc] sm:$0xf]
    %v3382 = vld [vmem:[#allocation2 + $0xd8] sm:$0x3]
    %v3384 = vsel %vm3049, %v3382, 0
    %3386 = vmatprep.subr.bf16.mxu0 0
    %3387 = vmatpush1.bf16.msra.mxu0 %v3335
    %3388 = vmatprep.subr.bf16.mxu0 0
    %3389 = vmatpush1.bf16.msra.mxu0 0
    %3390 = vmatprep.subr.bf16.mxu0 0
    %3391 = vmatpush1.bf16.msra.mxu0 0
    %3392 = vmatprep.subr.bf16.mxu0 0
    %3393 = vmatpush1.bf16.msra.mxu0 0
    %3394 = vmatprep.subr.bf16.mxu0 0
    %3395 = vmatpush1.bf16.msra.mxu0 0
    %3396 = vmatprep.subr.bf16.mxu0 0
    %3397 = vmatpush1.bf16.msra.mxu0 0
    %3398 = vmatprep.subr.bf16.mxu0 0
    %3399 = vmatpush1.bf16.msra.mxu0 0
    %3400 = vmatprep.subr.bf16.mxu0 0
    %3401 = vmatpush1.bf16.msra.mxu0 0
    %3402 = vmatprep.subr.bf16.mxu0 0
    %3403 = vmatpush1.bf16.msra.mxu0 0
    %3404 = vmatprep.subr.bf16.mxu0 0
    %3405 = vmatpush1.bf16.msra.mxu0 0
    %3406 = vmatprep.subr.bf16.mxu0 0
    %3407 = vmatpush1.bf16.msra.mxu0 0
    %3408 = vmatprep.subr.bf16.mxu0 0
    %3409 = vmatpush1.bf16.msra.mxu0 0
    %3410 = vmatprep.subr.bf16.mxu0 0
    %3411 = vmatpush1.bf16.msra.mxu0 0
    %3412 = vmatprep.subr.bf16.mxu0 0
    %3413 = vmatpush1.bf16.msra.mxu0 0
    %3414 = vmatprep.subr.bf16.mxu0 0
    %3415 = vmatpush1.bf16.msra.mxu0 0
    %3416 = vmatprep.subr.bf16.mxu0 0
    %3417 = vmatpush1.bf16.msra.mxu0 0
    %3418 = vmatprep.mubr.bf16.mxu0 0
    %3419 = vmatmul.mubr.bf16.gmra.mrb[0].mxu0 %v3384
    %v3420 = vpop.f32.mrb[0].mxu0
    %v3421 = vadd.f32 0.0, %v3420
    %v3422 = vpop.f32.mrb[0].mxu0
    %v3423 = vpop.f32.mrb[0].mxu0
    %v3424 = vpop.f32.mrb[0].mxu0
    %3425 = vdwg.mxu0
    %v3426 = vpack.c.bf16 %v3421, %v3421
    %v3427 = vld [vmem:[#allocation5 + $0x2d0] sm:$0xf]
    %v3428 = vld [vmem:[#allocation5 + $0x2d4] sm:$0xf]
    %v3429 = vld [vmem:[#allocation5 + $0x2d8] sm:$0xf]
    %v3430 = vld [vmem:[#allocation5 + $0x2dc] sm:$0xf]
    %v3435 = vunpack.c.l.b16 %v3427
    %v3436 = vunpack.c.l.b16 %v3428
    %v3437 = vunpack.c.l.b16 %v3429
    %v3438 = vunpack.c.l.b16 %v3430
    %v3439 = vpack.c.b16 %v3436, %v3435
    %v3440 = vpack.c.b16 %v3438, %v3437
    %v3444 = vsel %vm109, %v3426, 0
    %3446 = vmatprep.subr.bf16.mxu0 0
    %3447 = vmatpush1.bf16.msra.mxu0 %v3439
    %3448 = vmatprep.subr.bf16.mxu0 0
    %3449 = vmatpush1.bf16.msra.mxu0 %v3440
    %3450 = vmatprep.subr.bf16.mxu0 0
    %3451 = vmatpush1.bf16.msra.mxu0 0
    %3452 = vmatprep.subr.bf16.mxu0 0
    %3453 = vmatpush1.bf16.msra.mxu0 0
    %3454 = vmatprep.subr.bf16.mxu0 0
    %3455 = vmatpush1.bf16.msra.mxu0 0
    %3456 = vmatprep.subr.bf16.mxu0 0
    %3457 = vmatpush1.bf16.msra.mxu0 0
    %3458 = vmatprep.subr.bf16.mxu0 0
    %3459 = vmatpush1.bf16.msra.mxu0 0
    %3460 = vmatprep.subr.bf16.mxu0 0
    %3461 = vmatpush1.bf16.msra.mxu0 0
    %3462 = vmatprep.subr.bf16.mxu0 0
    %3463 = vmatpush1.bf16.msra.mxu0 0
    %3464 = vmatprep.subr.bf16.mxu0 0
    %3465 = vmatpush1.bf16.msra.mxu0 0
    %3466 = vmatprep.subr.bf16.mxu0 0
    %3467 = vmatpush1.bf16.msra.mxu0 0
    %3468 = vmatprep.subr.bf16.mxu0 0
    %3469 = vmatpush1.bf16.msra.mxu0 0
    %3470 = vmatprep.subr.bf16.mxu0 0
    %3471 = vmatpush1.bf16.msra.mxu0 0
    %3472 = vmatprep.subr.bf16.mxu0 0
    %3473 = vmatpush1.bf16.msra.mxu0 0
    %3474 = vmatprep.subr.bf16.mxu0 0
    %3475 = vmatpush1.bf16.msra.mxu0 0
    %3476 = vmatprep.subr.bf16.mxu0 0
    %3477 = vmatpush1.bf16.msra.mxu0 0
    %3478 = vmatprep.mubr.bf16.mxu0 0
    %3479 = vmatmul.mubr.bf16.gmra.mrb[0].mxu0 %v3444
    %v3480 = vpop.f32.mrb[0].mxu0
    %v3481 = vadd.f32 0.0, %v3480
    %v3482 = vpop.f32.mrb[0].mxu0
    %v3483 = vpop.f32.mrb[0].mxu0
    %v3484 = vpop.f32.mrb[0].mxu0
    %3485 = vdwg.mxu0
    %v3490 = vunpack.c.l.b16 %v3378
    %v3491 = vunpack.c.l.b16 %v3379
    %v3492 = vunpack.c.l.b16 %v3380
    %v3493 = vunpack.c.l.b16 %v3381
    %v3494 = vpack.c.b16 %v3491, %v3490
    %v3495 = vpack.c.b16 %v3493, %v3492
    %v3499 = vsel %vm109, %v3377, 0
    %3501 = vmatprep.subr.bf16.mxu0 0
    %3502 = vmatpush1.bf16.msra.mxu0 %v3494
    %3503 = vmatprep.subr.bf16.mxu0 0
    %3504 = vmatpush1.bf16.msra.mxu0 %v3495
    %3505 = vmatprep.subr.bf16.mxu0 0
    %3506 = vmatpush1.bf16.msra.mxu0 0
    %3507 = vmatprep.subr.bf16.mxu0 0
    %3508 = vmatpush1.bf16.msra.mxu0 0
    %3509 = vmatprep.subr.bf16.mxu0 0
    %3510 = vmatpush1.bf16.msra.mxu0 0
    %3511 = vmatprep.subr.bf16.mxu0 0
    %3512 = vmatpush1.bf16.msra.mxu0 0
    %3513 = vmatprep.subr.bf16.mxu0 0
    %3514 = vmatpush1.bf16.msra.mxu0 0
    %3515 = vmatprep.subr.bf16.mxu0 0
    %3516 = vmatpush1.bf16.msra.mxu0 0
    %3517 = vmatprep.subr.bf16.mxu0 0
    %3518 = vmatpush1.bf16.msra.mxu0 0
    %3519 = vmatprep.subr.bf16.mxu0 0
    %3520 = vmatpush1.bf16.msra.mxu0 0
    %3521 = vmatprep.subr.bf16.mxu0 0
    %3522 = vmatpush1.bf16.msra.mxu0 0
    %3523 = vmatprep.subr.bf16.mxu0 0
    %3524 = vmatpush1.bf16.msra.mxu0 0
    %3525 = vmatprep.subr.bf16.mxu0 0
    %3526 = vmatpush1.bf16.msra.mxu0 0
    %3527 = vmatprep.subr.bf16.mxu0 0
    %3528 = vmatpush1.bf16.msra.mxu0 0
    %3529 = vmatprep.subr.bf16.mxu0 0
    %3530 = vmatpush1.bf16.msra.mxu0 0
    %3531 = vmatprep.subr.bf16.mxu0 0
    %3532 = vmatpush1.bf16.msra.mxu0 0
    %3533 = vmatprep.mubr.bf16.mxu0 0
    %3534 = vmatmul.mubr.bf16.gmra.mrb[0].mxu0 %v3499
    %v3535 = vpop.f32.mrb[0].mxu0
    %v3536 = vadd.f32 %v3481, %v3535
    %v3537 = vpop.f32.mrb[0].mxu0
    %v3538 = vpop.f32.mrb[0].mxu0
    %v3539 = vpop.f32.mrb[0].mxu0
    %3540 = vdwg.mxu0
    %v3541 = vld [vmem:[#allocation2 + $0xe0] sm:$0x3]
    %v3543 = vsel %vm3049, %v3541, 0
    %3545 = vmatprep.subr.bf16.mxu0 0
    %3546 = vmatpush1.bf16.msra.mxu0 %v3335
    %3547 = vmatprep.subr.bf16.mxu0 0
    %3548 = vmatpush1.bf16.msra.mxu0 0
    %3549 = vmatprep.subr.bf16.mxu0 0
    %3550 = vmatpush1.bf16.msra.mxu0 0
    %3551 = vmatprep.subr.bf16.mxu0 0
    %3552 = vmatpush1.bf16.msra.mxu0 0
    %3553 = vmatprep.subr.bf16.mxu0 0
    %3554 = vmatpush1.bf16.msra.mxu0 0
    %3555 = vmatprep.subr.bf16.mxu0 0
    %3556 = vmatpush1.bf16.msra.mxu0 0
    %3557 = vmatprep.subr.bf16.mxu0 0
    %3558 = vmatpush1.bf16.msra.mxu0 0
    %3559 = vmatprep.subr.bf16.mxu0 0
    %3560 = vmatpush1.bf16.msra.mxu0 0
    %3561 = vmatprep.subr.bf16.mxu0 0
    %3562 = vmatpush1.bf16.msra.mxu0 0
    %3563 = vmatprep.subr.bf16.mxu0 0
    %3564 = vmatpush1.bf16.msra.mxu0 0
    %3565 = vmatprep.subr.bf16.mxu0 0
    %3566 = vmatpush1.bf16.msra.mxu0 0
    %3567 = vmatprep.subr.bf16.mxu0 0
    %3568 = vmatpush1.bf16.msra.mxu0 0
    %3569 = vmatprep.subr.bf16.mxu0 0
    %3570 = vmatpush1.bf16.msra.mxu0 0
    %3571 = vmatprep.subr.bf16.mxu0 0
    %3572 = vmatpush1.bf16.msra.mxu0 0
    %3573 = vmatprep.subr.bf16.mxu0 0
    %3574 = vmatpush1.bf16.msra.mxu0 0
    %3575 = vmatprep.subr.bf16.mxu0 0
    %3576 = vmatpush1.bf16.msra.mxu0 0
    %3577 = vmatprep.mubr.bf16.mxu0 0
    %3578 = vmatmul.mubr.bf16.gmra.mrb[0].mxu0 %v3543
    %v3579 = vpop.f32.mrb[0].mxu0
    %v3580 = vadd.f32 0.0, %v3579
    %v3581 = vpop.f32.mrb[0].mxu0
    %v3582 = vpop.f32.mrb[0].mxu0
    %v3583 = vpop.f32.mrb[0].mxu0
    %3584 = vdwg.mxu0
    %v3585 = vpack.c.bf16 %v3580, %v3580
    %v3586 = vld [vmem:[#allocation5 + $0x2e0] sm:$0xf]
    %v3587 = vld [vmem:[#allocation5 + $0x2e4] sm:$0xf]
    %v3588 = vld [vmem:[#allocation5 + $0x2e8] sm:$0xf]
    %v3589 = vld [vmem:[#allocation5 + $0x2ec] sm:$0xf]
    %v3594 = vunpack.c.l.b16 %v3586
    %v3595 = vunpack.c.l.b16 %v3587
    %v3596 = vunpack.c.l.b16 %v3588
    %v3597 = vunpack.c.l.b16 %v3589
    %v3598 = vpack.c.b16 %v3595, %v3594
    %v3599 = vpack.c.b16 %v3597, %v3596
    %v3603 = vsel %vm109, %v3585, 0
    %3605 = vmatprep.subr.bf16.mxu0 0
    %3606 = vmatpush1.bf16.msra.mxu0 %v3598
    %3607 = vmatprep.subr.bf16.mxu0 0
    %3608 = vmatpush1.bf16.msra.mxu0 %v3599
    %3609 = vmatprep.subr.bf16.mxu0 0
    %3610 = vmatpush1.bf16.msra.mxu0 0
    %3611 = vmatprep.subr.bf16.mxu0 0
    %3612 = vmatpush1.bf16.msra.mxu0 0
    %3613 = vmatprep.subr.bf16.mxu0 0
    %3614 = vmatpush1.bf16.msra.mxu0 0
    %3615 = vmatprep.subr.bf16.mxu0 0
    %3616 = vmatpush1.bf16.msra.mxu0 0
    %3617 = vmatprep.subr.bf16.mxu0 0
    %3618 = vmatpush1.bf16.msra.mxu0 0
    %3619 = vmatprep.subr.bf16.mxu0 0
    %3620 = vmatpush1.bf16.msra.mxu0 0
    %3621 = vmatprep.subr.bf16.mxu0 0
    %3622 = vmatpush1.bf16.msra.mxu0 0
    %3623 = vmatprep.subr.bf16.mxu0 0
    %3624 = vmatpush1.bf16.msra.mxu0 0
    %3625 = vmatprep.subr.bf16.mxu0 0
    %3626 = vmatpush1.bf16.msra.mxu0 0
    %3627 = vmatprep.subr.bf16.mxu0 0
    %3628 = vmatpush1.bf16.msra.mxu0 0
    %3629 = vmatprep.subr.bf16.mxu0 0
    %3630 = vmatpush1.bf16.msra.mxu0 0
    %3631 = vmatprep.subr.bf16.mxu0 0
    %3632 = vmatpush1.bf16.msra.mxu0 0
    %3633 = vmatprep.subr.bf16.mxu0 0
    %3634 = vmatpush1.bf16.msra.mxu0 0
    %3635 = vmatprep.subr.bf16.mxu0 0
    %3636 = vmatpush1.bf16.msra.mxu0 0
    %3637 = vmatprep.mubr.bf16.mxu0 0
    %3638 = vmatmul.mubr.bf16.gmra.mrb[0].mxu0 %v3603
    %v3639 = vpop.f32.mrb[0].mxu0
    %v3640 = vadd.f32 0.0, %v3639
    %v3641 = vpop.f32.mrb[0].mxu0
    %v3642 = vpop.f32.mrb[0].mxu0
    %v3643 = vpop.f32.mrb[0].mxu0
    %3644 = vdwg.mxu0
    %v3645 = vadd.f32 %v3536, %v3640
    %v3646 = vld [vmem:[#allocation7 + $0xa0] sm:$0x1]
    %v3647 = vlaneseq
    %v3648 = vshrl.u32 %v3647, 7
    %v3649 = vsub.s32 0, %v3648
    %v3650 = vrot.slane %v3646, %v3649
    %v3651 = vadd.f32 %v3645, %v3650
    %vm3652 = vcmp.ge.f32.partialorder %v3651, 0.0
    %v3653 = vmul.f32 %v3651, 0.1
    %v3654 = vsel %vm3652, %v3651, %v3653
    %v3655 = vpack.c.bf16 %v3654, %v3654
    %v3656 = vld [vmem:[#allocation5 + $0x2f0] sm:$0xf]
    %v3657 = vld [vmem:[#allocation5 + $0x2f4] sm:$0xf]
    %v3658 = vld [vmem:[#allocation7 + $0xb0] sm:$0x1]
    %v3659 = vlaneseq
    %v3660 = vshrl.u32 %v3659, 7
    %v3661 = vsub.s32 0, %v3660
    %v3662 = vrot.slane %v3658, %v3661
    %v3665 = vunpack.c.l.b16 %v3656
    %v3666 = vunpack.c.l.b16 %v3657
    %v3667 = vpack.c.b16 %v3666, %v3665
    %v3670 = vsel %vm1990, %v3655, 0
    %3672 = vmatprep.subr.bf16.mxu0 0
    %3673 = vmatpush1.bf16.msra.mxu0 %v3667
    %3674 = vmatprep.subr.bf16.mxu0 0
    %3675 = vmatpush1.bf16.msra.mxu0 0
    %3676 = vmatprep.subr.bf16.mxu0 0
    %3677 = vmatpush1.bf16.msra.mxu0 0
    %3678 = vmatprep.subr.bf16.mxu0 0
    %3679 = vmatpush1.bf16.msra.mxu0 0
    %3680 = vmatprep.subr.bf16.mxu0 0
    %3681 = vmatpush1.bf16.msra.mxu0 0
    %3682 = vmatprep.subr.bf16.mxu0 0
    %3683 = vmatpush1.bf16.msra.mxu0 0
    %3684 = vmatprep.subr.bf16.mxu0 0
    %3685 = vmatpush1.bf16.msra.mxu0 0
    %3686 = vmatprep.subr.bf16.mxu0 0
    %3687 = vmatpush1.bf16.msra.mxu0 0
    %3688 = vmatprep.subr.bf16.mxu0 0
    %3689 = vmatpush1.bf16.msra.mxu0 0
    %3690 = vmatprep.subr.bf16.mxu0 0
    %3691 = vmatpush1.bf16.msra.mxu0 0
    %3692 = vmatprep.subr.bf16.mxu0 0
    %3693 = vmatpush1.bf16.msra.mxu0 0
    %3694 = vmatprep.subr.bf16.mxu0 0
    %3695 = vmatpush1.bf16.msra.mxu0 0
    %3696 = vmatprep.subr.bf16.mxu0 0
    %3697 = vmatpush1.bf16.msra.mxu0 0
    %3698 = vmatprep.subr.bf16.mxu0 0
    %3699 = vmatpush1.bf16.msra.mxu0 0
    %3700 = vmatprep.subr.bf16.mxu0 0
    %3701 = vmatpush1.bf16.msra.mxu0 0
    %3702 = vmatprep.subr.bf16.mxu0 0
    %3703 = vmatpush1.bf16.msra.mxu0 0
    %3704 = vmatprep.mubr.bf16.mxu0 0
    %3705 = vmatmul.mubr.bf16.gmra.mrb[0].mxu0 %v3670
    %v3706 = vpop.f32.mrb[0].mxu0
    %v3707 = vadd.f32 %v3662, %v3706
    %v3708 = vpop.f32.mrb[0].mxu0
    %v3709 = vpop.f32.mrb[0].mxu0
    %v3710 = vpop.f32.mrb[0].mxu0
    %3711 = vdwg.mxu0
    %vm3712 = vcmp.ge.f32.partialorder %v3707, 0.0
    %v3713 = vmul.f32 %v3707, 0.1
    %v3714 = vsel %vm3712, %v3707, %v3713
    %v3715 = vadd.f32 %v3714, %v2724
    %v3716 = vpack.c.bf16 %v3715, %v3715
    %v3717 = vld [vmem:[#allocation5 + $0x2f8] sm:$0xf]
    %v3718 = vld [vmem:[#allocation5 + $0x2fc] sm:$0xf]
    %v3719 = vld [vmem:[#allocation7 + $0xc0] sm:$0x1]
    %v3720 = vlaneseq
    %v3721 = vshrl.u32 %v3720, 7
    %v3722 = vsub.s32 0, %v3721
    %v3723 = vrot.slane %v3719, %v3722
    %v3726 = vunpack.c.l.b16 %v3717
    %v3727 = vunpack.c.l.b16 %v3718
    %v3728 = vpack.c.b16 %v3727, %v3726
    %v3731 = vsel %vm1990, %v3716, 0
    %3733 = vmatprep.subr.bf16.mxu0 0
    %3734 = vmatpush1.bf16.msra.mxu0 %v3728
    %3735 = vmatprep.subr.bf16.mxu0 0
    %3736 = vmatpush1.bf16.msra.mxu0 0
    %3737 = vmatprep.subr.bf16.mxu0 0
    %3738 = vmatpush1.bf16.msra.mxu0 0
    %3739 = vmatprep.subr.bf16.mxu0 0
    %3740 = vmatpush1.bf16.msra.mxu0 0
    %3741 = vmatprep.subr.bf16.mxu0 0
    %3742 = vmatpush1.bf16.msra.mxu0 0
    %3743 = vmatprep.subr.bf16.mxu0 0
    %3744 = vmatpush1.bf16.msra.mxu0 0
    %3745 = vmatprep.subr.bf16.mxu0 0
    %3746 = vmatpush1.bf16.msra.mxu0 0
    %3747 = vmatprep.subr.bf16.mxu0 0
    %3748 = vmatpush1.bf16.msra.mxu0 0
    %3749 = vmatprep.subr.bf16.mxu0 0
    %3750 = vmatpush1.bf16.msra.mxu0 0
    %3751 = vmatprep.subr.bf16.mxu0 0
    %3752 = vmatpush1.bf16.msra.mxu0 0
    %3753 = vmatprep.subr.bf16.mxu0 0
    %3754 = vmatpush1.bf16.msra.mxu0 0
    %3755 = vmatprep.subr.bf16.mxu0 0
    %3756 = vmatpush1.bf16.msra.mxu0 0
    %3757 = vmatprep.subr.bf16.mxu0 0
    %3758 = vmatpush1.bf16.msra.mxu0 0
    %3759 = vmatprep.subr.bf16.mxu0 0
    %3760 = vmatpush1.bf16.msra.mxu0 0
    %3761 = vmatprep.subr.bf16.mxu0 0
    %3762 = vmatpush1.bf16.msra.mxu0 0
    %3763 = vmatprep.subr.bf16.mxu0 0
    %3764 = vmatpush1.bf16.msra.mxu0 0
    %3765 = vmatprep.mubr.bf16.mxu0 0
    %3766 = vmatmul.mubr.bf16.gmra.mrb[0].mxu0 %v3731
    %v3767 = vpop.f32.mrb[0].mxu0
    %v3768 = vadd.f32 %v3723, %v3767
    %v3769 = vpop.f32.mrb[0].mxu0
    %v3770 = vpop.f32.mrb[0].mxu0
    %v3771 = vpop.f32.mrb[0].mxu0
    %3772 = vdwg.mxu0
    %vm3773 = vcmp.ge.f32.partialorder %v3768, 0.0
    %v3774 = vmul.f32 %v3768, 0.1
    %v3775 = vsel %vm3773, %v3768, %v3774
    %v3776 = vpack.c.bf16 %v3775, %v3775
    %v3777 = vld [vmem:[#allocation2 + $0xe8] sm:$0x1]
    %vm3778 = vcmask 31744
    %v3780 = vsel %vm3778, %v3777, 0
    %vm3782 = vcmask 1041408
    %v3784 = vsel %vm3782, %v3776, 0
    %3786 = vmatprep.subr.bf16.mxu0 0
    %3787 = vmatpush1.bf16.msra.mxu0 %v3784
    %3788 = vmatprep.subr.bf16.mxu0 0
    %3789 = vmatpush1.bf16.msra.mxu0 0
    %3790 = vmatprep.subr.bf16.mxu0 0
    %3791 = vmatpush1.bf16.msra.mxu0 0
    %3792 = vmatprep.subr.bf16.mxu0 0
    %3793 = vmatpush1.bf16.msra.mxu0 0
    %3794 = vmatprep.subr.bf16.mxu0 0
    %3795 = vmatpush1.bf16.msra.mxu0 0
    %3796 = vmatprep.subr.bf16.mxu0 0
    %3797 = vmatpush1.bf16.msra.mxu0 0
    %3798 = vmatprep.subr.bf16.mxu0 0
    %3799 = vmatpush1.bf16.msra.mxu0 0
    %3800 = vmatprep.subr.bf16.mxu0 0
    %3801 = vmatpush1.bf16.msra.mxu0 0
    %3802 = vmatprep.subr.bf16.mxu0 0
    %3803 = vmatpush1.bf16.msra.mxu0 0
    %3804 = vmatprep.subr.bf16.mxu0 0
    %3805 = vmatpush1.bf16.msra.mxu0 0
    %3806 = vmatprep.subr.bf16.mxu0 0
    %3807 = vmatpush1.bf16.msra.mxu0 0
    %3808 = vmatprep.subr.bf16.mxu0 0
    %3809 = vmatpush1.bf16.msra.mxu0 0
    %3810 = vmatprep.subr.bf16.mxu0 0
    %3811 = vmatpush1.bf16.msra.mxu0 0
    %3812 = vmatprep.subr.bf16.mxu0 0
    %3813 = vmatpush1.bf16.msra.mxu0 0
    %3814 = vmatprep.subr.bf16.mxu0 0
    %3815 = vmatpush1.bf16.msra.mxu0 0
    %3816 = vmatprep.subr.bf16.mxu0 0
    %3817 = vmatpush1.bf16.msra.mxu0 0
    %3818 = vmatprep.mubr.bf16.mxu0 0
    %3819 = vmatmul.mubr.bf16.gmra.mrb[0].mxu0 %v3780
    %v3820 = vpop.f32.mrb[0].mxu0
    %v3821 = vadd.f32 0.0, %v3820
    %v3822 = vpop.f32.mrb[0].mxu0
    %v3823 = vpop.f32.mrb[0].mxu0
    %v3824 = vpop.f32.mrb[0].mxu0
    %3825 = vdwg.mxu0
    %v3826 = vpack.c.bf16 %v3821, %v3821
    %v3827 = vld [vmem:[#allocation5 + $0x300] sm:$0xf]
    %v3828 = vld [vmem:[#allocation5 + $0x304] sm:$0xf]
    %v3829 = vld [vmem:[#allocation2 + $0xf0] sm:$0x1]
    %v3831 = vsel %vm3778, %v3829, 0
    %3833 = vmatprep.subr.bf16.mxu0 0
    %3834 = vmatpush1.bf16.msra.mxu0 %v3784
    %3835 = vmatprep.subr.bf16.mxu0 0
    %3836 = vmatpush1.bf16.msra.mxu0 0
    %3837 = vmatprep.subr.bf16.mxu0 0
    %3838 = vmatpush1.bf16.msra.mxu0 0
    %3839 = vmatprep.subr.bf16.mxu0 0
    %3840 = vmatpush1.bf16.msra.mxu0 0
    %3841 = vmatprep.subr.bf16.mxu0 0
    %3842 = vmatpush1.bf16.msra.mxu0 0
    %3843 = vmatprep.subr.bf16.mxu0 0
    %3844 = vmatpush1.bf16.msra.mxu0 0
    %3845 = vmatprep.subr.bf16.mxu0 0
    %3846 = vmatpush1.bf16.msra.mxu0 0
    %3847 = vmatprep.subr.bf16.mxu0 0
    %3848 = vmatpush1.bf16.msra.mxu0 0
    %3849 = vmatprep.subr.bf16.mxu0 0
    %3850 = vmatpush1.bf16.msra.mxu0 0
    %3851 = vmatprep.subr.bf16.mxu0 0
    %3852 = vmatpush1.bf16.msra.mxu0 0
    %3853 = vmatprep.subr.bf16.mxu0 0
    %3854 = vmatpush1.bf16.msra.mxu0 0
    %3855 = vmatprep.subr.bf16.mxu0 0
    %3856 = vmatpush1.bf16.msra.mxu0 0
    %3857 = vmatprep.subr.bf16.mxu0 0
    %3858 = vmatpush1.bf16.msra.mxu0 0
    %3859 = vmatprep.subr.bf16.mxu0 0
    %3860 = vmatpush1.bf16.msra.mxu0 0
    %3861 = vmatprep.subr.bf16.mxu0 0
    %3862 = vmatpush1.bf16.msra.mxu0 0
    %3863 = vmatprep.subr.bf16.mxu0 0
    %3864 = vmatpush1.bf16.msra.mxu0 0
    %3865 = vmatprep.mubr.bf16.mxu0 0
    %3866 = vmatmul.mubr.bf16.gmra.mrb[0].mxu0 %v3831
    %v3867 = vpop.f32.mrb[0].mxu0
    %v3868 = vadd.f32 0.0, %v3867
    %v3869 = vpop.f32.mrb[0].mxu0
    %v3870 = vpop.f32.mrb[0].mxu0
    %v3871 = vpop.f32.mrb[0].mxu0
    %3872 = vdwg.mxu0
    %v3873 = vpack.c.bf16 %v3868, %v3868
    %v3874 = vld [vmem:[#allocation5 + $0x308] sm:$0xf]
    %v3875 = vld [vmem:[#allocation5 + $0x30c] sm:$0xf]
    %v3878 = vunpack.c.l.b16 %v3874
    %v3879 = vunpack.c.l.b16 %v3875
    %v3880 = vpack.c.b16 %v3879, %v3878
    %v3883 = vsel %vm1990, %v3873, 0
    %3885 = vmatprep.subr.bf16.mxu0 0
    %3886 = vmatpush1.bf16.msra.mxu0 %v3880
    %3887 = vmatprep.subr.bf16.mxu0 0
    %3888 = vmatpush1.bf16.msra.mxu0 0
    %3889 = vmatprep.subr.bf16.mxu0 0
    %3890 = vmatpush1.bf16.msra.mxu0 0
    %3891 = vmatprep.subr.bf16.mxu0 0
    %3892 = vmatpush1.bf16.msra.mxu0 0
    %3893 = vmatprep.subr.bf16.mxu0 0
    %3894 = vmatpush1.bf16.msra.mxu0 0
    %3895 = vmatprep.subr.bf16.mxu0 0
    %3896 = vmatpush1.bf16.msra.mxu0 0
    %3897 = vmatprep.subr.bf16.mxu0 0
    %3898 = vmatpush1.bf16.msra.mxu0 0
    %3899 = vmatprep.subr.bf16.mxu0 0
    %3900 = vmatpush1.bf16.msra.mxu0 0
    %3901 = vmatprep.subr.bf16.mxu0 0
    %3902 = vmatpush1.bf16.msra.mxu0 0
    %3903 = vmatprep.subr.bf16.mxu0 0
    %3904 = vmatpush1.bf16.msra.mxu0 0
    %3905 = vmatprep.subr.bf16.mxu0 0
    %3906 = vmatpush1.bf16.msra.mxu0 0
    %3907 = vmatprep.subr.bf16.mxu0 0
    %3908 = vmatpush1.bf16.msra.mxu0 0
    %3909 = vmatprep.subr.bf16.mxu0 0
    %3910 = vmatpush1.bf16.msra.mxu0 0
    %3911 = vmatprep.subr.bf16.mxu0 0
    %3912 = vmatpush1.bf16.msra.mxu0 0
    %3913 = vmatprep.subr.bf16.mxu0 0
    %3914 = vmatpush1.bf16.msra.mxu0 0
    %3915 = vmatprep.subr.bf16.mxu0 0
    %3916 = vmatpush1.bf16.msra.mxu0 0
    %3917 = vmatprep.mubr.bf16.mxu0 0
    %3918 = vmatmul.mubr.bf16.gmra.mrb[0].mxu0 %v3883
    %v3919 = vpop.f32.mrb[0].mxu0
    %v3920 = vadd.f32 0.0, %v3919
    %v3921 = vpop.f32.mrb[0].mxu0
    %v3922 = vpop.f32.mrb[0].mxu0
    %v3923 = vpop.f32.mrb[0].mxu0
    %3924 = vdwg.mxu0
    %v3927 = vunpack.c.l.b16 %v3827
    %v3928 = vunpack.c.l.b16 %v3828
    %v3929 = vpack.c.b16 %v3928, %v3927
    %v3932 = vsel %vm1990, %v3826, 0
    %3934 = vmatprep.subr.bf16.mxu0 0
    %3935 = vmatpush1.bf16.msra.mxu0 %v3929
    %3936 = vmatprep.subr.bf16.mxu0 0
    %3937 = vmatpush1.bf16.msra.mxu0 0
    %3938 = vmatprep.subr.bf16.mxu0 0
    %3939 = vmatpush1.bf16.msra.mxu0 0
    %3940 = vmatprep.subr.bf16.mxu0 0
    %3941 = vmatpush1.bf16.msra.mxu0 0
    %3942 = vmatprep.subr.bf16.mxu0 0
    %3943 = vmatpush1.bf16.msra.mxu0 0
    %3944 = vmatprep.subr.bf16.mxu0 0
    %3945 = vmatpush1.bf16.msra.mxu0 0
    %3946 = vmatprep.subr.bf16.mxu0 0
    %3947 = vmatpush1.bf16.msra.mxu0 0
    %3948 = vmatprep.subr.bf16.mxu0 0
    %3949 = vmatpush1.bf16.msra.mxu0 0
    %3950 = vmatprep.subr.bf16.mxu0 0
    %3951 = vmatpush1.bf16.msra.mxu0 0
    %3952 = vmatprep.subr.bf16.mxu0 0
    %3953 = vmatpush1.bf16.msra.mxu0 0
    %3954 = vmatprep.subr.bf16.mxu0 0
    %3955 = vmatpush1.bf16.msra.mxu0 0
    %3956 = vmatprep.subr.bf16.mxu0 0
    %3957 = vmatpush1.bf16.msra.mxu0 0
    %3958 = vmatprep.subr.bf16.mxu0 0
    %3959 = vmatpush1.bf16.msra.mxu0 0
    %3960 = vmatprep.subr.bf16.mxu0 0
    %3961 = vmatpush1.bf16.msra.mxu0 0
    %3962 = vmatprep.subr.bf16.mxu0 0
    %3963 = vmatpush1.bf16.msra.mxu0 0
    %3964 = vmatprep.subr.bf16.mxu0 0
    %3965 = vmatpush1.bf16.msra.mxu0 0
    %3966 = vmatprep.mubr.bf16.mxu0 0
    %3967 = vmatmul.mubr.bf16.gmra.mrb[0].mxu0 %v3932
    %v3968 = vpop.f32.mrb[0].mxu0
    %v3969 = vadd.f32 %v3920, %v3968
    %v3970 = vpop.f32.mrb[0].mxu0
    %v3971 = vpop.f32.mrb[0].mxu0
    %v3972 = vpop.f32.mrb[0].mxu0
    %3973 = vdwg.mxu0
    %v3974 = vld [vmem:[#allocation7 + $0xd0] sm:$0x1]
    %v3975 = vlaneseq
    %v3976 = vshrl.u32 %v3975, 7
    %v3977 = vsub.s32 0, %v3976
    %v3978 = vrot.slane %v3974, %v3977
    %v3979 = vadd.f32 %v3969, %v3978
    %v3980 = vld [vmem:[#allocation2 + $0xf8] sm:$0x1]
    %v3982 = vsel %vm3778, %v3980, 0
    %v3984 = vsel %vm3782, %v3716, 0
    %3986 = vmatprep.subr.bf16.mxu0 0
    %3987 = vmatpush1.bf16.msra.mxu0 %v3984
    %3988 = vmatprep.subr.bf16.mxu0 0
    %3989 = vmatpush1.bf16.msra.mxu0 0
    %3990 = vmatprep.subr.bf16.mxu0 0
    %3991 = vmatpush1.bf16.msra.mxu0 0
    %3992 = vmatprep.subr.bf16.mxu0 0
    %3993 = vmatpush1.bf16.msra.mxu0 0
    %3994 = vmatprep.subr.bf16.mxu0 0
    %3995 = vmatpush1.bf16.msra.mxu0 0
    %3996 = vmatprep.subr.bf16.mxu0 0
    %3997 = vmatpush1.bf16.msra.mxu0 0
    %3998 = vmatprep.subr.bf16.mxu0 0
    %3999 = vmatpush1.bf16.msra.mxu0 0
    %4000 = vmatprep.subr.bf16.mxu0 0
    %4001 = vmatpush1.bf16.msra.mxu0 0
    %4002 = vmatprep.subr.bf16.mxu0 0
    %4003 = vmatpush1.bf16.msra.mxu0 0
    %4004 = vmatprep.subr.bf16.mxu0 0
    %4005 = vmatpush1.bf16.msra.mxu0 0
    %4006 = vmatprep.subr.bf16.mxu0 0
    %4007 = vmatpush1.bf16.msra.mxu0 0
    %4008 = vmatprep.subr.bf16.mxu0 0
    %4009 = vmatpush1.bf16.msra.mxu0 0
    %4010 = vmatprep.subr.bf16.mxu0 0
    %4011 = vmatpush1.bf16.msra.mxu0 0
    %4012 = vmatprep.subr.bf16.mxu0 0
    %4013 = vmatpush1.bf16.msra.mxu0 0
    %4014 = vmatprep.subr.bf16.mxu0 0
    %4015 = vmatpush1.bf16.msra.mxu0 0
    %4016 = vmatprep.subr.bf16.mxu0 0
    %4017 = vmatpush1.bf16.msra.mxu0 0
    %4018 = vmatprep.mubr.bf16.mxu0 0
    %4019 = vmatmul.mubr.bf16.gmra.mrb[0].mxu0 %v3982
    %v4020 = vpop.f32.mrb[0].mxu0
    %v4021 = vadd.f32 0.0, %v4020
    %v4022 = vpop.f32.mrb[0].mxu0
    %v4023 = vpop.f32.mrb[0].mxu0
    %v4024 = vpop.f32.mrb[0].mxu0
    %4025 = vdwg.mxu0
    %v4026 = vpack.c.bf16 %v4021, %v4021
    %v4027 = vld [vmem:[#allocation5 + $0x310] sm:$0xf]
    %v4028 = vld [vmem:[#allocation5 + $0x314] sm:$0xf]
    %v4029 = vld [vmem:[#allocation2 + $0x100] sm:$0x1]
    %v4031 = vsel %vm3778, %v4029, 0
    %4033 = vmatprep.subr.bf16.mxu0 0
    %4034 = vmatpush1.bf16.msra.mxu0 %v3984
    %4035 = vmatprep.subr.bf16.mxu0 0
    %4036 = vmatpush1.bf16.msra.mxu0 0
    %4037 = vmatprep.subr.bf16.mxu0 0
    %4038 = vmatpush1.bf16.msra.mxu0 0
    %4039 = vmatprep.subr.bf16.mxu0 0
    %4040 = vmatpush1.bf16.msra.mxu0 0
    %4041 = vmatprep.subr.bf16.mxu0 0
    %4042 = vmatpush1.bf16.msra.mxu0 0
    %4043 = vmatprep.subr.bf16.mxu0 0
    %4044 = vmatpush1.bf16.msra.mxu0 0
    %4045 = vmatprep.subr.bf16.mxu0 0
    %4046 = vmatpush1.bf16.msra.mxu0 0
    %4047 = vmatprep.subr.bf16.mxu0 0
    %4048 = vmatpush1.bf16.msra.mxu0 0
    %4049 = vmatprep.subr.bf16.mxu0 0
    %4050 = vmatpush1.bf16.msra.mxu0 0
    %4051 = vmatprep.subr.bf16.mxu0 0
    %4052 = vmatpush1.bf16.msra.mxu0 0
    %4053 = vmatprep.subr.bf16.mxu0 0
    %4054 = vmatpush1.bf16.msra.mxu0 0
    %4055 = vmatprep.subr.bf16.mxu0 0
    %4056 = vmatpush1.bf16.msra.mxu0 0
    %4057 = vmatprep.subr.bf16.mxu0 0
    %4058 = vmatpush1.bf16.msra.mxu0 0
    %4059 = vmatprep.subr.bf16.mxu0 0
    %4060 = vmatpush1.bf16.msra.mxu0 0
    %4061 = vmatprep.subr.bf16.mxu0 0
    %4062 = vmatpush1.bf16.msra.mxu0 0
    %4063 = vmatprep.subr.bf16.mxu0 0
    %4064 = vmatpush1.bf16.msra.mxu0 0
    %4065 = vmatprep.mubr.bf16.mxu0 0
    %4066 = vmatmul.mubr.bf16.gmra.mrb[0].mxu0 %v4031
    %v4067 = vpop.f32.mrb[0].mxu0
    %v4068 = vadd.f32 0.0, %v4067
    %v4069 = vpop.f32.mrb[0].mxu0
    %v4070 = vpop.f32.mrb[0].mxu0
    %v4071 = vpop.f32.mrb[0].mxu0
    %4072 = vdwg.mxu0
    %v4073 = vpack.c.bf16 %v4068, %v4068
    %v4074 = vld [vmem:[#allocation5 + $0x318] sm:$0xf]
    %v4075 = vld [vmem:[#allocation5 + $0x31c] sm:$0xf]
    %v4078 = vunpack.c.l.b16 %v4074
    %v4079 = vunpack.c.l.b16 %v4075
    %v4080 = vpack.c.b16 %v4079, %v4078
    %v4083 = vsel %vm1990, %v4073, 0
    %4085 = vmatprep.subr.bf16.mxu0 0
    %4086 = vmatpush1.bf16.msra.mxu0 %v4080
    %4087 = vmatprep.subr.bf16.mxu0 0
    %4088 = vmatpush1.bf16.msra.mxu0 0
    %4089 = vmatprep.subr.bf16.mxu0 0
    %4090 = vmatpush1.bf16.msra.mxu0 0
    %4091 = vmatprep.subr.bf16.mxu0 0
    %4092 = vmatpush1.bf16.msra.mxu0 0
    %4093 = vmatprep.subr.bf16.mxu0 0
    %4094 = vmatpush1.bf16.msra.mxu0 0
    %4095 = vmatprep.subr.bf16.mxu0 0
    %4096 = vmatpush1.bf16.msra.mxu0 0
    %4097 = vmatprep.subr.bf16.mxu0 0
    %4098 = vmatpush1.bf16.msra.mxu0 0
    %4099 = vmatprep.subr.bf16.mxu0 0
    %4100 = vmatpush1.bf16.msra.mxu0 0
    %4101 = vmatprep.subr.bf16.mxu0 0
    %4102 = vmatpush1.bf16.msra.mxu0 0
    %4103 = vmatprep.subr.bf16.mxu0 0
    %4104 = vmatpush1.bf16.msra.mxu0 0
    %4105 = vmatprep.subr.bf16.mxu0 0
    %4106 = vmatpush1.bf16.msra.mxu0 0
    %4107 = vmatprep.subr.bf16.mxu0 0
    %4108 = vmatpush1.bf16.msra.mxu0 0
    %4109 = vmatprep.subr.bf16.mxu0 0
    %4110 = vmatpush1.bf16.msra.mxu0 0
    %4111 = vmatprep.subr.bf16.mxu0 0
    %4112 = vmatpush1.bf16.msra.mxu0 0
    %4113 = vmatprep.subr.bf16.mxu0 0
    %4114 = vmatpush1.bf16.msra.mxu0 0
    %4115 = vmatprep.subr.bf16.mxu0 0
    %4116 = vmatpush1.bf16.msra.mxu0 0
    %4117 = vmatprep.mubr.bf16.mxu0 0
    %4118 = vmatmul.mubr.bf16.gmra.mrb[0].mxu0 %v4083
    %v4119 = vpop.f32.mrb[0].mxu0
    %v4120 = vadd.f32 0.0, %v4119
    %v4121 = vpop.f32.mrb[0].mxu0
    %v4122 = vpop.f32.mrb[0].mxu0
    %v4123 = vpop.f32.mrb[0].mxu0
    %4124 = vdwg.mxu0
    %v4127 = vunpack.c.l.b16 %v4027
    %v4128 = vunpack.c.l.b16 %v4028
    %v4129 = vpack.c.b16 %v4128, %v4127
    %v4132 = vsel %vm1990, %v4026, 0
    %4134 = vmatprep.subr.bf16.mxu0 0
    %4135 = vmatpush1.bf16.msra.mxu0 %v4129
    %4136 = vmatprep.subr.bf16.mxu0 0
    %4137 = vmatpush1.bf16.msra.mxu0 0
    %4138 = vmatprep.subr.bf16.mxu0 0
    %4139 = vmatpush1.bf16.msra.mxu0 0
    %4140 = vmatprep.subr.bf16.mxu0 0
    %4141 = vmatpush1.bf16.msra.mxu0 0
    %4142 = vmatprep.subr.bf16.mxu0 0
    %4143 = vmatpush1.bf16.msra.mxu0 0
    %4144 = vmatprep.subr.bf16.mxu0 0
    %4145 = vmatpush1.bf16.msra.mxu0 0
    %4146 = vmatprep.subr.bf16.mxu0 0
    %4147 = vmatpush1.bf16.msra.mxu0 0
    %4148 = vmatprep.subr.bf16.mxu0 0
    %4149 = vmatpush1.bf16.msra.mxu0 0
    %4150 = vmatprep.subr.bf16.mxu0 0
    %4151 = vmatpush1.bf16.msra.mxu0 0
    %4152 = vmatprep.subr.bf16.mxu0 0
    %4153 = vmatpush1.bf16.msra.mxu0 0
    %4154 = vmatprep.subr.bf16.mxu0 0
    %4155 = vmatpush1.bf16.msra.mxu0 0
    %4156 = vmatprep.subr.bf16.mxu0 0
    %4157 = vmatpush1.bf16.msra.mxu0 0
    %4158 = vmatprep.subr.bf16.mxu0 0
    %4159 = vmatpush1.bf16.msra.mxu0 0
    %4160 = vmatprep.subr.bf16.mxu0 0
    %4161 = vmatpush1.bf16.msra.mxu0 0
    %4162 = vmatprep.subr.bf16.mxu0 0
    %4163 = vmatpush1.bf16.msra.mxu0 0
    %4164 = vmatprep.subr.bf16.mxu0 0
    %4165 = vmatpush1.bf16.msra.mxu0 0
    %4166 = vmatprep.mubr.bf16.mxu0 0
    %4167 = vmatmul.mubr.bf16.gmra.mrb[0].mxu0 %v4132
    %v4168 = vpop.f32.mrb[0].mxu0
    %v4169 = vadd.f32 %v4120, %v4168
    %v4170 = vpop.f32.mrb[0].mxu0
    %v4171 = vpop.f32.mrb[0].mxu0
    %v4172 = vpop.f32.mrb[0].mxu0
    %4173 = vdwg.mxu0
    %v4174 = vld [vmem:[#allocation7 + $0xe0] sm:$0x1]
    %v4175 = vlaneseq
    %v4176 = vshrl.u32 %v4175, 7
    %v4177 = vsub.s32 0, %v4176
    %v4178 = vrot.slane %v4174, %v4177
    %v4179 = vadd.f32 %v4169, %v4178
    %vm4180 = vcmp.ge.f32.partialorder %v4179, 0.0
    %v4181 = vmul.f32 %v4179, 0.1
    %v4182 = vsel %vm4180, %v4179, %v4181
    %v4183 = vpack.c.bf16 %v4182, %v4182
    %v4184 = vld [vmem:[#allocation5 + $0x320] sm:$0xf]
    %v4185 = vld [vmem:[#allocation7 + $0xf0] sm:$0x1]
    %v4186 = vlaneseq
    %v4187 = vshrl.u32 %v4186, 7
    %v4188 = vsub.s32 0, %v4187
    %v4189 = vrot.slane %v4185, %v4188
    %v4191 = vsel %vm3049, %v4183, 0
    %v4194 = vsel %vm3053, %v4184, 0
    %4196 = vmatprep.subr.bf16.mxu0 0
    %4197 = vmatpush1.bf16.msra.mxu0 %v4194
    %4198 = vmatprep.subr.bf16.mxu0 0
    %4199 = vmatpush1.bf16.msra.mxu0 0
    %4200 = vmatprep.subr.bf16.mxu0 0
    %4201 = vmatpush1.bf16.msra.mxu0 0
    %4202 = vmatprep.subr.bf16.mxu0 0
    %4203 = vmatpush1.bf16.msra.mxu0 0
    %4204 = vmatprep.subr.bf16.mxu0 0
    %4205 = vmatpush1.bf16.msra.mxu0 0
    %4206 = vmatprep.subr.bf16.mxu0 0
    %4207 = vmatpush1.bf16.msra.mxu0 0
    %4208 = vmatprep.subr.bf16.mxu0 0
    %4209 = vmatpush1.bf16.msra.mxu0 0
    %4210 = vmatprep.subr.bf16.mxu0 0
    %4211 = vmatpush1.bf16.msra.mxu0 0
    %4212 = vmatprep.subr.bf16.mxu0 0
    %4213 = vmatpush1.bf16.msra.mxu0 0
    %4214 = vmatprep.subr.bf16.mxu0 0
    %4215 = vmatpush1.bf16.msra.mxu0 0
    %4216 = vmatprep.subr.bf16.mxu0 0
    %4217 = vmatpush1.bf16.msra.mxu0 0
    %4218 = vmatprep.subr.bf16.mxu0 0
    %4219 = vmatpush1.bf16.msra.mxu0 0
    %4220 = vmatprep.subr.bf16.mxu0 0
    %4221 = vmatpush1.bf16.msra.mxu0 0
    %4222 = vmatprep.subr.bf16.mxu0 0
    %4223 = vmatpush1.bf16.msra.mxu0 0
    %4224 = vmatprep.subr.bf16.mxu0 0
    %4225 = vmatpush1.bf16.msra.mxu0 0
    %4226 = vmatprep.subr.bf16.mxu0 0
    %4227 = vmatpush1.bf16.msra.mxu0 0
    %4228 = vmatprep.mubr.bf16.mxu0 0
    %4229 = vmatmul.mubr.bf16.gmra.mrb[0].mxu0 %v4191
    %v4230 = vpop.f32.mrb[0].mxu0
    %v4231 = vadd.f32 %v4189, %v4230
    %v4232 = vpop.f32.mrb[0].mxu0
    %v4233 = vpop.f32.mrb[0].mxu0
    %v4234 = vpop.f32.mrb[0].mxu0
    %4235 = vdwg.mxu0
    %vm4236 = vcmp.ge.f32.partialorder %v4231, 0.0
    %v4237 = vmul.f32 %v4231, 0.1
    %v4238 = vsel %vm4236, %v4231, %v4237
    %v4239 = vpack.c.bf16 %v4238, %v4238
    %v4240 = vld [vmem:[#allocation5 + $0x328] sm:$0xf]
    %v4241 = vld [vmem:[#allocation7 + $0x100] sm:$0x1]
    %v4242 = vlaneseq
    %v4243 = vshrl.u32 %v4242, 7
    %v4244 = vsub.s32 0, %v4243
    %v4245 = vrot.slane %v4241, %v4244
    %v4247 = vsel %vm3049, %v4239, 0
    %v4250 = vsel %vm3053, %v4240, 0
    %4252 = vmatprep.subr.bf16.mxu0 0
    %4253 = vmatpush1.bf16.msra.mxu0 %v4250
    %4254 = vmatprep.subr.bf16.mxu0 0
    %4255 = vmatpush1.bf16.msra.mxu0 0
    %4256 = vmatprep.subr.bf16.mxu0 0
    %4257 = vmatpush1.bf16.msra.mxu0 0
    %4258 = vmatprep.subr.bf16.mxu0 0
    %4259 = vmatpush1.bf16.msra.mxu0 0
    %4260 = vmatprep.subr.bf16.mxu0 0
    %4261 = vmatpush1.bf16.msra.mxu0 0
    %4262 = vmatprep.subr.bf16.mxu0 0
    %4263 = vmatpush1.bf16.msra.mxu0 0
    %4264 = vmatprep.subr.bf16.mxu0 0
    %4265 = vmatpush1.bf16.msra.mxu0 0
    %4266 = vmatprep.subr.bf16.mxu0 0
    %4267 = vmatpush1.bf16.msra.mxu0 0
    %4268 = vmatprep.subr.bf16.mxu0 0
    %4269 = vmatpush1.bf16.msra.mxu0 0
    %4270 = vmatprep.subr.bf16.mxu0 0
    %4271 = vmatpush1.bf16.msra.mxu0 0
    %4272 = vmatprep.subr.bf16.mxu0 0
    %4273 = vmatpush1.bf16.msra.mxu0 0
    %4274 = vmatprep.subr.bf16.mxu0 0
    %4275 = vmatpush1.bf16.msra.mxu0 0
    %4276 = vmatprep.subr.bf16.mxu0 0
    %4277 = vmatpush1.bf16.msra.mxu0 0
    %4278 = vmatprep.subr.bf16.mxu0 0
    %4279 = vmatpush1.bf16.msra.mxu0 0
    %4280 = vmatprep.subr.bf16.mxu0 0
    %4281 = vmatpush1.bf16.msra.mxu0 0
    %4282 = vmatprep.subr.bf16.mxu0 0
    %4283 = vmatpush1.bf16.msra.mxu0 0
    %4284 = vmatprep.mubr.bf16.mxu0 0
    %4285 = vmatmul.mubr.bf16.gmra.mrb[0].mxu0 %v4247
    %v4286 = vpop.f32.mrb[0].mxu0
    %v4287 = vadd.f32 %v4245, %v4286
    %v4288 = vpop.f32.mrb[0].mxu0
    %v4289 = vpop.f32.mrb[0].mxu0
    %v4290 = vpop.f32.mrb[0].mxu0
    %4291 = vdwg.mxu0
    %vm4292 = vcmp.ge.f32.partialorder %v4287, 0.0
    %v4293 = vmul.f32 %v4287, 0.1
    %v4294 = vsel %vm4292, %v4287, %v4293
    %v4295 = vpack.c.bf16 %v4294, %v4294
    %v4296 = vld [vmem:[#allocation5 + $0x330] sm:$0xf]
    %v4297 = vld [vmem:[#allocation7 + $0x110] sm:$0x1]
    %v4298 = vlaneseq
    %v4299 = vshrl.u32 %v4298, 7
    %v4300 = vsub.s32 0, %v4299
    %v4301 = vrot.slane %v4297, %v4300
    %v4303 = vsel %vm3049, %v4295, 0
    %v4306 = vsel %vm3053, %v4296, 0
    %4308 = vmatprep.subr.bf16.mxu0 0
    %4309 = vmatpush1.bf16.msra.mxu0 %v4306
    %4310 = vmatprep.subr.bf16.mxu0 0
    %4311 = vmatpush1.bf16.msra.mxu0 0
    %4312 = vmatprep.subr.bf16.mxu0 0
    %4313 = vmatpush1.bf16.msra.mxu0 0
    %4314 = vmatprep.subr.bf16.mxu0 0
    %4315 = vmatpush1.bf16.msra.mxu0 0
    %4316 = vmatprep.subr.bf16.mxu0 0
    %4317 = vmatpush1.bf16.msra.mxu0 0
    %4318 = vmatprep.subr.bf16.mxu0 0
    %4319 = vmatpush1.bf16.msra.mxu0 0
    %4320 = vmatprep.subr.bf16.mxu0 0
    %4321 = vmatpush1.bf16.msra.mxu0 0
    %4322 = vmatprep.subr.bf16.mxu0 0
    %4323 = vmatpush1.bf16.msra.mxu0 0
    %4324 = vmatprep.subr.bf16.mxu0 0
    %4325 = vmatpush1.bf16.msra.mxu0 0
    %4326 = vmatprep.subr.bf16.mxu0 0
    %4327 = vmatpush1.bf16.msra.mxu0 0
    %4328 = vmatprep.subr.bf16.mxu0 0
    %4329 = vmatpush1.bf16.msra.mxu0 0
    %4330 = vmatprep.subr.bf16.mxu0 0
    %4331 = vmatpush1.bf16.msra.mxu0 0
    %4332 = vmatprep.subr.bf16.mxu0 0
    %4333 = vmatpush1.bf16.msra.mxu0 0
    %4334 = vmatprep.subr.bf16.mxu0 0
    %4335 = vmatpush1.bf16.msra.mxu0 0
    %4336 = vmatprep.subr.bf16.mxu0 0
    %4337 = vmatpush1.bf16.msra.mxu0 0
    %4338 = vmatprep.subr.bf16.mxu0 0
    %4339 = vmatpush1.bf16.msra.mxu0 0
    %4340 = vmatprep.mubr.bf16.mxu0 0
    %4341 = vmatmul.mubr.bf16.gmra.mrb[0].mxu0 %v4303
    %v4342 = vpop.f32.mrb[0].mxu0
    %v4343 = vadd.f32 %v4301, %v4342
    %v4344 = vpop.f32.mrb[0].mxu0
    %v4345 = vpop.f32.mrb[0].mxu0
    %v4346 = vpop.f32.mrb[0].mxu0
    %4347 = vdwg.mxu0
    %vm4348 = vcmp.ge.f32.partialorder %v4343, 0.0
    %v4349 = vmul.f32 %v4343, 0.1
    %v4350 = vsel %vm4348, %v4343, %v4349
    %v4351 = vadd.f32 %v4350, %v3979
    %v4352 = vpack.c.bf16 %v4351, %v4351
    %v4353 = vld [vmem:[#allocation5 + $0x338] sm:$0xf]
    %v4354 = vld [vmem:[#allocation7 + $0x120] sm:$0x1]
    %v4355 = vlaneseq
    %v4356 = vshrl.u32 %v4355, 7
    %v4357 = vsub.s32 0, %v4356
    %v4358 = vrot.slane %v4354, %v4357
    %v4360 = vsel %vm3049, %v4352, 0
    %v4363 = vsel %vm3053, %v4353, 0
    %4365 = vmatprep.subr.bf16.mxu0 0
    %4366 = vmatpush1.bf16.msra.mxu0 %v4363
    %4367 = vmatprep.subr.bf16.mxu0 0
    %4368 = vmatpush1.bf16.msra.mxu0 0
    %4369 = vmatprep.subr.bf16.mxu0 0
    %4370 = vmatpush1.bf16.msra.mxu0 0
    %4371 = vmatprep.subr.bf16.mxu0 0
    %4372 = vmatpush1.bf16.msra.mxu0 0
    %4373 = vmatprep.subr.bf16.mxu0 0
    %4374 = vmatpush1.bf16.msra.mxu0 0
    %4375 = vmatprep.subr.bf16.mxu0 0
    %4376 = vmatpush1.bf16.msra.mxu0 0
    %4377 = vmatprep.subr.bf16.mxu0 0
    %4378 = vmatpush1.bf16.msra.mxu0 0
    %4379 = vmatprep.subr.bf16.mxu0 0
    %4380 = vmatpush1.bf16.msra.mxu0 0
    %4381 = vmatprep.subr.bf16.mxu0 0
    %4382 = vmatpush1.bf16.msra.mxu0 0
    %4383 = vmatprep.subr.bf16.mxu0 0
    %4384 = vmatpush1.bf16.msra.mxu0 0
    %4385 = vmatprep.subr.bf16.mxu0 0
    %4386 = vmatpush1.bf16.msra.mxu0 0
    %4387 = vmatprep.subr.bf16.mxu0 0
    %4388 = vmatpush1.bf16.msra.mxu0 0
    %4389 = vmatprep.subr.bf16.mxu0 0
    %4390 = vmatpush1.bf16.msra.mxu0 0
    %4391 = vmatprep.subr.bf16.mxu0 0
    %4392 = vmatpush1.bf16.msra.mxu0 0
    %4393 = vmatprep.subr.bf16.mxu0 0
    %4394 = vmatpush1.bf16.msra.mxu0 0
    %4395 = vmatprep.subr.bf16.mxu0 0
    %4396 = vmatpush1.bf16.msra.mxu0 0
    %4397 = vmatprep.mubr.bf16.mxu0 0
    %4398 = vmatmul.mubr.bf16.gmra.mrb[0].mxu0 %v4360
    %v4399 = vpop.f32.mrb[0].mxu0
    %v4400 = vadd.f32 %v4358, %v4399
    %v4401 = vpop.f32.mrb[0].mxu0
    %v4402 = vpop.f32.mrb[0].mxu0
    %v4403 = vpop.f32.mrb[0].mxu0
    %4404 = vdwg.mxu0
    %v4405 = vtanh.pop %v4400
    %v4406 = vpack.c.bf16 %v4405, %v4405
    %v4407 = vld [vmem:[#allocation5 + $0x340] sm:$0xf]
    %v4408 = vld [vmem:[#allocation5 + $0x344] sm:$0xf]
    %v4409 = vld [vmem:[#allocation7 + $0x130] sm:$0x1]
    %v4410 = vlaneseq
    %v4411 = vshrl.u32 %v4410, 7
    %v4412 = vsub.s32 0, %v4411
    %v4413 = vrot.slane %v4409, %v4412
    %v4416 = vunpack.c.l.b16 %v4407
    %v4417 = vunpack.c.l.b16 %v4408
    %v4418 = vpack.c.b16 %v4417, %v4416
    %v4421 = vsel %vm1990, %v4406, 0
    %4423 = vmatprep.subr.bf16.mxu0 0
    %4424 = vmatpush1.bf16.msra.mxu0 %v4418
    %4425 = vmatprep.subr.bf16.mxu0 0
    %4426 = vmatpush1.bf16.msra.mxu0 0
    %4427 = vmatprep.subr.bf16.mxu0 0
    %4428 = vmatpush1.bf16.msra.mxu0 0
    %4429 = vmatprep.subr.bf16.mxu0 0
    %4430 = vmatpush1.bf16.msra.mxu0 0
    %4431 = vmatprep.subr.bf16.mxu0 0
    %4432 = vmatpush1.bf16.msra.mxu0 0
    %4433 = vmatprep.subr.bf16.mxu0 0
    %4434 = vmatpush1.bf16.msra.mxu0 0
    %4435 = vmatprep.subr.bf16.mxu0 0
    %4436 = vmatpush1.bf16.msra.mxu0 0
    %4437 = vmatprep.subr.bf16.mxu0 0
    %4438 = vmatpush1.bf16.msra.mxu0 0
    %4439 = vmatprep.subr.bf16.mxu0 0
    %4440 = vmatpush1.bf16.msra.mxu0 0
    %4441 = vmatprep.subr.bf16.mxu0 0
    %4442 = vmatpush1.bf16.msra.mxu0 0
    %4443 = vmatprep.subr.bf16.mxu0 0
    %4444 = vmatpush1.bf16.msra.mxu0 0
    %4445 = vmatprep.subr.bf16.mxu0 0
    %4446 = vmatpush1.bf16.msra.mxu0 0
    %4447 = vmatprep.subr.bf16.mxu0 0
    %4448 = vmatpush1.bf16.msra.mxu0 0
    %4449 = vmatprep.subr.bf16.mxu0 0
    %4450 = vmatpush1.bf16.msra.mxu0 0
    %4451 = vmatprep.subr.bf16.mxu0 0
    %4452 = vmatpush1.bf16.msra.mxu0 0
    %4453 = vmatprep.subr.bf16.mxu0 0
    %4454 = vmatpush1.bf16.msra.mxu0 0
    %4455 = vmatprep.mubr.bf16.mxu0 0
    %4456 = vmatmul.mubr.bf16.gmra.mrb[0].mxu0 %v4421
    %v4457 = vpop.f32.mrb[0].mxu0
    %v4458 = vadd.f32 %v4413, %v4457
    %v4459 = vpop.f32.mrb[0].mxu0
    %v4460 = vpop.f32.mrb[0].mxu0
    %v4461 = vpop.f32.mrb[0].mxu0
    %4462 = vdwg.mxu0
    %v4463 = vtanh.pop %v4458
    %vm4464 = vcmask 9216
    %4465 = vst.msk [vmem:[#allocation8] sm:$0x3] %vm4464, %v4463
    // Predicated region
    $region30: #{_lambda_.1} parent=1 // pred_check
      _
    $region31: #{_lambda_.1} parent=1 // pred_check_branch
      %4467 = sbr.rel (0) target = $region33
    $region32: #{_lambda_.1} parent=1 // pred_region
      %s4469 = ssub.s32 32, 32
      %4470 = vsyncadd [#allocation4], %s4469
      %s4472 = sshll.u32 [#allocation8], 4
      %s4473 = int_to_ptr.vmem [resolvable:$true] %s4472
      %4475 = dma.vmem_to_hbm [thread:$0]  %s4473, 32, %s4, [#allocation4]
    $region33: #{_lambda_.1} parent=1 // pred_fallthru
      _
    // Predicated region
    $region34: #{_lambda_.1} parent=1 // pred_check
      _
    $region35: #{_lambda_.1} parent=1 // pred_check_branch
      %4477 = sbr.rel (0) target = $region37
    $region36: #{_lambda_.1} parent=1 // pred_region
      %4478 = dma.done [#allocation4], 32
    $region37: #{_lambda_.1} parent=1 // pred_fallthru
      _
    %4479 = vsyncpa [#allocation3], 1
    %4480 = vsyncpa [#allocation6], 1
    %4481 = vsyncpa [#allocation4], 1

</llo_original>
